<compile_context>
chip_gen: v7x
topology: tpu7x:2x2x1
jax: 0.10.0
libtpu: 0.0.40
codegen_flags: <defaults>
</compile_context>

<pallas_src>
import functools
import math

import jax
import jax.numpy as jnp
from jax.experimental import pallas as pl
from jax.experimental.pallas import tpu as pltpu


# ----------------------------------------------------------------------------
# helpers
# ----------------------------------------------------------------------------
def _full_spec(shape):
    """BlockSpec covering the full array (block == array, grid=(1,))."""
    nd = len(shape)
    return pl.BlockSpec(shape, lambda i: (0,) * nd)


def _layer_norm(x, g, b, eps=1e-5):
    mu = jnp.mean(x, axis=-1, keepdims=True)
    var = jnp.mean((x - mu) ** 2, axis=-1, keepdims=True)
    return (x - mu) * jax.lax.rsqrt(var + eps) * g + b


def _mm(a, b):
    """bf16 operands on the MXU, f32 accumulation."""
    return jnp.dot(a.astype(jnp.bfloat16), b.astype(jnp.bfloat16),
                   preferred_element_type=jnp.float32)


# ----------------------------------------------------------------------------
# fused Pallas kernel: whole Autoformer forward pass
# ----------------------------------------------------------------------------
def autoformer_fused_kernel(
    nhead, num_layers,
    x_ref, in_w_ref, in_b_ref,
    wqkv_ref, bqkv_ref, wo_ref, bo_ref,
    ln1g_ref, ln1b_ref, w1_ref, b1_ref, w2_ref, b2_ref,
    ln2g_ref, ln2b_ref,
    head_w_ref, head_b_ref,
    o_ref,
):
    x = x_ref[...]                                   # (B, S, Fin) f32
    B, S, Fin = x.shape
    D = in_w_ref.shape[1]
    hd = D // nhead

    # ---- input projection: one (B*S, Fin) @ (Fin, D) GEMM ------------------
    h = _mm(x.reshape(B * S, Fin), in_w_ref[...]) + in_b_ref[...]   # (B*S, D)

    for l in range(num_layers):                      # static unroll (L = 2)
        # ---- fused QKV projection (Q part pre-scaled by 1/sqrt(hd)) --------
        qkv = _mm(h, wqkv_ref[l]) + bqkv_ref[l]      # (B*S, 3D) f32
        qkv3 = qkv.reshape(B, S, 3 * D)

        # ---- multi-head self attention (static per-head loop, nhead=4) -----
        head_outs = []
        for hh in range(nhead):
            lo = hh * hd
            qh = qkv3[:, :, lo:lo + hd]
            kh = qkv3[:, :, D + lo:D + lo + hd]
            vh = qkv3[:, :, 2 * D + lo:2 * D + lo + hd]
            s = jnp.einsum("bqd,bkd->bqk",
                           qh.astype(jnp.bfloat16), kh.astype(jnp.bfloat16),
                           preferred_element_type=jnp.float32)
            s = s - jnp.max(s, axis=-1, keepdims=True)
            p = jnp.exp(s)
            p = p * pl.reciprocal(jnp.sum(p, axis=-1, keepdims=True),
                                  approx=True)
            head_outs.append(
                jnp.einsum("bqk,bkd->bqd",
                           p.astype(jnp.bfloat16), vh.astype(jnp.bfloat16),
                           preferred_element_type=jnp.float32))
        attn = jnp.concatenate(head_outs, axis=-1).reshape(B * S, D)

        attn_out = _mm(attn, wo_ref[l]) + bo_ref[l]
        # residual + layernorm (post-norm, PyTorch default norm_first=False)
        y = _layer_norm(h + attn_out, ln1g_ref[l], ln1b_ref[l])

        # ---- feed-forward (ReLU), 2D GEMMs ----------------------------------
        ff = jnp.maximum(_mm(y, w1_ref[l]) + b1_ref[l], 0.0)
        ff = _mm(ff, w2_ref[l]) + b2_ref[l]
        h = _layer_norm(y + ff, ln2g_ref[l], ln2b_ref[l])

    # ---- seasonal + trend head fused: (B, D) @ (D, 1) on the last timestep --
    last = h.reshape(B, S, D)[:, S - 1, :]           # (B, D)
    o_ref[...] = _mm(last, head_w_ref[...]) + head_b_ref[...]


# ----------------------------------------------------------------------------
# parameter handling
# ----------------------------------------------------------------------------
def init_params(key, input_size, d_model, nhead, num_layers, dim_ff):
    def lin(k, fan_in, fan_out):
        k1, k2 = jax.random.split(k)
        w = jax.random.normal(k1, (fan_in, fan_out), jnp.float32) * 0.05
        b = jax.random.normal(k2, (1, fan_out), jnp.float32) * 0.05
        return w, b

    keys = jax.random.split(key, 3 + num_layers)
    params = {}
    params["in_w"], params["in_b"] = lin(keys[0], input_size, d_model)
    params["seas_w"], params["seas_b"] = lin(keys[1], d_model, 1)
    params["trend_w"], params["trend_b"] = lin(keys[2], d_model, 1)

    layers = []
    for li in range(num_layers):
        lk = jax.random.split(keys[3 + li], 6)
        p = {}
        p["wq"], p["bq"] = lin(lk[0], d_model, d_model)
        p["wk"], p["bk"] = lin(lk[1], d_model, d_model)
        p["wv"], p["bv"] = lin(lk[2], d_model, d_model)
        p["wo"], p["bo"] = lin(lk[3], d_model, d_model)
        p["w1"], p["b1"] = lin(lk[4], d_model, dim_ff)
        p["w2"], p["b2"] = lin(lk[5], dim_ff, d_model)
        p["ln1_g"] = jnp.ones((1, d_model), jnp.float32)
        p["ln1_b"] = jnp.zeros((1, d_model), jnp.float32)
        p["ln2_g"] = jnp.ones((1, d_model), jnp.float32)
        p["ln2_b"] = jnp.zeros((1, d_model), jnp.float32)
        layers.append(p)
    params["layers"] = layers
    return params


def prepare_fused_params(params, nhead):
    """Stack per-layer weights, fuse QKV (with 1/sqrt(hd) folded into Q) and
    fuse the seasonal/trend head into a single (D, 1) weight."""
    D = params["in_w"].shape[1]
    hd = D // nhead
    scale = 1.0 / math.sqrt(hd)

    def stack(key_fn):
        return jnp.stack([key_fn(p) for p in params["layers"]], axis=0)

    fused = dict(
        in_w=params["in_w"], in_b=params["in_b"],
        wqkv=stack(lambda p: jnp.concatenate(
            [p["wq"] * scale, p["wk"], p["wv"]], axis=1)),
        bqkv=stack(lambda p: jnp.concatenate(
            [p["bq"] * scale, p["bk"], p["bv"]], axis=1)),
        wo=stack(lambda p: p["wo"]), bo=stack(lambda p: p["bo"]),
        ln1g=stack(lambda p: p["ln1_g"]), ln1b=stack(lambda p: p["ln1_b"]),
        w1=stack(lambda p: p["w1"]), b1=stack(lambda p: p["b1"]),
        w2=stack(lambda p: p["w2"]), b2=stack(lambda p: p["b2"]),
        ln2g=stack(lambda p: p["ln2_g"]), ln2b=stack(lambda p: p["ln2_b"]),
        # seasonal_out + trend_out == last @ (Ws + Wt) + (bs + bt)  (exact)
        head_w=params["seas_w"] + params["trend_w"],
        head_b=params["seas_b"] + params["trend_b"],
    )
    return fused


# ----------------------------------------------------------------------------
# model wrapper: one pallas_call for the whole forward pass
# ----------------------------------------------------------------------------
def autoformer_forward(params, x, nhead):
    num_layers = len(params["layers"])
    fp = prepare_fused_params(params, nhead)
    B, S, Fin = x.shape

    args = [
        x, fp["in_w"], fp["in_b"],
        fp["wqkv"], fp["bqkv"], fp["wo"], fp["bo"],
        fp["ln1g"], fp["ln1b"], fp["w1"], fp["b1"], fp["w2"], fp["b2"],
        fp["ln2g"], fp["ln2b"],
        fp["head_w"], fp["head_b"],
    ]

    return pl.pallas_call(
        functools.partial(autoformer_fused_kernel, nhead, num_layers),
        grid=(1,),
        in_specs=[_full_spec(a.shape) for a in args],
        out_specs=_full_spec((B, 1)),
        out_shape=jax.ShapeDtypeStruct((B, 1), jnp.float32),
        compiler_params=pltpu.CompilerParams(
            dimension_semantics=("arbitrary",),
            vmem_limit_bytes=32 * 1024 * 1024,
        ),
    )(*args)


# ----------------------------------------------------------------------------
# pure-jnp f32 reference (same math, no Pallas) for the correctness check
# ----------------------------------------------------------------------------
def _ref_forward(params, x, nhead):
    B, S, Fin = x.shape
    h = x.reshape(B * S, Fin) @ params["in_w"] + params["in_b"]
    D = params["in_w"].shape[1]
    h = h.reshape(B, S, D)
    hd = D // nhead
    for p in params["layers"]:
        q = h @ p["wq"] + p["bq"]
        k = h @ p["wk"] + p["bk"]
        v = h @ p["wv"] + p["bv"]
        outs = []
        for hh in range(nhead):
            lo, hi = hh * hd, (hh + 1) * hd
            s = jnp.einsum("bqd,bkd->bqk", q[:, :, lo:hi], k[:, :, lo:hi]) / \
                jnp.sqrt(jnp.float32(hd))
            p_attn = jax.nn.softmax(s, axis=-1)
            outs.append(jnp.einsum("bqk,bkd->bqd", p_attn, v[:, :, lo:hi]))
        attn = jnp.concatenate(outs, axis=-1) @ p["wo"] + p["bo"]
        y = _layer_norm(h + attn, p["ln1_g"], p["ln1_b"])
        ff = jnp.maximum(y @ p["w1"] + p["b1"], 0.0) @ p["w2"] + p["b2"]
        h = _layer_norm(y + ff, p["ln2_g"], p["ln2_b"])
    last = h[:, -1, :]
    seas = last @ params["seas_w"] + params["seas_b"]
    trend = last @ params["trend_w"] + params["trend_b"]
    return seas + trend


# ----------------------------------------------------------------------------
if __name__ == "__main__":
    B, S = 2, 8
    input_size, d_model, nhead, num_layers, dim_ff = 16, 64, 4, 2, 128

    key = jax.random.PRNGKey(0)
    kx, kp = jax.random.split(key)
    x = jax.random.normal(kx, (B, S, input_size), jnp.float32)
    params = init_params(kp, input_size, d_model, nhead, num_layers, dim_ff)

    out = autoformer_forward(params, x, nhead)
    out = jax.block_until_ready(out)
    assert out.shape == (B, 1), out.shape

    ref = _ref_forward(params, x, nhead)
    # bf16 MXU operands in the kernel vs. pure-f32 reference -> looser tolerance
    assert jnp.allclose(out, ref, atol=5e-2, rtol=5e-2), (out, ref)

    print("KERNEL_OK")
</pallas_src>

<mosaic_0001>
module attributes {stable_mosaic.version = 11 : i64} {
  func.func @autoformer_fused_kernel(%arg0: i32, %arg1: memref<2x8x16xf32, #tpu.memory_space<vmem>>, %arg2: memref<16x64xf32, #tpu.memory_space<vmem>>, %arg3: memref<1x64xf32, #tpu.memory_space<vmem>>, %arg4: memref<2x64x192xf32, #tpu.memory_space<vmem>>, %arg5: memref<2x1x192xf32, #tpu.memory_space<vmem>>, %arg6: memref<2x64x64xf32, #tpu.memory_space<vmem>>, %arg7: memref<2x1x64xf32, #tpu.memory_space<vmem>>, %arg8: memref<2x1x64xf32, #tpu.memory_space<vmem>>, %arg9: memref<2x1x64xf32, #tpu.memory_space<vmem>>, %arg10: memref<2x64x128xf32, #tpu.memory_space<vmem>>, %arg11: memref<2x1x128xf32, #tpu.memory_space<vmem>>, %arg12: memref<2x128x64xf32, #tpu.memory_space<vmem>>, %arg13: memref<2x1x64xf32, #tpu.memory_space<vmem>>, %arg14: memref<2x1x64xf32, #tpu.memory_space<vmem>>, %arg15: memref<2x1x64xf32, #tpu.memory_space<vmem>>, %arg16: memref<64x1xf32, #tpu.memory_space<vmem>>, %arg17: memref<1x1xf32, #tpu.memory_space<vmem>>, %arg18: memref<2x1xf32, #tpu.memory_space<vmem>>) attributes {dimension_semantics = [#tpu.dimension_semantics<arbitrary>], iteration_bounds = array<i64: 1>, scalar_prefetch = 0 : i64, scratch_operands = 0 : i64, tpu.core_type = #tpu.core_type<tc>, window_params = [{pipeline_mode = #tpu.pipeline_mode<synchronous>, transform_indices = @transform_0, window_bounds = array<i64: 2, 8, 16>}, {pipeline_mode = #tpu.pipeline_mode<synchronous>, transform_indices = @transform_1, window_bounds = array<i64: 16, 64>}, {pipeline_mode = #tpu.pipeline_mode<synchronous>, transform_indices = @transform_2, window_bounds = array<i64: 1, 64>}, {pipeline_mode = #tpu.pipeline_mode<synchronous>, transform_indices = @transform_3, window_bounds = array<i64: 2, 64, 192>}, {pipeline_mode = #tpu.pipeline_mode<synchronous>, transform_indices = @transform_4, window_bounds = array<i64: 2, 1, 192>}, {pipeline_mode = #tpu.pipeline_mode<synchronous>, transform_indices = @transform_5, window_bounds = array<i64: 2, 64, 64>}, {pipeline_mode = #tpu.pipeline_mode<synchronous>, transform_indices = @transform_6, window_bounds = array<i64: 2, 1, 64>}, {pipeline_mode = #tpu.pipeline_mode<synchronous>, transform_indices = @transform_7, window_bounds = array<i64: 2, 1, 64>}, {pipeline_mode = #tpu.pipeline_mode<synchronous>, transform_indices = @transform_8, window_bounds = array<i64: 2, 1, 64>}, {pipeline_mode = #tpu.pipeline_mode<synchronous>, transform_indices = @transform_9, window_bounds = array<i64: 2, 64, 128>}, {pipeline_mode = #tpu.pipeline_mode<synchronous>, transform_indices = @transform_10, window_bounds = array<i64: 2, 1, 128>}, {pipeline_mode = #tpu.pipeline_mode<synchronous>, transform_indices = @transform_11, window_bounds = array<i64: 2, 128, 64>}, {pipeline_mode = #tpu.pipeline_mode<synchronous>, transform_indices = @transform_12, window_bounds = array<i64: 2, 1, 64>}, {pipeline_mode = #tpu.pipeline_mode<synchronous>, transform_indices = @transform_13, window_bounds = array<i64: 2, 1, 64>}, {pipeline_mode = #tpu.pipeline_mode<synchronous>, transform_indices = @transform_14, window_bounds = array<i64: 2, 1, 64>}, {pipeline_mode = #tpu.pipeline_mode<synchronous>, transform_indices = @transform_15, window_bounds = array<i64: 64, 1>}, {pipeline_mode = #tpu.pipeline_mode<synchronous>, transform_indices = @transform_16, window_bounds = array<i64: 1, 1>}, {pipeline_mode = #tpu.pipeline_mode<synchronous>, transform_indices = @transform_17, window_bounds = array<i64: 2, 1>}]} {
    %c0 = arith.constant 0 : index
    %c0_0 = arith.constant 0 : index
    %c0_1 = arith.constant 0 : index
    %0 = vector.load %arg1[%c0, %c0_0, %c0_1] : memref<2x8x16xf32, #tpu.memory_space<vmem>>, vector<2x8x16xf32>
    %1 = vector.shape_cast %0 : vector<2x8x16xf32> to vector<16x16xf32>
    %c0_2 = arith.constant 0 : index
    %c0_3 = arith.constant 0 : index
    %2 = vector.load %arg2[%c0_2, %c0_3] : memref<16x64xf32, #tpu.memory_space<vmem>>, vector<16x64xf32>
    %3 = arith.truncf %1 : vector<16x16xf32> to vector<16x16xbf16>
    %4 = arith.truncf %2 : vector<16x64xf32> to vector<16x64xbf16>
    %cst = arith.constant dense<0.000000e+00> : vector<16x64xf32>
    %5 = tpu.matmul %3, %4, %cst {dimension_numbers = #tpu.dot_dimension_numbers<[1], [0], [0], [1], [0, 0, 1, 1], [], []>} : vector<16x16xbf16>, vector<16x64xbf16>, vector<16x64xf32> -> vector<16x64xf32>
    %c0_4 = arith.constant 0 : index
    %c0_5 = arith.constant 0 : index
    %6 = vector.load %arg3[%c0_4, %c0_5] : memref<1x64xf32, #tpu.memory_space<vmem>>, vector<1x64xf32>
    %7 = vector.broadcast %6 : vector<1x64xf32> to vector<16x64xf32>
    %8 = arith.addf %5, %7 : vector<16x64xf32>
    %c0_6 = arith.constant 0 : index
    %c0_7 = arith.constant 0 : index
    %c0_8 = arith.constant 0 : index
    %9 = vector.load %arg4[%c0_6, %c0_7, %c0_8] : memref<2x64x192xf32, #tpu.memory_space<vmem>>, vector<1x64x192xf32>
    %10 = vector.shape_cast %9 : vector<1x64x192xf32> to vector<64x192xf32>
    %11 = arith.truncf %8 : vector<16x64xf32> to vector<16x64xbf16>
    %12 = arith.truncf %10 : vector<64x192xf32> to vector<64x192xbf16>
    %cst_9 = arith.constant dense<0.000000e+00> : vector<16x192xf32>
    %13 = tpu.matmul %11, %12, %cst_9 {dimension_numbers = #tpu.dot_dimension_numbers<[1], [0], [0], [1], [0, 0, 1, 1], [], []>} : vector<16x64xbf16>, vector<64x192xbf16>, vector<16x192xf32> -> vector<16x192xf32>
    %c0_10 = arith.constant 0 : index
    %c0_11 = arith.constant 0 : index
    %c0_12 = arith.constant 0 : index
    %14 = vector.load %arg5[%c0_10, %c0_11, %c0_12] : memref<2x1x192xf32, #tpu.memory_space<vmem>>, vector<1x1x192xf32>
    %15 = vector.shape_cast %14 : vector<1x1x192xf32> to vector<1x192xf32>
    %16 = vector.broadcast %15 : vector<1x192xf32> to vector<16x192xf32>
    %17 = arith.addf %13, %16 : vector<16x192xf32>
    %18 = vector.shape_cast %17 : vector<16x192xf32> to vector<2x8x192xf32>
    %19 = vector.extract_strided_slice %18 {offsets = [0, 0, 0], sizes = [2, 8, 16], strides = [1, 1, 1]} : vector<2x8x192xf32> to vector<2x8x16xf32>
    %20 = vector.extract_strided_slice %18 {offsets = [0, 0, 64], sizes = [2, 8, 16], strides = [1, 1, 1]} : vector<2x8x192xf32> to vector<2x8x16xf32>
    %21 = vector.extract_strided_slice %18 {offsets = [0, 0, 128], sizes = [2, 8, 16], strides = [1, 1, 1]} : vector<2x8x192xf32> to vector<2x8x16xf32>
    %22 = arith.truncf %19 : vector<2x8x16xf32> to vector<2x8x16xbf16>
    %23 = arith.truncf %20 : vector<2x8x16xf32> to vector<2x8x16xbf16>
    "tpu.trace_start"() <{level = 10 : i32, message = "bqd,bkd->bqk"}> : () -> ()
    %cst_13 = arith.constant dense<0.000000e+00> : vector<2x8x8xf32>
    %24 = tpu.matmul %22, %23, %cst_13 {dimension_numbers = #tpu.dot_dimension_numbers<[2], [2], [1], [1], [0, 0, 0, 1, 1, 1], [0], [0]>} : vector<2x8x16xbf16>, vector<2x8x16xbf16>, vector<2x8x8xf32> -> vector<2x8x8xf32>
    "tpu.trace_stop"() : () -> ()
    %cst_14 = arith.constant dense<0xFF800000> : vector<2x8xf32>
    %25 = vector.multi_reduction <maximumf>, %24, %cst_14 [2] : vector<2x8x8xf32> to vector<2x8xf32>
    %26 = vector.shape_cast %25 : vector<2x8xf32> to vector<2x8x1xf32>
    %27 = vector.broadcast %26 : vector<2x8x1xf32> to vector<2x8x8xf32>
    %28 = arith.subf %24, %27 : vector<2x8x8xf32>
    %29 = math.exp %28 : vector<2x8x8xf32>
    %cst_15 = arith.constant dense<0.000000e+00> : vector<2x8xf32>
    %30 = vector.multi_reduction <add>, %29, %cst_15 [2] : vector<2x8x8xf32> to vector<2x8xf32>
    %31 = vector.shape_cast %30 : vector<2x8xf32> to vector<2x8x1xf32>
    %32 = tpu.reciprocal %31 {approx = true} : vector<2x8x1xf32> -> vector<2x8x1xf32>
    %33 = vector.broadcast %32 : vector<2x8x1xf32> to vector<2x8x8xf32>
    %34 = arith.mulf %29, %33 : vector<2x8x8xf32>
    %35 = arith.truncf %34 : vector<2x8x8xf32> to vector<2x8x8xbf16>
    %36 = arith.truncf %21 : vector<2x8x16xf32> to vector<2x8x16xbf16>
    "tpu.trace_start"() <{level = 10 : i32, message = "bqk,bkd->bqd"}> : () -> ()
    %cst_16 = arith.constant dense<0.000000e+00> : vector<2x8x16xf32>
    %37 = tpu.matmul %35, %36, %cst_16 {dimension_numbers = #tpu.dot_dimension_numbers<[2], [1], [1], [2], [0, 0, 0, 1, 1, 2], [0], [0]>} : vector<2x8x8xbf16>, vector<2x8x16xbf16>, vector<2x8x16xf32> -> vector<2x8x16xf32>
    "tpu.trace_stop"() : () -> ()
    %38 = vector.extract_strided_slice %18 {offsets = [0, 0, 16], sizes = [2, 8, 16], strides = [1, 1, 1]} : vector<2x8x192xf32> to vector<2x8x16xf32>
    %39 = vector.extract_strided_slice %18 {offsets = [0, 0, 80], sizes = [2, 8, 16], strides = [1, 1, 1]} : vector<2x8x192xf32> to vector<2x8x16xf32>
    %40 = vector.extract_strided_slice %18 {offsets = [0, 0, 144], sizes = [2, 8, 16], strides = [1, 1, 1]} : vector<2x8x192xf32> to vector<2x8x16xf32>
    %41 = arith.truncf %38 : vector<2x8x16xf32> to vector<2x8x16xbf16>
    %42 = arith.truncf %39 : vector<2x8x16xf32> to vector<2x8x16xbf16>
    "tpu.trace_start"() <{level = 10 : i32, message = "bqd,bkd->bqk"}> : () -> ()
    %cst_17 = arith.constant dense<0.000000e+00> : vector<2x8x8xf32>
    %43 = tpu.matmul %41, %42, %cst_17 {dimension_numbers = #tpu.dot_dimension_numbers<[2], [2], [1], [1], [0, 0, 0, 1, 1, 1], [0], [0]>} : vector<2x8x16xbf16>, vector<2x8x16xbf16>, vector<2x8x8xf32> -> vector<2x8x8xf32>
    "tpu.trace_stop"() : () -> ()
    %cst_18 = arith.constant dense<0xFF800000> : vector<2x8xf32>
    %44 = vector.multi_reduction <maximumf>, %43, %cst_18 [2] : vector<2x8x8xf32> to vector<2x8xf32>
    %45 = vector.shape_cast %44 : vector<2x8xf32> to vector<2x8x1xf32>
    %46 = vector.broadcast %45 : vector<2x8x1xf32> to vector<2x8x8xf32>
    %47 = arith.subf %43, %46 : vector<2x8x8xf32>
    %48 = math.exp %47 : vector<2x8x8xf32>
    %cst_19 = arith.constant dense<0.000000e+00> : vector<2x8xf32>
    %49 = vector.multi_reduction <add>, %48, %cst_19 [2] : vector<2x8x8xf32> to vector<2x8xf32>
    %50 = vector.shape_cast %49 : vector<2x8xf32> to vector<2x8x1xf32>
    %51 = tpu.reciprocal %50 {approx = true} : vector<2x8x1xf32> -> vector<2x8x1xf32>
    %52 = vector.broadcast %51 : vector<2x8x1xf32> to vector<2x8x8xf32>
    %53 = arith.mulf %48, %52 : vector<2x8x8xf32>
    %54 = arith.truncf %53 : vector<2x8x8xf32> to vector<2x8x8xbf16>
    %55 = arith.truncf %40 : vector<2x8x16xf32> to vector<2x8x16xbf16>
    "tpu.trace_start"() <{level = 10 : i32, message = "bqk,bkd->bqd"}> : () -> ()
    %cst_20 = arith.constant dense<0.000000e+00> : vector<2x8x16xf32>
    %56 = tpu.matmul %54, %55, %cst_20 {dimension_numbers = #tpu.dot_dimension_numbers<[2], [1], [1], [2], [0, 0, 0, 1, 1, 2], [0], [0]>} : vector<2x8x8xbf16>, vector<2x8x16xbf16>, vector<2x8x16xf32> -> vector<2x8x16xf32>
    "tpu.trace_stop"() : () -> ()
    %57 = vector.extract_strided_slice %18 {offsets = [0, 0, 32], sizes = [2, 8, 16], strides = [1, 1, 1]} : vector<2x8x192xf32> to vector<2x8x16xf32>
    %58 = vector.extract_strided_slice %18 {offsets = [0, 0, 96], sizes = [2, 8, 16], strides = [1, 1, 1]} : vector<2x8x192xf32> to vector<2x8x16xf32>
    %59 = vector.extract_strided_slice %18 {offsets = [0, 0, 160], sizes = [2, 8, 16], strides = [1, 1, 1]} : vector<2x8x192xf32> to vector<2x8x16xf32>
    %60 = arith.truncf %57 : vector<2x8x16xf32> to vector<2x8x16xbf16>
    %61 = arith.truncf %58 : vector<2x8x16xf32> to vector<2x8x16xbf16>
    "tpu.trace_start"() <{level = 10 : i32, message = "bqd,bkd->bqk"}> : () -> ()
    %cst_21 = arith.constant dense<0.000000e+00> : vector<2x8x8xf32>
    %62 = tpu.matmul %60, %61, %cst_21 {dimension_numbers = #tpu.dot_dimension_numbers<[2], [2], [1], [1], [0, 0, 0, 1, 1, 1], [0], [0]>} : vector<2x8x16xbf16>, vector<2x8x16xbf16>, vector<2x8x8xf32> -> vector<2x8x8xf32>
    "tpu.trace_stop"() : () -> ()
    %cst_22 = arith.constant dense<0xFF800000> : vector<2x8xf32>
    %63 = vector.multi_reduction <maximumf>, %62, %cst_22 [2] : vector<2x8x8xf32> to vector<2x8xf32>
    %64 = vector.shape_cast %63 : vector<2x8xf32> to vector<2x8x1xf32>
    %65 = vector.broadcast %64 : vector<2x8x1xf32> to vector<2x8x8xf32>
    %66 = arith.subf %62, %65 : vector<2x8x8xf32>
    %67 = math.exp %66 : vector<2x8x8xf32>
    %cst_23 = arith.constant dense<0.000000e+00> : vector<2x8xf32>
    %68 = vector.multi_reduction <add>, %67, %cst_23 [2] : vector<2x8x8xf32> to vector<2x8xf32>
    %69 = vector.shape_cast %68 : vector<2x8xf32> to vector<2x8x1xf32>
    %70 = tpu.reciprocal %69 {approx = true} : vector<2x8x1xf32> -> vector<2x8x1xf32>
    %71 = vector.broadcast %70 : vector<2x8x1xf32> to vector<2x8x8xf32>
    %72 = arith.mulf %67, %71 : vector<2x8x8xf32>
    %73 = arith.truncf %72 : vector<2x8x8xf32> to vector<2x8x8xbf16>
    %74 = arith.truncf %59 : vector<2x8x16xf32> to vector<2x8x16xbf16>
    "tpu.trace_start"() <{level = 10 : i32, message = "bqk,bkd->bqd"}> : () -> ()
    %cst_24 = arith.constant dense<0.000000e+00> : vector<2x8x16xf32>
    %75 = tpu.matmul %73, %74, %cst_24 {dimension_numbers = #tpu.dot_dimension_numbers<[2], [1], [1], [2], [0, 0, 0, 1, 1, 2], [0], [0]>} : vector<2x8x8xbf16>, vector<2x8x16xbf16>, vector<2x8x16xf32> -> vector<2x8x16xf32>
    "tpu.trace_stop"() : () -> ()
    %76 = vector.extract_strided_slice %18 {offsets = [0, 0, 48], sizes = [2, 8, 16], strides = [1, 1, 1]} : vector<2x8x192xf32> to vector<2x8x16xf32>
    %77 = vector.extract_strided_slice %18 {offsets = [0, 0, 112], sizes = [2, 8, 16], strides = [1, 1, 1]} : vector<2x8x192xf32> to vector<2x8x16xf32>
    %78 = vector.extract_strided_slice %18 {offsets = [0, 0, 176], sizes = [2, 8, 16], strides = [1, 1, 1]} : vector<2x8x192xf32> to vector<2x8x16xf32>
    %79 = arith.truncf %76 : vector<2x8x16xf32> to vector<2x8x16xbf16>
    %80 = arith.truncf %77 : vector<2x8x16xf32> to vector<2x8x16xbf16>
    "tpu.trace_start"() <{level = 10 : i32, message = "bqd,bkd->bqk"}> : () -> ()
    %cst_25 = arith.constant dense<0.000000e+00> : vector<2x8x8xf32>
    %81 = tpu.matmul %79, %80, %cst_25 {dimension_numbers = #tpu.dot_dimension_numbers<[2], [2], [1], [1], [0, 0, 0, 1, 1, 1], [0], [0]>} : vector<2x8x16xbf16>, vector<2x8x16xbf16>, vector<2x8x8xf32> -> vector<2x8x8xf32>
    "tpu.trace_stop"() : () -> ()
    %cst_26 = arith.constant dense<0xFF800000> : vector<2x8xf32>
    %82 = vector.multi_reduction <maximumf>, %81, %cst_26 [2] : vector<2x8x8xf32> to vector<2x8xf32>
    %83 = vector.shape_cast %82 : vector<2x8xf32> to vector<2x8x1xf32>
    %84 = vector.broadcast %83 : vector<2x8x1xf32> to vector<2x8x8xf32>
    %85 = arith.subf %81, %84 : vector<2x8x8xf32>
    %86 = math.exp %85 : vector<2x8x8xf32>
    %cst_27 = arith.constant dense<0.000000e+00> : vector<2x8xf32>
    %87 = vector.multi_reduction <add>, %86, %cst_27 [2] : vector<2x8x8xf32> to vector<2x8xf32>
    %88 = vector.shape_cast %87 : vector<2x8xf32> to vector<2x8x1xf32>
    %89 = tpu.reciprocal %88 {approx = true} : vector<2x8x1xf32> -> vector<2x8x1xf32>
    %90 = vector.broadcast %89 : vector<2x8x1xf32> to vector<2x8x8xf32>
    %91 = arith.mulf %86, %90 : vector<2x8x8xf32>
    %92 = arith.truncf %91 : vector<2x8x8xf32> to vector<2x8x8xbf16>
    %93 = arith.truncf %78 : vector<2x8x16xf32> to vector<2x8x16xbf16>
    "tpu.trace_start"() <{level = 10 : i32, message = "bqk,bkd->bqd"}> : () -> ()
    %cst_28 = arith.constant dense<0.000000e+00> : vector<2x8x16xf32>
    %94 = tpu.matmul %92, %93, %cst_28 {dimension_numbers = #tpu.dot_dimension_numbers<[2], [1], [1], [2], [0, 0, 0, 1, 1, 2], [0], [0]>} : vector<2x8x8xbf16>, vector<2x8x16xbf16>, vector<2x8x16xf32> -> vector<2x8x16xf32>
    "tpu.trace_stop"() : () -> ()
    %95 = tpu.concatenate %37, %56, %75, %94 in 2 : vector<2x8x16xf32>, vector<2x8x16xf32>, vector<2x8x16xf32>, vector<2x8x16xf32> -> vector<2x8x64xf32>
    %96 = vector.shape_cast %95 : vector<2x8x64xf32> to vector<16x64xf32>
    %c0_29 = arith.constant 0 : index
    %c0_30 = arith.constant 0 : index
    %c0_31 = arith.constant 0 : index
    %97 = vector.load %arg6[%c0_29, %c0_30, %c0_31] : memref<2x64x64xf32, #tpu.memory_space<vmem>>, vector<1x64x64xf32>
    %98 = vector.shape_cast %97 : vector<1x64x64xf32> to vector<64x64xf32>
    %99 = arith.truncf %96 : vector<16x64xf32> to vector<16x64xbf16>
    %100 = arith.truncf %98 : vector<64x64xf32> to vector<64x64xbf16>
    %cst_32 = arith.constant dense<0.000000e+00> : vector<16x64xf32>
    %101 = tpu.matmul %99, %100, %cst_32 {dimension_numbers = #tpu.dot_dimension_numbers<[1], [0], [0], [1], [0, 0, 1, 1], [], []>} : vector<16x64xbf16>, vector<64x64xbf16>, vector<16x64xf32> -> vector<16x64xf32>
    %c0_33 = arith.constant 0 : index
    %c0_34 = arith.constant 0 : index
    %c0_35 = arith.constant 0 : index
    %102 = vector.load %arg7[%c0_33, %c0_34, %c0_35] : memref<2x1x64xf32, #tpu.memory_space<vmem>>, vector<1x1x64xf32>
    %103 = vector.shape_cast %102 : vector<1x1x64xf32> to vector<1x64xf32>
    %104 = vector.broadcast %103 : vector<1x64xf32> to vector<16x64xf32>
    %105 = arith.addf %101, %104 : vector<16x64xf32>
    %106 = arith.addf %8, %105 : vector<16x64xf32>
    %c0_36 = arith.constant 0 : index
    %c0_37 = arith.constant 0 : index
    %c0_38 = arith.constant 0 : index
    %107 = vector.load %arg8[%c0_36, %c0_37, %c0_38] : memref<2x1x64xf32, #tpu.memory_space<vmem>>, vector<1x1x64xf32>
    %108 = vector.shape_cast %107 : vector<1x1x64xf32> to vector<1x64xf32>
    %c0_39 = arith.constant 0 : index
    %c0_40 = arith.constant 0 : index
    %c0_41 = arith.constant 0 : index
    %109 = vector.load %arg9[%c0_39, %c0_40, %c0_41] : memref<2x1x64xf32, #tpu.memory_space<vmem>>, vector<1x1x64xf32>
    %110 = vector.shape_cast %109 : vector<1x1x64xf32> to vector<1x64xf32>
    %cst_42 = arith.constant dense<0.000000e+00> : vector<16xf32>
    %111 = vector.multi_reduction <add>, %106, %cst_42 [1] : vector<16x64xf32> to vector<16xf32>
    %112 = vector.shape_cast %111 : vector<16xf32> to vector<16x1xf32>
    %cst_43 = arith.constant 6.400000e+01 : f32
    %113 = vector.broadcast %cst_43 : f32 to vector<16x1xf32>
    %114 = arith.divf %112, %113 : vector<16x1xf32>
    %115 = vector.broadcast %114 : vector<16x1xf32> to vector<16x64xf32>
    %116 = arith.subf %106, %115 : vector<16x64xf32>
    %117 = arith.mulf %116, %116 : vector<16x64xf32>
    %cst_44 = arith.constant dense<0.000000e+00> : vector<16xf32>
    %118 = vector.multi_reduction <add>, %117, %cst_44 [1] : vector<16x64xf32> to vector<16xf32>
    %119 = vector.shape_cast %118 : vector<16xf32> to vector<16x1xf32>
    %cst_45 = arith.constant 6.400000e+01 : f32
    %120 = vector.broadcast %cst_45 : f32 to vector<16x1xf32>
    %121 = arith.divf %119, %120 : vector<16x1xf32>
    %122 = vector.broadcast %114 : vector<16x1xf32> to vector<16x64xf32>
    %123 = arith.subf %106, %122 : vector<16x64xf32>
    %cst_46 = arith.constant 9.99999974E-6 : f32
    %124 = vector.broadcast %cst_46 : f32 to vector<16x1xf32>
    %125 = arith.addf %121, %124 : vector<16x1xf32>
    %126 = math.rsqrt %125 : vector<16x1xf32>
    %127 = vector.broadcast %126 : vector<16x1xf32> to vector<16x64xf32>
    %128 = arith.mulf %123, %127 : vector<16x64xf32>
    %129 = vector.broadcast %108 : vector<1x64xf32> to vector<16x64xf32>
    %130 = arith.mulf %128, %129 : vector<16x64xf32>
    %131 = vector.broadcast %110 : vector<1x64xf32> to vector<16x64xf32>
    %132 = arith.addf %130, %131 : vector<16x64xf32>
    %c0_47 = arith.constant 0 : index
    %c0_48 = arith.constant 0 : index
    %c0_49 = arith.constant 0 : index
    %133 = vector.load %arg10[%c0_47, %c0_48, %c0_49] : memref<2x64x128xf32, #tpu.memory_space<vmem>>, vector<1x64x128xf32>
    %134 = vector.shape_cast %133 : vector<1x64x128xf32> to vector<64x128xf32>
    %135 = arith.truncf %132 : vector<16x64xf32> to vector<16x64xbf16>
    %136 = arith.truncf %134 : vector<64x128xf32> to vector<64x128xbf16>
    %cst_50 = arith.constant dense<0.000000e+00> : vector<16x128xf32>
    %137 = tpu.matmul %135, %136, %cst_50 {dimension_numbers = #tpu.dot_dimension_numbers<[1], [0], [0], [1], [0, 0, 1, 1], [], []>} : vector<16x64xbf16>, vector<64x128xbf16>, vector<16x128xf32> -> vector<16x128xf32>
    %c0_51 = arith.constant 0 : index
    %c0_52 = arith.constant 0 : index
    %c0_53 = arith.constant 0 : index
    %138 = vector.load %arg11[%c0_51, %c0_52, %c0_53] : memref<2x1x128xf32, #tpu.memory_space<vmem>>, vector<1x1x128xf32>
    %139 = vector.shape_cast %138 : vector<1x1x128xf32> to vector<1x128xf32>
    %140 = vector.broadcast %139 : vector<1x128xf32> to vector<16x128xf32>
    %141 = arith.addf %137, %140 : vector<16x128xf32>
    %cst_54 = arith.constant 0.000000e+00 : f32
    %142 = vector.broadcast %cst_54 : f32 to vector<16x128xf32>
    %143 = arith.maximumf %141, %142 : vector<16x128xf32>
    %c0_55 = arith.constant 0 : index
    %c0_56 = arith.constant 0 : index
    %c0_57 = arith.constant 0 : index
    %144 = vector.load %arg12[%c0_55, %c0_56, %c0_57] : memref<2x128x64xf32, #tpu.memory_space<vmem>>, vector<1x128x64xf32>
    %145 = vector.shape_cast %144 : vector<1x128x64xf32> to vector<128x64xf32>
    %146 = arith.truncf %143 : vector<16x128xf32> to vector<16x128xbf16>
    %147 = arith.truncf %145 : vector<128x64xf32> to vector<128x64xbf16>
    %cst_58 = arith.constant dense<0.000000e+00> : vector<16x64xf32>
    %148 = tpu.matmul %146, %147, %cst_58 {dimension_numbers = #tpu.dot_dimension_numbers<[1], [0], [0], [1], [0, 0, 1, 1], [], []>} : vector<16x128xbf16>, vector<128x64xbf16>, vector<16x64xf32> -> vector<16x64xf32>
    %c0_59 = arith.constant 0 : index
    %c0_60 = arith.constant 0 : index
    %c0_61 = arith.constant 0 : index
    %149 = vector.load %arg13[%c0_59, %c0_60, %c0_61] : memref<2x1x64xf32, #tpu.memory_space<vmem>>, vector<1x1x64xf32>
    %150 = vector.shape_cast %149 : vector<1x1x64xf32> to vector<1x64xf32>
    %151 = vector.broadcast %150 : vector<1x64xf32> to vector<16x64xf32>
    %152 = arith.addf %148, %151 : vector<16x64xf32>
    %153 = arith.addf %132, %152 : vector<16x64xf32>
    %c0_62 = arith.constant 0 : index
    %c0_63 = arith.constant 0 : index
    %c0_64 = arith.constant 0 : index
    %154 = vector.load %arg14[%c0_62, %c0_63, %c0_64] : memref<2x1x64xf32, #tpu.memory_space<vmem>>, vector<1x1x64xf32>
    %155 = vector.shape_cast %154 : vector<1x1x64xf32> to vector<1x64xf32>
    %c0_65 = arith.constant 0 : index
    %c0_66 = arith.constant 0 : index
    %c0_67 = arith.constant 0 : index
    %156 = vector.load %arg15[%c0_65, %c0_66, %c0_67] : memref<2x1x64xf32, #tpu.memory_space<vmem>>, vector<1x1x64xf32>
    %157 = vector.shape_cast %156 : vector<1x1x64xf32> to vector<1x64xf32>
    %cst_68 = arith.constant dense<0.000000e+00> : vector<16xf32>
    %158 = vector.multi_reduction <add>, %153, %cst_68 [1] : vector<16x64xf32> to vector<16xf32>
    %159 = vector.shape_cast %158 : vector<16xf32> to vector<16x1xf32>
    %cst_69 = arith.constant 6.400000e+01 : f32
    %160 = vector.broadcast %cst_69 : f32 to vector<16x1xf32>
    %161 = arith.divf %159, %160 : vector<16x1xf32>
    %162 = vector.broadcast %161 : vector<16x1xf32> to vector<16x64xf32>
    %163 = arith.subf %153, %162 : vector<16x64xf32>
    %164 = arith.mulf %163, %163 : vector<16x64xf32>
    %cst_70 = arith.constant dense<0.000000e+00> : vector<16xf32>
    %165 = vector.multi_reduction <add>, %164, %cst_70 [1] : vector<16x64xf32> to vector<16xf32>
    %166 = vector.shape_cast %165 : vector<16xf32> to vector<16x1xf32>
    %cst_71 = arith.constant 6.400000e+01 : f32
    %167 = vector.broadcast %cst_71 : f32 to vector<16x1xf32>
    %168 = arith.divf %166, %167 : vector<16x1xf32>
    %169 = vector.broadcast %161 : vector<16x1xf32> to vector<16x64xf32>
    %170 = arith.subf %153, %169 : vector<16x64xf32>
    %cst_72 = arith.constant 9.99999974E-6 : f32
    %171 = vector.broadcast %cst_72 : f32 to vector<16x1xf32>
    %172 = arith.addf %168, %171 : vector<16x1xf32>
    %173 = math.rsqrt %172 : vector<16x1xf32>
    %174 = vector.broadcast %173 : vector<16x1xf32> to vector<16x64xf32>
    %175 = arith.mulf %170, %174 : vector<16x64xf32>
    %176 = vector.broadcast %155 : vector<1x64xf32> to vector<16x64xf32>
    %177 = arith.mulf %175, %176 : vector<16x64xf32>
    %178 = vector.broadcast %157 : vector<1x64xf32> to vector<16x64xf32>
    %179 = arith.addf %177, %178 : vector<16x64xf32>
    %c1 = arith.constant 1 : index
    %c0_73 = arith.constant 0 : index
    %c0_74 = arith.constant 0 : index
    %180 = vector.load %arg4[%c1, %c0_73, %c0_74] : memref<2x64x192xf32, #tpu.memory_space<vmem>>, vector<1x64x192xf32>
    %181 = vector.shape_cast %180 : vector<1x64x192xf32> to vector<64x192xf32>
    %182 = arith.truncf %179 : vector<16x64xf32> to vector<16x64xbf16>
    %183 = arith.truncf %181 : vector<64x192xf32> to vector<64x192xbf16>
    %cst_75 = arith.constant dense<0.000000e+00> : vector<16x192xf32>
    %184 = tpu.matmul %182, %183, %cst_75 {dimension_numbers = #tpu.dot_dimension_numbers<[1], [0], [0], [1], [0, 0, 1, 1], [], []>} : vector<16x64xbf16>, vector<64x192xbf16>, vector<16x192xf32> -> vector<16x192xf32>
    %c1_76 = arith.constant 1 : index
    %c0_77 = arith.constant 0 : index
    %c0_78 = arith.constant 0 : index
    %185 = vector.load %arg5[%c1_76, %c0_77, %c0_78] : memref<2x1x192xf32, #tpu.memory_space<vmem>>, vector<1x1x192xf32>
    %186 = vector.shape_cast %185 : vector<1x1x192xf32> to vector<1x192xf32>
    %187 = vector.broadcast %186 : vector<1x192xf32> to vector<16x192xf32>
    %188 = arith.addf %184, %187 : vector<16x192xf32>
    %189 = vector.shape_cast %188 : vector<16x192xf32> to vector<2x8x192xf32>
    %190 = vector.extract_strided_slice %189 {offsets = [0, 0, 0], sizes = [2, 8, 16], strides = [1, 1, 1]} : vector<2x8x192xf32> to vector<2x8x16xf32>
    %191 = vector.extract_strided_slice %189 {offsets = [0, 0, 64], sizes = [2, 8, 16], strides = [1, 1, 1]} : vector<2x8x192xf32> to vector<2x8x16xf32>
    %192 = vector.extract_strided_slice %189 {offsets = [0, 0, 128], sizes = [2, 8, 16], strides = [1, 1, 1]} : vector<2x8x192xf32> to vector<2x8x16xf32>
    %193 = arith.truncf %190 : vector<2x8x16xf32> to vector<2x8x16xbf16>
    %194 = arith.truncf %191 : vector<2x8x16xf32> to vector<2x8x16xbf16>
    "tpu.trace_start"() <{level = 10 : i32, message = "bqd,bkd->bqk"}> : () -> ()
    %cst_79 = arith.constant dense<0.000000e+00> : vector<2x8x8xf32>
    %195 = tpu.matmul %193, %194, %cst_79 {dimension_numbers = #tpu.dot_dimension_numbers<[2], [2], [1], [1], [0, 0, 0, 1, 1, 1], [0], [0]>} : vector<2x8x16xbf16>, vector<2x8x16xbf16>, vector<2x8x8xf32> -> vector<2x8x8xf32>
    "tpu.trace_stop"() : () -> ()
    %cst_80 = arith.constant dense<0xFF800000> : vector<2x8xf32>
    %196 = vector.multi_reduction <maximumf>, %195, %cst_80 [2] : vector<2x8x8xf32> to vector<2x8xf32>
    %197 = vector.shape_cast %196 : vector<2x8xf32> to vector<2x8x1xf32>
    %198 = vector.broadcast %197 : vector<2x8x1xf32> to vector<2x8x8xf32>
    %199 = arith.subf %195, %198 : vector<2x8x8xf32>
    %200 = math.exp %199 : vector<2x8x8xf32>
    %cst_81 = arith.constant dense<0.000000e+00> : vector<2x8xf32>
    %201 = vector.multi_reduction <add>, %200, %cst_81 [2] : vector<2x8x8xf32> to vector<2x8xf32>
    %202 = vector.shape_cast %201 : vector<2x8xf32> to vector<2x8x1xf32>
    %203 = tpu.reciprocal %202 {approx = true} : vector<2x8x1xf32> -> vector<2x8x1xf32>
    %204 = vector.broadcast %203 : vector<2x8x1xf32> to vector<2x8x8xf32>
    %205 = arith.mulf %200, %204 : vector<2x8x8xf32>
    %206 = arith.truncf %205 : vector<2x8x8xf32> to vector<2x8x8xbf16>
    %207 = arith.truncf %192 : vector<2x8x16xf32> to vector<2x8x16xbf16>
    "tpu.trace_start"() <{level = 10 : i32, message = "bqk,bkd->bqd"}> : () -> ()
    %cst_82 = arith.constant dense<0.000000e+00> : vector<2x8x16xf32>
    %208 = tpu.matmul %206, %207, %cst_82 {dimension_numbers = #tpu.dot_dimension_numbers<[2], [1], [1], [2], [0, 0, 0, 1, 1, 2], [0], [0]>} : vector<2x8x8xbf16>, vector<2x8x16xbf16>, vector<2x8x16xf32> -> vector<2x8x16xf32>
    "tpu.trace_stop"() : () -> ()
    %209 = vector.extract_strided_slice %189 {offsets = [0, 0, 16], sizes = [2, 8, 16], strides = [1, 1, 1]} : vector<2x8x192xf32> to vector<2x8x16xf32>
    %210 = vector.extract_strided_slice %189 {offsets = [0, 0, 80], sizes = [2, 8, 16], strides = [1, 1, 1]} : vector<2x8x192xf32> to vector<2x8x16xf32>
    %211 = vector.extract_strided_slice %189 {offsets = [0, 0, 144], sizes = [2, 8, 16], strides = [1, 1, 1]} : vector<2x8x192xf32> to vector<2x8x16xf32>
    %212 = arith.truncf %209 : vector<2x8x16xf32> to vector<2x8x16xbf16>
    %213 = arith.truncf %210 : vector<2x8x16xf32> to vector<2x8x16xbf16>
    "tpu.trace_start"() <{level = 10 : i32, message = "bqd,bkd->bqk"}> : () -> ()
    %cst_83 = arith.constant dense<0.000000e+00> : vector<2x8x8xf32>
    %214 = tpu.matmul %212, %213, %cst_83 {dimension_numbers = #tpu.dot_dimension_numbers<[2], [2], [1], [1], [0, 0, 0, 1, 1, 1], [0], [0]>} : vector<2x8x16xbf16>, vector<2x8x16xbf16>, vector<2x8x8xf32> -> vector<2x8x8xf32>
    "tpu.trace_stop"() : () -> ()
    %cst_84 = arith.constant dense<0xFF800000> : vector<2x8xf32>
    %215 = vector.multi_reduction <maximumf>, %214, %cst_84 [2] : vector<2x8x8xf32> to vector<2x8xf32>
    %216 = vector.shape_cast %215 : vector<2x8xf32> to vector<2x8x1xf32>
    %217 = vector.broadcast %216 : vector<2x8x1xf32> to vector<2x8x8xf32>
    %218 = arith.subf %214, %217 : vector<2x8x8xf32>
    %219 = math.exp %218 : vector<2x8x8xf32>
    %cst_85 = arith.constant dense<0.000000e+00> : vector<2x8xf32>
    %220 = vector.multi_reduction <add>, %219, %cst_85 [2] : vector<2x8x8xf32> to vector<2x8xf32>
    %221 = vector.shape_cast %220 : vector<2x8xf32> to vector<2x8x1xf32>
    %222 = tpu.reciprocal %221 {approx = true} : vector<2x8x1xf32> -> vector<2x8x1xf32>
    %223 = vector.broadcast %222 : vector<2x8x1xf32> to vector<2x8x8xf32>
    %224 = arith.mulf %219, %223 : vector<2x8x8xf32>
    %225 = arith.truncf %224 : vector<2x8x8xf32> to vector<2x8x8xbf16>
    %226 = arith.truncf %211 : vector<2x8x16xf32> to vector<2x8x16xbf16>
    "tpu.trace_start"() <{level = 10 : i32, message = "bqk,bkd->bqd"}> : () -> ()
    %cst_86 = arith.constant dense<0.000000e+00> : vector<2x8x16xf32>
    %227 = tpu.matmul %225, %226, %cst_86 {dimension_numbers = #tpu.dot_dimension_numbers<[2], [1], [1], [2], [0, 0, 0, 1, 1, 2], [0], [0]>} : vector<2x8x8xbf16>, vector<2x8x16xbf16>, vector<2x8x16xf32> -> vector<2x8x16xf32>
    "tpu.trace_stop"() : () -> ()
    %228 = vector.extract_strided_slice %189 {offsets = [0, 0, 32], sizes = [2, 8, 16], strides = [1, 1, 1]} : vector<2x8x192xf32> to vector<2x8x16xf32>
    %229 = vector.extract_strided_slice %189 {offsets = [0, 0, 96], sizes = [2, 8, 16], strides = [1, 1, 1]} : vector<2x8x192xf32> to vector<2x8x16xf32>
    %230 = vector.extract_strided_slice %189 {offsets = [0, 0, 160], sizes = [2, 8, 16], strides = [1, 1, 1]} : vector<2x8x192xf32> to vector<2x8x16xf32>
    %231 = arith.truncf %228 : vector<2x8x16xf32> to vector<2x8x16xbf16>
    %232 = arith.truncf %229 : vector<2x8x16xf32> to vector<2x8x16xbf16>
    "tpu.trace_start"() <{level = 10 : i32, message = "bqd,bkd->bqk"}> : () -> ()
    %cst_87 = arith.constant dense<0.000000e+00> : vector<2x8x8xf32>
    %233 = tpu.matmul %231, %232, %cst_87 {dimension_numbers = #tpu.dot_dimension_numbers<[2], [2], [1], [1], [0, 0, 0, 1, 1, 1], [0], [0]>} : vector<2x8x16xbf16>, vector<2x8x16xbf16>, vector<2x8x8xf32> -> vector<2x8x8xf32>
    "tpu.trace_stop"() : () -> ()
    %cst_88 = arith.constant dense<0xFF800000> : vector<2x8xf32>
    %234 = vector.multi_reduction <maximumf>, %233, %cst_88 [2] : vector<2x8x8xf32> to vector<2x8xf32>
    %235 = vector.shape_cast %234 : vector<2x8xf32> to vector<2x8x1xf32>
    %236 = vector.broadcast %235 : vector<2x8x1xf32> to vector<2x8x8xf32>
    %237 = arith.subf %233, %236 : vector<2x8x8xf32>
    %238 = math.exp %237 : vector<2x8x8xf32>
    %cst_89 = arith.constant dense<0.000000e+00> : vector<2x8xf32>
    %239 = vector.multi_reduction <add>, %238, %cst_89 [2] : vector<2x8x8xf32> to vector<2x8xf32>
    %240 = vector.shape_cast %239 : vector<2x8xf32> to vector<2x8x1xf32>
    %241 = tpu.reciprocal %240 {approx = true} : vector<2x8x1xf32> -> vector<2x8x1xf32>
    %242 = vector.broadcast %241 : vector<2x8x1xf32> to vector<2x8x8xf32>
    %243 = arith.mulf %238, %242 : vector<2x8x8xf32>
    %244 = arith.truncf %243 : vector<2x8x8xf32> to vector<2x8x8xbf16>
    %245 = arith.truncf %230 : vector<2x8x16xf32> to vector<2x8x16xbf16>
    "tpu.trace_start"() <{level = 10 : i32, message = "bqk,bkd->bqd"}> : () -> ()
    %cst_90 = arith.constant dense<0.000000e+00> : vector<2x8x16xf32>
    %246 = tpu.matmul %244, %245, %cst_90 {dimension_numbers = #tpu.dot_dimension_numbers<[2], [1], [1], [2], [0, 0, 0, 1, 1, 2], [0], [0]>} : vector<2x8x8xbf16>, vector<2x8x16xbf16>, vector<2x8x16xf32> -> vector<2x8x16xf32>
    "tpu.trace_stop"() : () -> ()
    %247 = vector.extract_strided_slice %189 {offsets = [0, 0, 48], sizes = [2, 8, 16], strides = [1, 1, 1]} : vector<2x8x192xf32> to vector<2x8x16xf32>
    %248 = vector.extract_strided_slice %189 {offsets = [0, 0, 112], sizes = [2, 8, 16], strides = [1, 1, 1]} : vector<2x8x192xf32> to vector<2x8x16xf32>
    %249 = vector.extract_strided_slice %189 {offsets = [0, 0, 176], sizes = [2, 8, 16], strides = [1, 1, 1]} : vector<2x8x192xf32> to vector<2x8x16xf32>
    %250 = arith.truncf %247 : vector<2x8x16xf32> to vector<2x8x16xbf16>
    %251 = arith.truncf %248 : vector<2x8x16xf32> to vector<2x8x16xbf16>
    "tpu.trace_start"() <{level = 10 : i32, message = "bqd,bkd->bqk"}> : () -> ()
    %cst_91 = arith.constant dense<0.000000e+00> : vector<2x8x8xf32>
    %252 = tpu.matmul %250, %251, %cst_91 {dimension_numbers = #tpu.dot_dimension_numbers<[2], [2], [1], [1], [0, 0, 0, 1, 1, 1], [0], [0]>} : vector<2x8x16xbf16>, vector<2x8x16xbf16>, vector<2x8x8xf32> -> vector<2x8x8xf32>
    "tpu.trace_stop"() : () -> ()
    %cst_92 = arith.constant dense<0xFF800000> : vector<2x8xf32>
    %253 = vector.multi_reduction <maximumf>, %252, %cst_92 [2] : vector<2x8x8xf32> to vector<2x8xf32>
    %254 = vector.shape_cast %253 : vector<2x8xf32> to vector<2x8x1xf32>
    %255 = vector.broadcast %254 : vector<2x8x1xf32> to vector<2x8x8xf32>
    %256 = arith.subf %252, %255 : vector<2x8x8xf32>
    %257 = math.exp %256 : vector<2x8x8xf32>
    %cst_93 = arith.constant dense<0.000000e+00> : vector<2x8xf32>
    %258 = vector.multi_reduction <add>, %257, %cst_93 [2] : vector<2x8x8xf32> to vector<2x8xf32>
    %259 = vector.shape_cast %258 : vector<2x8xf32> to vector<2x8x1xf32>
    %260 = tpu.reciprocal %259 {approx = true} : vector<2x8x1xf32> -> vector<2x8x1xf32>
    %261 = vector.broadcast %260 : vector<2x8x1xf32> to vector<2x8x8xf32>
    %262 = arith.mulf %257, %261 : vector<2x8x8xf32>
    %263 = arith.truncf %262 : vector<2x8x8xf32> to vector<2x8x8xbf16>
    %264 = arith.truncf %249 : vector<2x8x16xf32> to vector<2x8x16xbf16>
    "tpu.trace_start"() <{level = 10 : i32, message = "bqk,bkd->bqd"}> : () -> ()
    %cst_94 = arith.constant dense<0.000000e+00> : vector<2x8x16xf32>
    %265 = tpu.matmul %263, %264, %cst_94 {dimension_numbers = #tpu.dot_dimension_numbers<[2], [1], [1], [2], [0, 0, 0, 1, 1, 2], [0], [0]>} : vector<2x8x8xbf16>, vector<2x8x16xbf16>, vector<2x8x16xf32> -> vector<2x8x16xf32>
    "tpu.trace_stop"() : () -> ()
    %266 = tpu.concatenate %208, %227, %246, %265 in 2 : vector<2x8x16xf32>, vector<2x8x16xf32>, vector<2x8x16xf32>, vector<2x8x16xf32> -> vector<2x8x64xf32>
    %267 = vector.shape_cast %266 : vector<2x8x64xf32> to vector<16x64xf32>
    %c1_95 = arith.constant 1 : index
    %c0_96 = arith.constant 0 : index
    %c0_97 = arith.constant 0 : index
    %268 = vector.load %arg6[%c1_95, %c0_96, %c0_97] : memref<2x64x64xf32, #tpu.memory_space<vmem>>, vector<1x64x64xf32>
    %269 = vector.shape_cast %268 : vector<1x64x64xf32> to vector<64x64xf32>
    %270 = arith.truncf %267 : vector<16x64xf32> to vector<16x64xbf16>
    %271 = arith.truncf %269 : vector<64x64xf32> to vector<64x64xbf16>
    %cst_98 = arith.constant dense<0.000000e+00> : vector<16x64xf32>
    %272 = tpu.matmul %270, %271, %cst_98 {dimension_numbers = #tpu.dot_dimension_numbers<[1], [0], [0], [1], [0, 0, 1, 1], [], []>} : vector<16x64xbf16>, vector<64x64xbf16>, vector<16x64xf32> -> vector<16x64xf32>
    %c1_99 = arith.constant 1 : index
    %c0_100 = arith.constant 0 : index
    %c0_101 = arith.constant 0 : index
    %273 = vector.load %arg7[%c1_99, %c0_100, %c0_101] : memref<2x1x64xf32, #tpu.memory_space<vmem>>, vector<1x1x64xf32>
    %274 = vector.shape_cast %273 : vector<1x1x64xf32> to vector<1x64xf32>
    %275 = vector.broadcast %274 : vector<1x64xf32> to vector<16x64xf32>
    %276 = arith.addf %272, %275 : vector<16x64xf32>
    %277 = arith.addf %179, %276 : vector<16x64xf32>
    %c1_102 = arith.constant 1 : index
    %c0_103 = arith.constant 0 : index
    %c0_104 = arith.constant 0 : index
    %278 = vector.load %arg8[%c1_102, %c0_103, %c0_104] : memref<2x1x64xf32, #tpu.memory_space<vmem>>, vector<1x1x64xf32>
    %279 = vector.shape_cast %278 : vector<1x1x64xf32> to vector<1x64xf32>
    %c1_105 = arith.constant 1 : index
    %c0_106 = arith.constant 0 : index
    %c0_107 = arith.constant 0 : index
    %280 = vector.load %arg9[%c1_105, %c0_106, %c0_107] : memref<2x1x64xf32, #tpu.memory_space<vmem>>, vector<1x1x64xf32>
    %281 = vector.shape_cast %280 : vector<1x1x64xf32> to vector<1x64xf32>
    %cst_108 = arith.constant dense<0.000000e+00> : vector<16xf32>
    %282 = vector.multi_reduction <add>, %277, %cst_108 [1] : vector<16x64xf32> to vector<16xf32>
    %283 = vector.shape_cast %282 : vector<16xf32> to vector<16x1xf32>
    %cst_109 = arith.constant 6.400000e+01 : f32
    %284 = vector.broadcast %cst_109 : f32 to vector<16x1xf32>
    %285 = arith.divf %283, %284 : vector<16x1xf32>
    %286 = vector.broadcast %285 : vector<16x1xf32> to vector<16x64xf32>
    %287 = arith.subf %277, %286 : vector<16x64xf32>
    %288 = arith.mulf %287, %287 : vector<16x64xf32>
    %cst_110 = arith.constant dense<0.000000e+00> : vector<16xf32>
    %289 = vector.multi_reduction <add>, %288, %cst_110 [1] : vector<16x64xf32> to vector<16xf32>
    %290 = vector.shape_cast %289 : vector<16xf32> to vector<16x1xf32>
    %cst_111 = arith.constant 6.400000e+01 : f32
    %291 = vector.broadcast %cst_111 : f32 to vector<16x1xf32>
    %292 = arith.divf %290, %291 : vector<16x1xf32>
    %293 = vector.broadcast %285 : vector<16x1xf32> to vector<16x64xf32>
    %294 = arith.subf %277, %293 : vector<16x64xf32>
    %cst_112 = arith.constant 9.99999974E-6 : f32
    %295 = vector.broadcast %cst_112 : f32 to vector<16x1xf32>
    %296 = arith.addf %292, %295 : vector<16x1xf32>
    %297 = math.rsqrt %296 : vector<16x1xf32>
    %298 = vector.broadcast %297 : vector<16x1xf32> to vector<16x64xf32>
    %299 = arith.mulf %294, %298 : vector<16x64xf32>
    %300 = vector.broadcast %279 : vector<1x64xf32> to vector<16x64xf32>
    %301 = arith.mulf %299, %300 : vector<16x64xf32>
    %302 = vector.broadcast %281 : vector<1x64xf32> to vector<16x64xf32>
    %303 = arith.addf %301, %302 : vector<16x64xf32>
    %c1_113 = arith.constant 1 : index
    %c0_114 = arith.constant 0 : index
    %c0_115 = arith.constant 0 : index
    %304 = vector.load %arg10[%c1_113, %c0_114, %c0_115] : memref<2x64x128xf32, #tpu.memory_space<vmem>>, vector<1x64x128xf32>
    %305 = vector.shape_cast %304 : vector<1x64x128xf32> to vector<64x128xf32>
    %306 = arith.truncf %303 : vector<16x64xf32> to vector<16x64xbf16>
    %307 = arith.truncf %305 : vector<64x128xf32> to vector<64x128xbf16>
    %cst_116 = arith.constant dense<0.000000e+00> : vector<16x128xf32>
    %308 = tpu.matmul %306, %307, %cst_116 {dimension_numbers = #tpu.dot_dimension_numbers<[1], [0], [0], [1], [0, 0, 1, 1], [], []>} : vector<16x64xbf16>, vector<64x128xbf16>, vector<16x128xf32> -> vector<16x128xf32>
    %c1_117 = arith.constant 1 : index
    %c0_118 = arith.constant 0 : index
    %c0_119 = arith.constant 0 : index
    %309 = vector.load %arg11[%c1_117, %c0_118, %c0_119] : memref<2x1x128xf32, #tpu.memory_space<vmem>>, vector<1x1x128xf32>
    %310 = vector.shape_cast %309 : vector<1x1x128xf32> to vector<1x128xf32>
    %311 = vector.broadcast %310 : vector<1x128xf32> to vector<16x128xf32>
    %312 = arith.addf %308, %311 : vector<16x128xf32>
    %cst_120 = arith.constant 0.000000e+00 : f32
    %313 = vector.broadcast %cst_120 : f32 to vector<16x128xf32>
    %314 = arith.maximumf %312, %313 : vector<16x128xf32>
    %c1_121 = arith.constant 1 : index
    %c0_122 = arith.constant 0 : index
    %c0_123 = arith.constant 0 : index
    %315 = vector.load %arg12[%c1_121, %c0_122, %c0_123] : memref<2x128x64xf32, #tpu.memory_space<vmem>>, vector<1x128x64xf32>
    %316 = vector.shape_cast %315 : vector<1x128x64xf32> to vector<128x64xf32>
    %317 = arith.truncf %314 : vector<16x128xf32> to vector<16x128xbf16>
    %318 = arith.truncf %316 : vector<128x64xf32> to vector<128x64xbf16>
    %cst_124 = arith.constant dense<0.000000e+00> : vector<16x64xf32>
    %319 = tpu.matmul %317, %318, %cst_124 {dimension_numbers = #tpu.dot_dimension_numbers<[1], [0], [0], [1], [0, 0, 1, 1], [], []>} : vector<16x128xbf16>, vector<128x64xbf16>, vector<16x64xf32> -> vector<16x64xf32>
    %c1_125 = arith.constant 1 : index
    %c0_126 = arith.constant 0 : index
    %c0_127 = arith.constant 0 : index
    %320 = vector.load %arg13[%c1_125, %c0_126, %c0_127] : memref<2x1x64xf32, #tpu.memory_space<vmem>>, vector<1x1x64xf32>
    %321 = vector.shape_cast %320 : vector<1x1x64xf32> to vector<1x64xf32>
    %322 = vector.broadcast %321 : vector<1x64xf32> to vector<16x64xf32>
    %323 = arith.addf %319, %322 : vector<16x64xf32>
    %324 = arith.addf %303, %323 : vector<16x64xf32>
    %c1_128 = arith.constant 1 : index
    %c0_129 = arith.constant 0 : index
    %c0_130 = arith.constant 0 : index
    %325 = vector.load %arg14[%c1_128, %c0_129, %c0_130] : memref<2x1x64xf32, #tpu.memory_space<vmem>>, vector<1x1x64xf32>
    %326 = vector.shape_cast %325 : vector<1x1x64xf32> to vector<1x64xf32>
    %c1_131 = arith.constant 1 : index
    %c0_132 = arith.constant 0 : index
    %c0_133 = arith.constant 0 : index
    %327 = vector.load %arg15[%c1_131, %c0_132, %c0_133] : memref<2x1x64xf32, #tpu.memory_space<vmem>>, vector<1x1x64xf32>
    %328 = vector.shape_cast %327 : vector<1x1x64xf32> to vector<1x64xf32>
    %cst_134 = arith.constant dense<0.000000e+00> : vector<16xf32>
    %329 = vector.multi_reduction <add>, %324, %cst_134 [1] : vector<16x64xf32> to vector<16xf32>
    %330 = vector.shape_cast %329 : vector<16xf32> to vector<16x1xf32>
    %cst_135 = arith.constant 6.400000e+01 : f32
    %331 = vector.broadcast %cst_135 : f32 to vector<16x1xf32>
    %332 = arith.divf %330, %331 : vector<16x1xf32>
    %333 = vector.broadcast %332 : vector<16x1xf32> to vector<16x64xf32>
    %334 = arith.subf %324, %333 : vector<16x64xf32>
    %335 = arith.mulf %334, %334 : vector<16x64xf32>
    %cst_136 = arith.constant dense<0.000000e+00> : vector<16xf32>
    %336 = vector.multi_reduction <add>, %335, %cst_136 [1] : vector<16x64xf32> to vector<16xf32>
    %337 = vector.shape_cast %336 : vector<16xf32> to vector<16x1xf32>
    %cst_137 = arith.constant 6.400000e+01 : f32
    %338 = vector.broadcast %cst_137 : f32 to vector<16x1xf32>
    %339 = arith.divf %337, %338 : vector<16x1xf32>
    %340 = vector.broadcast %332 : vector<16x1xf32> to vector<16x64xf32>
    %341 = arith.subf %324, %340 : vector<16x64xf32>
    %cst_138 = arith.constant 9.99999974E-6 : f32
    %342 = vector.broadcast %cst_138 : f32 to vector<16x1xf32>
    %343 = arith.addf %339, %342 : vector<16x1xf32>
    %344 = math.rsqrt %343 : vector<16x1xf32>
    %345 = vector.broadcast %344 : vector<16x1xf32> to vector<16x64xf32>
    %346 = arith.mulf %341, %345 : vector<16x64xf32>
    %347 = vector.broadcast %326 : vector<1x64xf32> to vector<16x64xf32>
    %348 = arith.mulf %346, %347 : vector<16x64xf32>
    %349 = vector.broadcast %328 : vector<1x64xf32> to vector<16x64xf32>
    %350 = arith.addf %348, %349 : vector<16x64xf32>
    %351 = vector.shape_cast %350 : vector<16x64xf32> to vector<2x8x64xf32>
    %352 = vector.extract_strided_slice %351 {offsets = [0, 7, 0], sizes = [2, 1, 64], strides = [1, 1, 1]} : vector<2x8x64xf32> to vector<2x1x64xf32>
    %353 = vector.shape_cast %352 : vector<2x1x64xf32> to vector<2x64xf32>
    %c0_139 = arith.constant 0 : index
    %c0_140 = arith.constant 0 : index
    %354 = vector.load %arg16[%c0_139, %c0_140] : memref<64x1xf32, #tpu.memory_space<vmem>>, vector<64x1xf32>
    %355 = arith.truncf %353 : vector<2x64xf32> to vector<2x64xbf16>
    %356 = arith.truncf %354 : vector<64x1xf32> to vector<64x1xbf16>
    %cst_141 = arith.constant dense<0.000000e+00> : vector<2x1xf32>
    %357 = tpu.matmul %355, %356, %cst_141 {dimension_numbers = #tpu.dot_dimension_numbers<[1], [0], [0], [1], [0, 0, 1, 1], [], []>} : vector<2x64xbf16>, vector<64x1xbf16>, vector<2x1xf32> -> vector<2x1xf32>
    %c0_142 = arith.constant 0 : index
    %c0_143 = arith.constant 0 : index
    %358 = vector.load %arg17[%c0_142, %c0_143] : memref<1x1xf32, #tpu.memory_space<vmem>>, vector<1x1xf32>
    %359 = vector.broadcast %358 : vector<1x1xf32> to vector<2x1xf32>
    %360 = arith.addf %357, %359 : vector<2x1xf32>
    %c0_144 = arith.constant 0 : index
    %c0_145 = arith.constant 0 : index
    %361 = vector.load %arg18[%c0_144, %c0_145] : memref<2x1xf32, #tpu.memory_space<vmem>>, vector<2x1xf32>
    tpu.vector_store %arg18[%c0_144, %c0_145], %360 {strides = array<i32>} : memref<2x1xf32, #tpu.memory_space<vmem>>, vector<2x1xf32>,
    return
  }
  func.func @transform_0(%arg0: i32) -> (i32, i32, i32) {
    %c0_i32 = arith.constant 0 : i32
    %c0_i32_0 = arith.constant 0 : i32
    %c0_i32_1 = arith.constant 0 : i32
    %c0_i32_2 = arith.constant 0 : i32
    return %c0_i32, %c0_i32_0, %c0_i32_1 : i32, i32, i32
  }
  func.func @transform_1(%arg0: i32) -> (i32, i32) {
    %c0_i32 = arith.constant 0 : i32
    %c0_i32_0 = arith.constant 0 : i32
    %c0_i32_1 = arith.constant 0 : i32
    return %c0_i32, %c0_i32_0 : i32, i32
  }
  func.func @transform_2(%arg0: i32) -> (i32, i32) {
    %c0_i32 = arith.constant 0 : i32
    %c0_i32_0 = arith.constant 0 : i32
    %c0_i32_1 = arith.constant 0 : i32
    return %c0_i32, %c0_i32_0 : i32, i32
  }
  func.func @transform_3(%arg0: i32) -> (i32, i32, i32) {
    %c0_i32 = arith.constant 0 : i32
    %c0_i32_0 = arith.constant 0 : i32
    %c0_i32_1 = arith.constant 0 : i32
    %c0_i32_2 = arith.constant 0 : i32
    return %c0_i32, %c0_i32_0, %c0_i32_1 : i32, i32, i32
  }
  func.func @transform_4(%arg0: i32) -> (i32, i32, i32) {
    %c0_i32 = arith.constant 0 : i32
    %c0_i32_0 = arith.constant 0 : i32
    %c0_i32_1 = arith.constant 0 : i32
    %c0_i32_2 = arith.constant 0 : i32
    return %c0_i32, %c0_i32_0, %c0_i32_1 : i32, i32, i32
  }
  func.func @transform_5(%arg0: i32) -> (i32, i32, i32) {
    %c0_i32 = arith.constant 0 : i32
    %c0_i32_0 = arith.constant 0 : i32
    %c0_i32_1 = arith.constant 0 : i32
    %c0_i32_2 = arith.constant 0 : i32
    return %c0_i32, %c0_i32_0, %c0_i32_1 : i32, i32, i32
  }
  func.func @transform_6(%arg0: i32) -> (i32, i32, i32) {
    %c0_i32 = arith.constant 0 : i32
    %c0_i32_0 = arith.constant 0 : i32
    %c0_i32_1 = arith.constant 0 : i32
    %c0_i32_2 = arith.constant 0 : i32
    return %c0_i32, %c0_i32_0, %c0_i32_1 : i32, i32, i32
  }
  func.func @transform_7(%arg0: i32) -> (i32, i32, i32) {
    %c0_i32 = arith.constant 0 : i32
    %c0_i32_0 = arith.constant 0 : i32
    %c0_i32_1 = arith.constant 0 : i32
    %c0_i32_2 = arith.constant 0 : i32
    return %c0_i32, %c0_i32_0, %c0_i32_1 : i32, i32, i32
  }
  func.func @transform_8(%arg0: i32) -> (i32, i32, i32) {
    %c0_i32 = arith.constant 0 : i32
    %c0_i32_0 = arith.constant 0 : i32
    %c0_i32_1 = arith.constant 0 : i32
    %c0_i32_2 = arith.constant 0 : i32
    return %c0_i32, %c0_i32_0, %c0_i32_1 : i32, i32, i32
  }
  func.func @transform_9(%arg0: i32) -> (i32, i32, i32) {
    %c0_i32 = arith.constant 0 : i32
    %c0_i32_0 = arith.constant 0 : i32
    %c0_i32_1 = arith.constant 0 : i32
    %c0_i32_2 = arith.constant 0 : i32
    return %c0_i32, %c0_i32_0, %c0_i32_1 : i32, i32, i32
  }
  func.func @transform_10(%arg0: i32) -> (i32, i32, i32) {
    %c0_i32 = arith.constant 0 : i32
    %c0_i32_0 = arith.constant 0 : i32
    %c0_i32_1 = arith.constant 0 : i32
    %c0_i32_2 = arith.constant 0 : i32
    return %c0_i32, %c0_i32_0, %c0_i32_1 : i32, i32, i32
  }
  func.func @transform_11(%arg0: i32) -> (i32, i32, i32) {
    %c0_i32 = arith.constant 0 : i32
    %c0_i32_0 = arith.constant 0 : i32
    %c0_i32_1 = arith.constant 0 : i32
    %c0_i32_2 = arith.constant 0 : i32
    return %c0_i32, %c0_i32_0, %c0_i32_1 : i32, i32, i32
  }
  func.func @transform_12(%arg0: i32) -> (i32, i32, i32) {
    %c0_i32 = arith.constant 0 : i32
    %c0_i32_0 = arith.constant 0 : i32
    %c0_i32_1 = arith.constant 0 : i32
    %c0_i32_2 = arith.constant 0 : i32
    return %c0_i32, %c0_i32_0, %c0_i32_1 : i32, i32, i32
  }
  func.func @transform_13(%arg0: i32) -> (i32, i32, i32) {
    %c0_i32 = arith.constant 0 : i32
    %c0_i32_0 = arith.constant 0 : i32
    %c0_i32_1 = arith.constant 0 : i32
    %c0_i32_2 = arith.constant 0 : i32
    return %c0_i32, %c0_i32_0, %c0_i32_1 : i32, i32, i32
  }
  func.func @transform_14(%arg0: i32) -> (i32, i32, i32) {
    %c0_i32 = arith.constant 0 : i32
    %c0_i32_0 = arith.constant 0 : i32
    %c0_i32_1 = arith.constant 0 : i32
    %c0_i32_2 = arith.constant 0 : i32
    return %c0_i32, %c0_i32_0, %c0_i32_1 : i32, i32, i32
  }
  func.func @transform_15(%arg0: i32) -> (i32, i32) {
    %c0_i32 = arith.constant 0 : i32
    %c0_i32_0 = arith.constant 0 : i32
    %c0_i32_1 = arith.constant 0 : i32
    return %c0_i32, %c0_i32_0 : i32, i32
  }
  func.func @transform_16(%arg0: i32) -> (i32, i32) {
    %c0_i32 = arith.constant 0 : i32
    %c0_i32_0 = arith.constant 0 : i32
    %c0_i32_1 = arith.constant 0 : i32
    return %c0_i32, %c0_i32_0 : i32, i32
  }
  func.func @transform_17(%arg0: i32) -> (i32, i32) {
    %c0_i32 = arith.constant 0 : i32
    %c0_i32_0 = arith.constant 0 : i32
    %c0_i32_1 = arith.constant 0 : i32
    return %c0_i32, %c0_i32_0 : i32, i32
  }
}

</mosaic_0001>

<llo_original>
// kernel: tpu_custom_call.1
$region0: #{tpu_custom_call.1}
  #allocation0 [shape = 'u32[]', space=smem, size = 0x4, offset = 0x4, fixed_abs, tag = 'smem constant byte address 0x4 - core index']
  #allocation1 [shape = 'u32[144,128]{1,0:T(1,128)}', space=vmem, size = 0x12000, scoped, tag = 'internal scratch']
  #allocation2 [shape = 'f32[1,1]{1,0:T(1,128)S(1)}', space=vmem, size = 0x200, scoped, tag = 'scoped memory for tpu_custom_call.1']
  %s0 = inlined_call_operand.vmem [shape: f32[2,8,16], index: 0, kind: input, shape index: {}]
  %s1 = inlined_call_operand.vmem [shape: f32[16,64], index: 1, kind: input, shape index: {}]
  %s2 = inlined_call_operand.vmem [shape: f32[1,64], index: 2, kind: input, shape index: {}]
  %s3 = inlined_call_operand.vmem [shape: f32[2,64,192], index: 3, kind: input, shape index: {}]
  %s4 = inlined_call_operand.vmem [shape: f32[2,1,192], index: 4, kind: input, shape index: {}]
  %s5 = inlined_call_operand.vmem [shape: f32[2,64,64], index: 5, kind: input, shape index: {}]
  %s6 = inlined_call_operand.vmem [shape: f32[2,1,64], index: 6, kind: input, shape index: {}]
  %s7 = inlined_call_operand.vmem [shape: f32[2,1,64], index: 7, kind: input, shape index: {}]
  %s8 = inlined_call_operand.vmem [shape: f32[2,1,64], index: 8, kind: input, shape index: {}]
  %s9 = inlined_call_operand.hbm [shape: f32[2,64,128], index: 9, kind: input, shape index: {}]
  %s10 = inlined_call_operand.vmem [shape: f32[2,1,128], index: 10, kind: input, shape index: {}]
  %s11 = inlined_call_operand.vmem [shape: f32[2,128,64], index: 11, kind: input, shape index: {}]
  %s12 = inlined_call_operand.vmem [shape: f32[2,1,64], index: 12, kind: input, shape index: {}]
  %s13 = inlined_call_operand.vmem [shape: f32[2,1,64], index: 13, kind: input, shape index: {}]
  %s14 = inlined_call_operand.vmem [shape: f32[2,1,64], index: 14, kind: input, shape index: {}]
  %s15 = inlined_call_operand.vmem [shape: f32[64,1], index: 15, kind: input, shape index: {}]
  %s16 = inlined_call_operand.<no memory space> [shape: f32[1,1], index: 16, kind: input, shape index: {}]
  %s17 = inlined_call_operand.vmem [shape: f32[2,1], index: 17, kind: output, shape index: {}]
  %s18 = sld [smem:[#allocation0]]
  $region82: #{tpu_custom_call.1} parent=0
    _
  %s20 = ssub.s32 1, %s18
  %s21 = scalar_select 0, %s20, %s18
  %v22 = vstv %s16
  %23 = vst [vmem:[#allocation2] sm:$0x1] %v22
  $region1: #{tpu_custom_call.1} parent=0
    #allocation3 [shape = 'u8[65536]{0}', space=vmem, size = 0x10000, scoped, tag = 'input window, operand 9, single buffered']
    #allocation4 [shape = 's32[1]{0}', space=sflag, size = 0x4, scoped, tag = 'scoped memory for tpu_custom_call.1']
    %24 = vsyncpa [#allocation4], 0
    // Predicated region
    $region2: #{tpu_custom_call.1} parent=1 // pred_check
      _
    $region3: #{tpu_custom_call.1} parent=1 // pred_check_branch
      %26 = sbr.rel (0) target = $region5
    $region4: #{tpu_custom_call.1} parent=1 // pred_region
      _
    $region5: #{tpu_custom_call.1} parent=1 // pred_fallthru
      _
    // Predicated region
    $region6: #{tpu_custom_call.1} parent=1 // pred_check
      _
    $region7: #{tpu_custom_call.1} parent=1 // pred_check_branch
      %28 = sbr.rel (0) target = $region9
    $region8: #{tpu_custom_call.1} parent=1 // pred_region
      _
    $region9: #{tpu_custom_call.1} parent=1 // pred_fallthru
      _
    // Predicated region
    $region10: #{tpu_custom_call.1} parent=1 // pred_check
      _
    $region11: #{tpu_custom_call.1} parent=1 // pred_check_branch
      %30 = sbr.rel (0) target = $region13
    $region12: #{tpu_custom_call.1} parent=1 // pred_region
      _
    $region13: #{tpu_custom_call.1} parent=1 // pred_fallthru
      _
    // Predicated region
    $region14: #{tpu_custom_call.1} parent=1 // pred_check
      _
    $region15: #{tpu_custom_call.1} parent=1 // pred_check_branch
      %32 = sbr.rel (0) target = $region17
    $region16: #{tpu_custom_call.1} parent=1 // pred_region
      _
    $region17: #{tpu_custom_call.1} parent=1 // pred_fallthru
      _
    // Predicated region
    $region18: #{tpu_custom_call.1} parent=1 // pred_check
      _
    $region19: #{tpu_custom_call.1} parent=1 // pred_check_branch
      %34 = sbr.rel (0) target = $region21
    $region20: #{tpu_custom_call.1} parent=1 // pred_region
      _
    $region21: #{tpu_custom_call.1} parent=1 // pred_fallthru
      _
    // Predicated region
    $region22: #{tpu_custom_call.1} parent=1 // pred_check
      _
    $region23: #{tpu_custom_call.1} parent=1 // pred_check_branch
      %36 = sbr.rel (0) target = $region25
    $region24: #{tpu_custom_call.1} parent=1 // pred_region
      _
    $region25: #{tpu_custom_call.1} parent=1 // pred_fallthru
      _
    // Predicated region
    $region26: #{tpu_custom_call.1} parent=1 // pred_check
      _
    $region27: #{tpu_custom_call.1} parent=1 // pred_check_branch
      %38 = sbr.rel (0) target = $region29
    $region28: #{tpu_custom_call.1} parent=1 // pred_region
      _
    $region29: #{tpu_custom_call.1} parent=1 // pred_fallthru
      _
    // Predicated region
    $region30: #{tpu_custom_call.1} parent=1 // pred_check
      _
    $region31: #{tpu_custom_call.1} parent=1 // pred_check_branch
      %40 = sbr.rel (0) target = $region33
    $region32: #{tpu_custom_call.1} parent=1 // pred_region
      _
    $region33: #{tpu_custom_call.1} parent=1 // pred_fallthru
      _
    // Predicated region
    $region34: #{tpu_custom_call.1} parent=1 // pred_check
      _
    $region35: #{tpu_custom_call.1} parent=1 // pred_check_branch
      %42 = sbr.rel (0) target = $region37
    $region36: #{tpu_custom_call.1} parent=1 // pred_region
      _
    $region37: #{tpu_custom_call.1} parent=1 // pred_fallthru
      _
    // Predicated region
    $region38: #{tpu_custom_call.1} parent=1 // pred_check
      _
    $region39: #{tpu_custom_call.1} parent=1 // pred_check_branch
      %44 = sbr.rel (0) target = $region41
    $region40: #{tpu_custom_call.1} parent=1 // pred_region
      %s46 = ssub.s32 2048, 2048
      %47 = vsyncadd [#allocation4], %s46
      %s48 = sshll.u32 [#allocation3], 4
      %s49 = int_to_ptr.vmem [resolvable:$true] %s48
      %54 = dma.hbm_to_vmem [thread:$0]  %s9, 2048, %s49, [#allocation4], 128, 128, 8
    $region41: #{tpu_custom_call.1} parent=1 // pred_fallthru
      _
    // Predicated region
    $region42: #{tpu_custom_call.1} parent=1 // pred_check
      _
    $region43: #{tpu_custom_call.1} parent=1 // pred_check_branch
      %56 = sbr.rel (0) target = $region45
    $region44: #{tpu_custom_call.1} parent=1 // pred_region
      _
    $region45: #{tpu_custom_call.1} parent=1 // pred_fallthru
      _
    // Predicated region
    $region46: #{tpu_custom_call.1} parent=1 // pred_check
      _
    $region47: #{tpu_custom_call.1} parent=1 // pred_check_branch
      %58 = sbr.rel (0) target = $region49
    $region48: #{tpu_custom_call.1} parent=1 // pred_region
      _
    $region49: #{tpu_custom_call.1} parent=1 // pred_fallthru
      _
    // Predicated region
    $region50: #{tpu_custom_call.1} parent=1 // pred_check
      _
    $region51: #{tpu_custom_call.1} parent=1 // pred_check_branch
      %60 = sbr.rel (0) target = $region53
    $region52: #{tpu_custom_call.1} parent=1 // pred_region
      _
    $region53: #{tpu_custom_call.1} parent=1 // pred_fallthru
      _
    // Predicated region
    $region54: #{tpu_custom_call.1} parent=1 // pred_check
      _
    $region55: #{tpu_custom_call.1} parent=1 // pred_check_branch
      %62 = sbr.rel (0) target = $region57
    $region56: #{tpu_custom_call.1} parent=1 // pred_region
      _
    $region57: #{tpu_custom_call.1} parent=1 // pred_fallthru
      _
    // Predicated region
    $region58: #{tpu_custom_call.1} parent=1 // pred_check
      _
    $region59: #{tpu_custom_call.1} parent=1 // pred_check_branch
      %64 = sbr.rel (0) target = $region61
    $region60: #{tpu_custom_call.1} parent=1 // pred_region
      _
    $region61: #{tpu_custom_call.1} parent=1 // pred_fallthru
      _
    // Predicated region
    $region62: #{tpu_custom_call.1} parent=1 // pred_check
      _
    $region63: #{tpu_custom_call.1} parent=1 // pred_check_branch
      %66 = sbr.rel (0) target = $region65
    $region64: #{tpu_custom_call.1} parent=1 // pred_region
      _
    $region65: #{tpu_custom_call.1} parent=1 // pred_fallthru
      _
    // Predicated region
    $region66: #{tpu_custom_call.1} parent=1 // pred_check
      _
    $region67: #{tpu_custom_call.1} parent=1 // pred_check_branch
      %68 = sbr.rel (0) target = $region69
    $region68: #{tpu_custom_call.1} parent=1 // pred_region
      _
    $region69: #{tpu_custom_call.1} parent=1 // pred_fallthru
      _
    // Predicated region
    $region70: #{tpu_custom_call.1} parent=1 // pred_check
      _
    $region71: #{tpu_custom_call.1} parent=1 // pred_check_branch
      %70 = sbr.rel (0) target = $region73
    $region72: #{tpu_custom_call.1} parent=1 // pred_region
      %71 = dma.done [#allocation4], 2048
    $region73: #{tpu_custom_call.1} parent=1 // pred_fallthru
      _
    %v73 = vld [vmem:[%s0] sm:$0xff]
    %v74 = vld [vmem:[%s0 + $0x8] sm:$0xff]
    %v75 = vld [vmem:[%s1] sm:$0xff]
    %v76 = vld [vmem:[%s1 + $0x8] sm:$0xff]
    %v77 = vpack.c.bf16 %v74, %v73
    %v78 = vpack.c.bf16 %v76, %v75
    %v79 = vld [vmem:[%s2] sm:$0x1]
    %v81 = vlaneseq
    %v82 = vshrl.u32 %v81, 7
    %v83 = vsub.s32 0, %v82
    %v84 = vrot.slane %v79, %v83
    %vm86 = vcmask 130048
    %v88 = vsel %vm86, %v77, 0
    %90 = vmatprep.subr.bf16.mxu0 0
    %91 = vmatpush1.bf16.msra.mxu0 %v78
    %92 = vmatprep.subr.bf16.mxu0 0
    %93 = vmatpush1.bf16.msra.mxu0 0
    %94 = vmatprep.subr.bf16.mxu0 0
    %95 = vmatpush1.bf16.msra.mxu0 0
    %96 = vmatprep.subr.bf16.mxu0 0
    %97 = vmatpush1.bf16.msra.mxu0 0
    %98 = vmatprep.subr.bf16.mxu0 0
    %99 = vmatpush1.bf16.msra.mxu0 0
    %100 = vmatprep.subr.bf16.mxu0 0
    %101 = vmatpush1.bf16.msra.mxu0 0
    %102 = vmatprep.subr.bf16.mxu0 0
    %103 = vmatpush1.bf16.msra.mxu0 0
    %104 = vmatprep.subr.bf16.mxu0 0
    %105 = vmatpush1.bf16.msra.mxu0 0
    %106 = vmatprep.subr.bf16.mxu0 0
    %107 = vmatpush1.bf16.msra.mxu0 0
    %108 = vmatprep.subr.bf16.mxu0 0
    %109 = vmatpush1.bf16.msra.mxu0 0
    %110 = vmatprep.subr.bf16.mxu0 0
    %111 = vmatpush1.bf16.msra.mxu0 0
    %112 = vmatprep.subr.bf16.mxu0 0
    %113 = vmatpush1.bf16.msra.mxu0 0
    %114 = vmatprep.subr.bf16.mxu0 0
    %115 = vmatpush1.bf16.msra.mxu0 0
    %116 = vmatprep.subr.bf16.mxu0 0
    %117 = vmatpush1.bf16.msra.mxu0 0
    %118 = vmatprep.subr.bf16.mxu0 0
    %119 = vmatpush1.bf16.msra.mxu0 0
    %120 = vmatprep.subr.bf16.mxu0 0
    %121 = vmatpush1.bf16.msra.mxu0 0
    %122 = vmatprep.mubr.bf16.mxu0 0
    %123 = vmatmul.mubr.bf16.gmra.mrb[0].mxu0 %v88
    %v124 = vpop.f32.mrb[0].mxu0
    %v125 = vadd.f32 %v84, %v124
    %v126 = vpop.f32.mrb[0].mxu0
    %v127 = vpop.f32.mrb[0].mxu0
    %v128 = vadd.f32 %v84, %v127
    %v129 = vpop.f32.mrb[0].mxu0
    %130 = vdwg.mxu0
    %v131 = vld [vmem:[%s3] sm:$0xff]
    %v132 = vld [vmem:[%s3 + $0x8] sm:$0xff]
    %v133 = vld [vmem:[%s3 + $0x10] sm:$0xff]
    %v134 = vld [vmem:[%s3 + $0x18] sm:$0xff]
    %v135 = vld [vmem:[%s3 + $0x20] sm:$0xff]
    %v136 = vld [vmem:[%s3 + $0x28] sm:$0xff]
    %v137 = vld [vmem:[%s3 + $0x30] sm:$0xff]
    %v138 = vld [vmem:[%s3 + $0x38] sm:$0xff]
    %v139 = vld [vmem:[%s3 + $0x40] sm:$0xff]
    %v140 = vld [vmem:[%s3 + $0x48] sm:$0xff]
    %v141 = vld [vmem:[%s3 + $0x50] sm:$0xff]
    %v142 = vld [vmem:[%s3 + $0x58] sm:$0xff]
    %v143 = vld [vmem:[%s3 + $0x60] sm:$0xff]
    %v144 = vld [vmem:[%s3 + $0x68] sm:$0xff]
    %v145 = vld [vmem:[%s3 + $0x70] sm:$0xff]
    %v146 = vld [vmem:[%s3 + $0x78] sm:$0xff]
    %v147 = vpack.c.bf16 %v128, %v125
    %v148 = vpack.c.bf16 %v133, %v131
    %v149 = vpack.c.bf16 %v134, %v132
    %v150 = vpack.c.bf16 %v137, %v135
    %v151 = vpack.c.bf16 %v138, %v136
    %v152 = vpack.c.bf16 %v141, %v139
    %v153 = vpack.c.bf16 %v142, %v140
    %v154 = vpack.c.bf16 %v145, %v143
    %v155 = vpack.c.bf16 %v146, %v144
    %v156 = vld [vmem:[%s4] sm:$0x3]
    %v158 = vlaneseq
    %v159 = vshrl.u32 %v158, 7
    %v160 = vsub.s32 0, %v159
    %v161 = vrot.slane %v156, %v160
    %v162 = vlaneseq
    %v163 = vshrl.u32 %v162, 7
    %v164 = vsub.s32 1, %v163
    %v165 = vrot.slane %v156, %v164
    %vm168 = vcmask 523264
    %v170 = vsel %vm168, %v147, 0
    %172 = vmatprep.subr.bf16.mxu0 %v149
    %173 = vmatpush1.bf16.msra.mxu0 %v148
    %174 = vmatprep.subr.bf16.mxu0 %v151
    %175 = vmatpush1.bf16.msra.mxu0 %v150
    %176 = vmatprep.subr.bf16.mxu0 %v153
    %177 = vmatpush1.bf16.msra.mxu0 %v152
    %178 = vmatprep.subr.bf16.mxu0 %v155
    %179 = vmatpush1.bf16.msra.mxu0 %v154
    %180 = vmatprep.subr.bf16.mxu0 0
    %181 = vmatpush1.bf16.msra.mxu0 0
    %182 = vmatprep.subr.bf16.mxu0 0
    %183 = vmatpush1.bf16.msra.mxu0 0
    %184 = vmatprep.subr.bf16.mxu0 0
    %185 = vmatpush1.bf16.msra.mxu0 0
    %186 = vmatprep.subr.bf16.mxu0 0
    %187 = vmatpush1.bf16.msra.mxu0 0
    %188 = vmatprep.subr.bf16.mxu0 0
    %189 = vmatpush1.bf16.msra.mxu0 0
    %190 = vmatprep.subr.bf16.mxu0 0
    %191 = vmatpush1.bf16.msra.mxu0 0
    %192 = vmatprep.subr.bf16.mxu0 0
    %193 = vmatpush1.bf16.msra.mxu0 0
    %194 = vmatprep.subr.bf16.mxu0 0
    %195 = vmatpush1.bf16.msra.mxu0 0
    %196 = vmatprep.subr.bf16.mxu0 0
    %197 = vmatpush1.bf16.msra.mxu0 0
    %198 = vmatprep.subr.bf16.mxu0 0
    %199 = vmatpush1.bf16.msra.mxu0 0
    %200 = vmatprep.subr.bf16.mxu0 0
    %201 = vmatpush1.bf16.msra.mxu0 0
    %202 = vmatprep.subr.bf16.mxu0 0
    %203 = vmatpush1.bf16.msra.mxu0 0
    %204 = vmatprep.mubr.bf16.mxu0 0
    %205 = vmatmul.mubr.bf16.gmra.mrb[0].mxu0 %v170
    %v206 = vpop.f32.mrb[0].mxu0
    %v207 = vadd.f32 %v161, %v206
    %v208 = vpop.f32.mrb[0].mxu0
    %v209 = vadd.f32 %v165, %v208
    %v210 = vpop.f32.mrb[0].mxu0
    %v211 = vadd.f32 %v161, %v210
    %v212 = vpop.f32.mrb[0].mxu0
    %v213 = vadd.f32 %v165, %v212
    %214 = vdwg.mxu0
    %v215 = vpack.c.bf16 %v207, %v207
    %v216 = vpack.c.bf16 %v211, %v211
    %218 = vrot.lane.b32.xlu0 %v215, 64
    %v219 = vpop.permute.xlu0 %218
    %v221 = vsel %vm86, %v215, 0
    %v224 = vsel %vm86, %v219, 0
    %226 = vmatprep.subr.bf16.mxu0 0
    %227 = vmatpush1.bf16.xpose.msra.mxu0 %v224
    %228 = vmatprep.subr.bf16.mxu0 0
    %229 = vmatpush1.bf16.xpose.msra.mxu0 0
    %230 = vmatprep.subr.bf16.mxu0 0
    %231 = vmatpush1.bf16.xpose.msra.mxu0 0
    %232 = vmatprep.subr.bf16.mxu0 0
    %233 = vmatpush1.bf16.xpose.msra.mxu0 0
    %234 = vmatprep.subr.bf16.mxu0 0
    %235 = vmatpush1.bf16.xpose.msra.mxu0 0
    %236 = vmatprep.subr.bf16.mxu0 0
    %237 = vmatpush1.bf16.xpose.msra.mxu0 0
    %238 = vmatprep.subr.bf16.mxu0 0
    %239 = vmatpush1.bf16.xpose.msra.mxu0 0
    %240 = vmatprep.subr.bf16.mxu0 0
    %241 = vmatpush1.bf16.xpose.msra.mxu0 0
    %242 = vmatprep.subr.bf16.mxu0 0
    %243 = vmatpush1.bf16.xpose.msra.mxu0 0
    %244 = vmatprep.subr.bf16.mxu0 0
    %245 = vmatpush1.bf16.xpose.msra.mxu0 0
    %246 = vmatprep.subr.bf16.mxu0 0
    %247 = vmatpush1.bf16.xpose.msra.mxu0 0
    %248 = vmatprep.subr.bf16.mxu0 0
    %249 = vmatpush1.bf16.xpose.msra.mxu0 0
    %250 = vmatprep.subr.bf16.mxu0 0
    %251 = vmatpush1.bf16.xpose.msra.mxu0 0
    %252 = vmatprep.subr.bf16.mxu0 0
    %253 = vmatpush1.bf16.xpose.msra.mxu0 0
    %254 = vmatprep.subr.bf16.mxu0 0
    %255 = vmatpush1.bf16.xpose.msra.mxu0 0
    %256 = vmatprep.subr.bf16.mxu0 0
    %257 = vmatpush1.bf16.xpose.msra.mxu0 0
    %258 = vmatprep.mubr.bf16.mxu0 0
    %259 = vmatmul.mubr.bf16.gmra.mrb[0].mxu0 %v221
    %v260 = vpop.f32.mrb[0].mxu0
    %v261 = vadd.f32 0.0, %v260
    %v262 = vpop.f32.mrb[0].mxu0
    %v263 = vpop.f32.mrb[0].mxu0
    %v264 = vpop.f32.mrb[0].mxu0
    %265 = vdwg.mxu0
    %267 = vrot.lane.b32.xlu0 %v216, 64
    %v268 = vpop.permute.xlu0 %267
    %v270 = vsel %vm86, %v216, 0
    %v273 = vsel %vm86, %v268, 0
    %275 = vmatprep.subr.bf16.mxu0 0
    %276 = vmatpush1.bf16.xpose.msra.mxu0 %v273
    %277 = vmatprep.subr.bf16.mxu0 0
    %278 = vmatpush1.bf16.xpose.msra.mxu0 0
    %279 = vmatprep.subr.bf16.mxu0 0
    %280 = vmatpush1.bf16.xpose.msra.mxu0 0
    %281 = vmatprep.subr.bf16.mxu0 0
    %282 = vmatpush1.bf16.xpose.msra.mxu0 0
    %283 = vmatprep.subr.bf16.mxu0 0
    %284 = vmatpush1.bf16.xpose.msra.mxu0 0
    %285 = vmatprep.subr.bf16.mxu0 0
    %286 = vmatpush1.bf16.xpose.msra.mxu0 0
    %287 = vmatprep.subr.bf16.mxu0 0
    %288 = vmatpush1.bf16.xpose.msra.mxu0 0
    %289 = vmatprep.subr.bf16.mxu0 0
    %290 = vmatpush1.bf16.xpose.msra.mxu0 0
    %291 = vmatprep.subr.bf16.mxu0 0
    %292 = vmatpush1.bf16.xpose.msra.mxu0 0
    %293 = vmatprep.subr.bf16.mxu0 0
    %294 = vmatpush1.bf16.xpose.msra.mxu0 0
    %295 = vmatprep.subr.bf16.mxu0 0
    %296 = vmatpush1.bf16.xpose.msra.mxu0 0
    %297 = vmatprep.subr.bf16.mxu0 0
    %298 = vmatpush1.bf16.xpose.msra.mxu0 0
    %299 = vmatprep.subr.bf16.mxu0 0
    %300 = vmatpush1.bf16.xpose.msra.mxu0 0
    %301 = vmatprep.subr.bf16.mxu0 0
    %302 = vmatpush1.bf16.xpose.msra.mxu0 0
    %303 = vmatprep.subr.bf16.mxu0 0
    %304 = vmatpush1.bf16.xpose.msra.mxu0 0
    %305 = vmatprep.subr.bf16.mxu0 0
    %306 = vmatpush1.bf16.xpose.msra.mxu0 0
    %307 = vmatprep.mubr.bf16.mxu0 0
    %308 = vmatmul.mubr.bf16.gmra.mrb[0].mxu0 %v270
    %v309 = vpop.f32.mrb[0].mxu0
    %v310 = vadd.f32 0.0, %v309
    %v311 = vpop.f32.mrb[0].mxu0
    %v312 = vpop.f32.mrb[0].mxu0
    %v313 = vpop.f32.mrb[0].mxu0
    %314 = vdwg.mxu0
    %vm315 = vcmask 64512
    %v316 = vsel %vm315, %v261, -inf
    %317 = vmax.xlane.f32.xlu0 %v316
    %v318 = vpop.xlane.xlu0 %317
    %v319 = vsel %vm315, %v310, -inf
    %320 = vmax.xlane.f32.xlu0 %v319
    %v321 = vpop.xlane.xlu0 %320
    %v322 = vsub.f32 %v261, %v318
    %v323 = vsub.f32 %v310, %v321
    %v324 = vmul.f32 %v322, 1.442695
    %v325 = vpow.pop %v324
    %v326 = vmul.f32 %v323, 1.442695
    %v327 = vpow.pop %v326
    %v328 = vsel %vm315, %v325, 0.0
    %329 = vadd.xlane.f32.xlu0 %v328
    %v330 = vpop.xlane.xlu0 %329
    %v331 = vsel %vm315, %v327, 0.0
    %332 = vadd.xlane.f32.xlu0 %v331
    %v333 = vpop.xlane.xlu0 %332
    %v334 = vrcp.pop %v330
    %v335 = vrcp.pop %v333
    %v336 = vmul.f32 %v325, %v334
    %v337 = vmul.f32 %v327, %v335
    %v338 = vpack.c.bf16 %v336, %v336
    %v339 = vpack.c.bf16 %v337, %v337
    %v340 = vpack.c.bf16 %v209, %v209
    %v341 = vpack.c.bf16 %v213, %v213
    %v343 = vsel %vm315, %v338, 0
    %vm345 = vcmask 1043456
    %v347 = vsel %vm345, %v340, 0
    %349 = vmatprep.subr.bf16.mxu0 0
    %350 = vmatpush1.bf16.msra.mxu0 %v347
    %351 = vmatprep.subr.bf16.mxu0 0
    %352 = vmatpush1.bf16.msra.mxu0 0
    %353 = vmatprep.subr.bf16.mxu0 0
    %354 = vmatpush1.bf16.msra.mxu0 0
    %355 = vmatprep.subr.bf16.mxu0 0
    %356 = vmatpush1.bf16.msra.mxu0 0
    %357 = vmatprep.subr.bf16.mxu0 0
    %358 = vmatpush1.bf16.msra.mxu0 0
    %359 = vmatprep.subr.bf16.mxu0 0
    %360 = vmatpush1.bf16.msra.mxu0 0
    %361 = vmatprep.subr.bf16.mxu0 0
    %362 = vmatpush1.bf16.msra.mxu0 0
    %363 = vmatprep.subr.bf16.mxu0 0
    %364 = vmatpush1.bf16.msra.mxu0 0
    %365 = vmatprep.subr.bf16.mxu0 0
    %366 = vmatpush1.bf16.msra.mxu0 0
    %367 = vmatprep.subr.bf16.mxu0 0
    %368 = vmatpush1.bf16.msra.mxu0 0
    %369 = vmatprep.subr.bf16.mxu0 0
    %370 = vmatpush1.bf16.msra.mxu0 0
    %371 = vmatprep.subr.bf16.mxu0 0
    %372 = vmatpush1.bf16.msra.mxu0 0
    %373 = vmatprep.subr.bf16.mxu0 0
    %374 = vmatpush1.bf16.msra.mxu0 0
    %375 = vmatprep.subr.bf16.mxu0 0
    %376 = vmatpush1.bf16.msra.mxu0 0
    %377 = vmatprep.subr.bf16.mxu0 0
    %378 = vmatpush1.bf16.msra.mxu0 0
    %379 = vmatprep.subr.bf16.mxu0 0
    %380 = vmatpush1.bf16.msra.mxu0 0
    %381 = vmatprep.mubr.bf16.mxu0 0
    %382 = vmatmul.mubr.bf16.gmra.mrb[0].mxu0 %v343
    %v383 = vpop.f32.mrb[0].mxu0
    %v384 = vadd.f32 0.0, %v383
    %v385 = vpop.f32.mrb[0].mxu0
    %v386 = vpop.f32.mrb[0].mxu0
    %v387 = vpop.f32.mrb[0].mxu0
    %388 = vdwg.mxu0
    %v390 = vsel %vm315, %v339, 0
    %v393 = vsel %vm345, %v341, 0
    %395 = vmatprep.subr.bf16.mxu0 0
    %396 = vmatpush1.bf16.msra.mxu0 %v393
    %397 = vmatprep.subr.bf16.mxu0 0
    %398 = vmatpush1.bf16.msra.mxu0 0
    %399 = vmatprep.subr.bf16.mxu0 0
    %400 = vmatpush1.bf16.msra.mxu0 0
    %401 = vmatprep.subr.bf16.mxu0 0
    %402 = vmatpush1.bf16.msra.mxu0 0
    %403 = vmatprep.subr.bf16.mxu0 0
    %404 = vmatpush1.bf16.msra.mxu0 0
    %405 = vmatprep.subr.bf16.mxu0 0
    %406 = vmatpush1.bf16.msra.mxu0 0
    %407 = vmatprep.subr.bf16.mxu0 0
    %408 = vmatpush1.bf16.msra.mxu0 0
    %409 = vmatprep.subr.bf16.mxu0 0
    %410 = vmatpush1.bf16.msra.mxu0 0
    %411 = vmatprep.subr.bf16.mxu0 0
    %412 = vmatpush1.bf16.msra.mxu0 0
    %413 = vmatprep.subr.bf16.mxu0 0
    %414 = vmatpush1.bf16.msra.mxu0 0
    %415 = vmatprep.subr.bf16.mxu0 0
    %416 = vmatpush1.bf16.msra.mxu0 0
    %417 = vmatprep.subr.bf16.mxu0 0
    %418 = vmatpush1.bf16.msra.mxu0 0
    %419 = vmatprep.subr.bf16.mxu0 0
    %420 = vmatpush1.bf16.msra.mxu0 0
    %421 = vmatprep.subr.bf16.mxu0 0
    %422 = vmatpush1.bf16.msra.mxu0 0
    %423 = vmatprep.subr.bf16.mxu0 0
    %424 = vmatpush1.bf16.msra.mxu0 0
    %425 = vmatprep.subr.bf16.mxu0 0
    %426 = vmatpush1.bf16.msra.mxu0 0
    %427 = vmatprep.mubr.bf16.mxu0 0
    %428 = vmatmul.mubr.bf16.gmra.mrb[0].mxu0 %v390
    %v429 = vpop.f32.mrb[0].mxu0
    %v430 = vadd.f32 0.0, %v429
    %v431 = vpop.f32.mrb[0].mxu0
    %v432 = vpop.f32.mrb[0].mxu0
    %v433 = vpop.f32.mrb[0].mxu0
    %434 = vdwg.mxu0
    %435 = vrot.lane.b32.xlu0 %v215, 112
    %v436 = vpop.permute.xlu0 %435
    %437 = vrot.lane.b32.xlu0 %v215, 48
    %v438 = vpop.permute.xlu0 %437
    %v440 = vsel %vm86, %v436, 0
    %v443 = vsel %vm86, %v438, 0
    %445 = vmatprep.subr.bf16.mxu0 0
    %446 = vmatpush1.bf16.xpose.msra.mxu0 %v443
    %447 = vmatprep.subr.bf16.mxu0 0
    %448 = vmatpush1.bf16.xpose.msra.mxu0 0
    %449 = vmatprep.subr.bf16.mxu0 0
    %450 = vmatpush1.bf16.xpose.msra.mxu0 0
    %451 = vmatprep.subr.bf16.mxu0 0
    %452 = vmatpush1.bf16.xpose.msra.mxu0 0
    %453 = vmatprep.subr.bf16.mxu0 0
    %454 = vmatpush1.bf16.xpose.msra.mxu0 0
    %455 = vmatprep.subr.bf16.mxu0 0
    %456 = vmatpush1.bf16.xpose.msra.mxu0 0
    %457 = vmatprep.subr.bf16.mxu0 0
    %458 = vmatpush1.bf16.xpose.msra.mxu0 0
    %459 = vmatprep.subr.bf16.mxu0 0
    %460 = vmatpush1.bf16.xpose.msra.mxu0 0
    %461 = vmatprep.subr.bf16.mxu0 0
    %462 = vmatpush1.bf16.xpose.msra.mxu0 0
    %463 = vmatprep.subr.bf16.mxu0 0
    %464 = vmatpush1.bf16.xpose.msra.mxu0 0
    %465 = vmatprep.subr.bf16.mxu0 0
    %466 = vmatpush1.bf16.xpose.msra.mxu0 0
    %467 = vmatprep.subr.bf16.mxu0 0
    %468 = vmatpush1.bf16.xpose.msra.mxu0 0
    %469 = vmatprep.subr.bf16.mxu0 0
    %470 = vmatpush1.bf16.xpose.msra.mxu0 0
    %471 = vmatprep.subr.bf16.mxu0 0
    %472 = vmatpush1.bf16.xpose.msra.mxu0 0
    %473 = vmatprep.subr.bf16.mxu0 0
    %474 = vmatpush1.bf16.xpose.msra.mxu0 0
    %475 = vmatprep.subr.bf16.mxu0 0
    %476 = vmatpush1.bf16.xpose.msra.mxu0 0
    %477 = vmatprep.mubr.bf16.mxu0 0
    %478 = vmatmul.mubr.bf16.gmra.mrb[0].mxu0 %v440
    %v479 = vpop.f32.mrb[0].mxu0
    %v480 = vadd.f32 0.0, %v479
    %v481 = vpop.f32.mrb[0].mxu0
    %v482 = vpop.f32.mrb[0].mxu0
    %v483 = vpop.f32.mrb[0].mxu0
    %484 = vdwg.mxu0
    %485 = vrot.lane.b32.xlu0 %v216, 112
    %v486 = vpop.permute.xlu0 %485
    %487 = vrot.lane.b32.xlu0 %v216, 48
    %v488 = vpop.permute.xlu0 %487
    %v490 = vsel %vm86, %v486, 0
    %v493 = vsel %vm86, %v488, 0
    %495 = vmatprep.subr.bf16.mxu0 0
    %496 = vmatpush1.bf16.xpose.msra.mxu0 %v493
    %497 = vmatprep.subr.bf16.mxu0 0
    %498 = vmatpush1.bf16.xpose.msra.mxu0 0
    %499 = vmatprep.subr.bf16.mxu0 0
    %500 = vmatpush1.bf16.xpose.msra.mxu0 0
    %501 = vmatprep.subr.bf16.mxu0 0
    %502 = vmatpush1.bf16.xpose.msra.mxu0 0
    %503 = vmatprep.subr.bf16.mxu0 0
    %504 = vmatpush1.bf16.xpose.msra.mxu0 0
    %505 = vmatprep.subr.bf16.mxu0 0
    %506 = vmatpush1.bf16.xpose.msra.mxu0 0
    %507 = vmatprep.subr.bf16.mxu0 0
    %508 = vmatpush1.bf16.xpose.msra.mxu0 0
    %509 = vmatprep.subr.bf16.mxu0 0
    %510 = vmatpush1.bf16.xpose.msra.mxu0 0
    %511 = vmatprep.subr.bf16.mxu0 0
    %512 = vmatpush1.bf16.xpose.msra.mxu0 0
    %513 = vmatprep.subr.bf16.mxu0 0
    %514 = vmatpush1.bf16.xpose.msra.mxu0 0
    %515 = vmatprep.subr.bf16.mxu0 0
    %516 = vmatpush1.bf16.xpose.msra.mxu0 0
    %517 = vmatprep.subr.bf16.mxu0 0
    %518 = vmatpush1.bf16.xpose.msra.mxu0 0
    %519 = vmatprep.subr.bf16.mxu0 0
    %520 = vmatpush1.bf16.xpose.msra.mxu0 0
    %521 = vmatprep.subr.bf16.mxu0 0
    %522 = vmatpush1.bf16.xpose.msra.mxu0 0
    %523 = vmatprep.subr.bf16.mxu0 0
    %524 = vmatpush1.bf16.xpose.msra.mxu0 0
    %525 = vmatprep.subr.bf16.mxu0 0
    %526 = vmatpush1.bf16.xpose.msra.mxu0 0
    %527 = vmatprep.mubr.bf16.mxu0 0
    %528 = vmatmul.mubr.bf16.gmra.mrb[0].mxu0 %v490
    %v529 = vpop.f32.mrb[0].mxu0
    %v530 = vadd.f32 0.0, %v529
    %v531 = vpop.f32.mrb[0].mxu0
    %v532 = vpop.f32.mrb[0].mxu0
    %v533 = vpop.f32.mrb[0].mxu0
    %534 = vdwg.mxu0
    %v535 = vsel %vm315, %v480, -inf
    %536 = vmax.xlane.f32.xlu0 %v535
    %v537 = vpop.xlane.xlu0 %536
    %v538 = vsel %vm315, %v530, -inf
    %539 = vmax.xlane.f32.xlu0 %v538
    %v540 = vpop.xlane.xlu0 %539
    %v541 = vsub.f32 %v480, %v537
    %v542 = vsub.f32 %v530, %v540
    %v543 = vmul.f32 %v541, 1.442695
    %v544 = vpow.pop %v543
    %v545 = vmul.f32 %v542, 1.442695
    %v546 = vpow.pop %v545
    %v547 = vsel %vm315, %v544, 0.0
    %548 = vadd.xlane.f32.xlu0 %v547
    %v549 = vpop.xlane.xlu0 %548
    %v550 = vsel %vm315, %v546, 0.0
    %551 = vadd.xlane.f32.xlu0 %v550
    %v552 = vpop.xlane.xlu0 %551
    %v553 = vrcp.pop %v549
    %v554 = vrcp.pop %v552
    %v555 = vmul.f32 %v544, %v553
    %v556 = vmul.f32 %v546, %v554
    %v557 = vpack.c.bf16 %v555, %v555
    %v558 = vpack.c.bf16 %v556, %v556
    %560 = vrot.lane.b32.xlu0 %v340, 112
    %v561 = vpop.permute.xlu0 %560
    %v563 = vsel %vm315, %v557, 0
    %v566 = vsel %vm345, %v561, 0
    %568 = vmatprep.subr.bf16.mxu0 0
    %569 = vmatpush1.bf16.msra.mxu0 %v566
    %570 = vmatprep.subr.bf16.mxu0 0
    %571 = vmatpush1.bf16.msra.mxu0 0
    %572 = vmatprep.subr.bf16.mxu0 0
    %573 = vmatpush1.bf16.msra.mxu0 0
    %574 = vmatprep.subr.bf16.mxu0 0
    %575 = vmatpush1.bf16.msra.mxu0 0
    %576 = vmatprep.subr.bf16.mxu0 0
    %577 = vmatpush1.bf16.msra.mxu0 0
    %578 = vmatprep.subr.bf16.mxu0 0
    %579 = vmatpush1.bf16.msra.mxu0 0
    %580 = vmatprep.subr.bf16.mxu0 0
    %581 = vmatpush1.bf16.msra.mxu0 0
    %582 = vmatprep.subr.bf16.mxu0 0
    %583 = vmatpush1.bf16.msra.mxu0 0
    %584 = vmatprep.subr.bf16.mxu0 0
    %585 = vmatpush1.bf16.msra.mxu0 0
    %586 = vmatprep.subr.bf16.mxu0 0
    %587 = vmatpush1.bf16.msra.mxu0 0
    %588 = vmatprep.subr.bf16.mxu0 0
    %589 = vmatpush1.bf16.msra.mxu0 0
    %590 = vmatprep.subr.bf16.mxu0 0
    %591 = vmatpush1.bf16.msra.mxu0 0
    %592 = vmatprep.subr.bf16.mxu0 0
    %593 = vmatpush1.bf16.msra.mxu0 0
    %594 = vmatprep.subr.bf16.mxu0 0
    %595 = vmatpush1.bf16.msra.mxu0 0
    %596 = vmatprep.subr.bf16.mxu0 0
    %597 = vmatpush1.bf16.msra.mxu0 0
    %598 = vmatprep.subr.bf16.mxu0 0
    %599 = vmatpush1.bf16.msra.mxu0 0
    %600 = vmatprep.mubr.bf16.mxu0 0
    %601 = vmatmul.mubr.bf16.gmra.mrb[0].mxu0 %v563
    %v602 = vpop.f32.mrb[0].mxu0
    %v603 = vadd.f32 0.0, %v602
    %v604 = vpop.f32.mrb[0].mxu0
    %v605 = vpop.f32.mrb[0].mxu0
    %v606 = vpop.f32.mrb[0].mxu0
    %607 = vdwg.mxu0
    %609 = vrot.lane.b32.xlu0 %v341, 112
    %v610 = vpop.permute.xlu0 %609
    %v612 = vsel %vm315, %v558, 0
    %v615 = vsel %vm345, %v610, 0
    %617 = vmatprep.subr.bf16.mxu0 0
    %618 = vmatpush1.bf16.msra.mxu0 %v615
    %619 = vmatprep.subr.bf16.mxu0 0
    %620 = vmatpush1.bf16.msra.mxu0 0
    %621 = vmatprep.subr.bf16.mxu0 0
    %622 = vmatpush1.bf16.msra.mxu0 0
    %623 = vmatprep.subr.bf16.mxu0 0
    %624 = vmatpush1.bf16.msra.mxu0 0
    %625 = vmatprep.subr.bf16.mxu0 0
    %626 = vmatpush1.bf16.msra.mxu0 0
    %627 = vmatprep.subr.bf16.mxu0 0
    %628 = vmatpush1.bf16.msra.mxu0 0
    %629 = vmatprep.subr.bf16.mxu0 0
    %630 = vmatpush1.bf16.msra.mxu0 0
    %631 = vmatprep.subr.bf16.mxu0 0
    %632 = vmatpush1.bf16.msra.mxu0 0
    %633 = vmatprep.subr.bf16.mxu0 0
    %634 = vmatpush1.bf16.msra.mxu0 0
    %635 = vmatprep.subr.bf16.mxu0 0
    %636 = vmatpush1.bf16.msra.mxu0 0
    %637 = vmatprep.subr.bf16.mxu0 0
    %638 = vmatpush1.bf16.msra.mxu0 0
    %639 = vmatprep.subr.bf16.mxu0 0
    %640 = vmatpush1.bf16.msra.mxu0 0
    %641 = vmatprep.subr.bf16.mxu0 0
    %642 = vmatpush1.bf16.msra.mxu0 0
    %643 = vmatprep.subr.bf16.mxu0 0
    %644 = vmatpush1.bf16.msra.mxu0 0
    %645 = vmatprep.subr.bf16.mxu0 0
    %646 = vmatpush1.bf16.msra.mxu0 0
    %647 = vmatprep.subr.bf16.mxu0 0
    %648 = vmatpush1.bf16.msra.mxu0 0
    %649 = vmatprep.mubr.bf16.mxu0 0
    %650 = vmatmul.mubr.bf16.gmra.mrb[0].mxu0 %v612
    %v651 = vpop.f32.mrb[0].mxu0
    %v652 = vadd.f32 0.0, %v651
    %v653 = vpop.f32.mrb[0].mxu0
    %v654 = vpop.f32.mrb[0].mxu0
    %v655 = vpop.f32.mrb[0].mxu0
    %656 = vdwg.mxu0
    %657 = vrot.lane.b32.xlu0 %v215, 96
    %v658 = vpop.permute.xlu0 %657
    %659 = vrot.lane.b32.xlu0 %v215, 32
    %v660 = vpop.permute.xlu0 %659
    %v662 = vsel %vm86, %v658, 0
    %v665 = vsel %vm86, %v660, 0
    %667 = vmatprep.subr.bf16.mxu0 0
    %668 = vmatpush1.bf16.xpose.msra.mxu0 %v665
    %669 = vmatprep.subr.bf16.mxu0 0
    %670 = vmatpush1.bf16.xpose.msra.mxu0 0
    %671 = vmatprep.subr.bf16.mxu0 0
    %672 = vmatpush1.bf16.xpose.msra.mxu0 0
    %673 = vmatprep.subr.bf16.mxu0 0
    %674 = vmatpush1.bf16.xpose.msra.mxu0 0
    %675 = vmatprep.subr.bf16.mxu0 0
    %676 = vmatpush1.bf16.xpose.msra.mxu0 0
    %677 = vmatprep.subr.bf16.mxu0 0
    %678 = vmatpush1.bf16.xpose.msra.mxu0 0
    %679 = vmatprep.subr.bf16.mxu0 0
    %680 = vmatpush1.bf16.xpose.msra.mxu0 0
    %681 = vmatprep.subr.bf16.mxu0 0
    %682 = vmatpush1.bf16.xpose.msra.mxu0 0
    %683 = vmatprep.subr.bf16.mxu0 0
    %684 = vmatpush1.bf16.xpose.msra.mxu0 0
    %685 = vmatprep.subr.bf16.mxu0 0
    %686 = vmatpush1.bf16.xpose.msra.mxu0 0
    %687 = vmatprep.subr.bf16.mxu0 0
    %688 = vmatpush1.bf16.xpose.msra.mxu0 0
    %689 = vmatprep.subr.bf16.mxu0 0
    %690 = vmatpush1.bf16.xpose.msra.mxu0 0
    %691 = vmatprep.subr.bf16.mxu0 0
    %692 = vmatpush1.bf16.xpose.msra.mxu0 0
    %693 = vmatprep.subr.bf16.mxu0 0
    %694 = vmatpush1.bf16.xpose.msra.mxu0 0
    %695 = vmatprep.subr.bf16.mxu0 0
    %696 = vmatpush1.bf16.xpose.msra.mxu0 0
    %697 = vmatprep.subr.bf16.mxu0 0
    %698 = vmatpush1.bf16.xpose.msra.mxu0 0
    %699 = vmatprep.mubr.bf16.mxu0 0
    %700 = vmatmul.mubr.bf16.gmra.mrb[0].mxu0 %v662
    %v701 = vpop.f32.mrb[0].mxu0
    %v702 = vadd.f32 0.0, %v701
    %v703 = vpop.f32.mrb[0].mxu0
    %v704 = vpop.f32.mrb[0].mxu0
    %v705 = vpop.f32.mrb[0].mxu0
    %706 = vdwg.mxu0
    %707 = vrot.lane.b32.xlu0 %v216, 96
    %v708 = vpop.permute.xlu0 %707
    %709 = vrot.lane.b32.xlu0 %v216, 32
    %v710 = vpop.permute.xlu0 %709
    %v712 = vsel %vm86, %v708, 0
    %v715 = vsel %vm86, %v710, 0
    %717 = vmatprep.subr.bf16.mxu0 0
    %718 = vmatpush1.bf16.xpose.msra.mxu0 %v715
    %719 = vmatprep.subr.bf16.mxu0 0
    %720 = vmatpush1.bf16.xpose.msra.mxu0 0
    %721 = vmatprep.subr.bf16.mxu0 0
    %722 = vmatpush1.bf16.xpose.msra.mxu0 0
    %723 = vmatprep.subr.bf16.mxu0 0
    %724 = vmatpush1.bf16.xpose.msra.mxu0 0
    %725 = vmatprep.subr.bf16.mxu0 0
    %726 = vmatpush1.bf16.xpose.msra.mxu0 0
    %727 = vmatprep.subr.bf16.mxu0 0
    %728 = vmatpush1.bf16.xpose.msra.mxu0 0
    %729 = vmatprep.subr.bf16.mxu0 0
    %730 = vmatpush1.bf16.xpose.msra.mxu0 0
    %731 = vmatprep.subr.bf16.mxu0 0
    %732 = vmatpush1.bf16.xpose.msra.mxu0 0
    %733 = vmatprep.subr.bf16.mxu0 0
    %734 = vmatpush1.bf16.xpose.msra.mxu0 0
    %735 = vmatprep.subr.bf16.mxu0 0
    %736 = vmatpush1.bf16.xpose.msra.mxu0 0
    %737 = vmatprep.subr.bf16.mxu0 0
    %738 = vmatpush1.bf16.xpose.msra.mxu0 0
    %739 = vmatprep.subr.bf16.mxu0 0
    %740 = vmatpush1.bf16.xpose.msra.mxu0 0
    %741 = vmatprep.subr.bf16.mxu0 0
    %742 = vmatpush1.bf16.xpose.msra.mxu0 0
    %743 = vmatprep.subr.bf16.mxu0 0
    %744 = vmatpush1.bf16.xpose.msra.mxu0 0
    %745 = vmatprep.subr.bf16.mxu0 0
    %746 = vmatpush1.bf16.xpose.msra.mxu0 0
    %747 = vmatprep.subr.bf16.mxu0 0
    %748 = vmatpush1.bf16.xpose.msra.mxu0 0
    %749 = vmatprep.mubr.bf16.mxu0 0
    %750 = vmatmul.mubr.bf16.gmra.mrb[0].mxu0 %v712
    %v751 = vpop.f32.mrb[0].mxu0
    %v752 = vadd.f32 0.0, %v751
    %v753 = vpop.f32.mrb[0].mxu0
    %v754 = vpop.f32.mrb[0].mxu0
    %v755 = vpop.f32.mrb[0].mxu0
    %756 = vdwg.mxu0
    %v757 = vsel %vm315, %v702, -inf
    %758 = vmax.xlane.f32.xlu0 %v757
    %v759 = vpop.xlane.xlu0 %758
    %v760 = vsel %vm315, %v752, -inf
    %761 = vmax.xlane.f32.xlu0 %v760
    %v762 = vpop.xlane.xlu0 %761
    %v763 = vsub.f32 %v702, %v759
    %v764 = vsub.f32 %v752, %v762
    %v765 = vmul.f32 %v763, 1.442695
    %v766 = vpow.pop %v765
    %v767 = vmul.f32 %v764, 1.442695
    %v768 = vpow.pop %v767
    %v769 = vsel %vm315, %v766, 0.0
    %770 = vadd.xlane.f32.xlu0 %v769
    %v771 = vpop.xlane.xlu0 %770
    %v772 = vsel %vm315, %v768, 0.0
    %773 = vadd.xlane.f32.xlu0 %v772
    %v774 = vpop.xlane.xlu0 %773
    %v775 = vrcp.pop %v771
    %v776 = vrcp.pop %v774
    %v777 = vmul.f32 %v766, %v775
    %v778 = vmul.f32 %v768, %v776
    %v779 = vpack.c.bf16 %v777, %v777
    %v780 = vpack.c.bf16 %v778, %v778
    %781 = vrot.lane.b32.xlu0 %v340, 96
    %v782 = vpop.permute.xlu0 %781
    %v784 = vsel %vm315, %v779, 0
    %v787 = vsel %vm345, %v782, 0
    %789 = vmatprep.subr.bf16.mxu0 0
    %790 = vmatpush1.bf16.msra.mxu0 %v787
    %791 = vmatprep.subr.bf16.mxu0 0
    %792 = vmatpush1.bf16.msra.mxu0 0
    %793 = vmatprep.subr.bf16.mxu0 0
    %794 = vmatpush1.bf16.msra.mxu0 0
    %795 = vmatprep.subr.bf16.mxu0 0
    %796 = vmatpush1.bf16.msra.mxu0 0
    %797 = vmatprep.subr.bf16.mxu0 0
    %798 = vmatpush1.bf16.msra.mxu0 0
    %799 = vmatprep.subr.bf16.mxu0 0
    %800 = vmatpush1.bf16.msra.mxu0 0
    %801 = vmatprep.subr.bf16.mxu0 0
    %802 = vmatpush1.bf16.msra.mxu0 0
    %803 = vmatprep.subr.bf16.mxu0 0
    %804 = vmatpush1.bf16.msra.mxu0 0
    %805 = vmatprep.subr.bf16.mxu0 0
    %806 = vmatpush1.bf16.msra.mxu0 0
    %807 = vmatprep.subr.bf16.mxu0 0
    %808 = vmatpush1.bf16.msra.mxu0 0
    %809 = vmatprep.subr.bf16.mxu0 0
    %810 = vmatpush1.bf16.msra.mxu0 0
    %811 = vmatprep.subr.bf16.mxu0 0
    %812 = vmatpush1.bf16.msra.mxu0 0
    %813 = vmatprep.subr.bf16.mxu0 0
    %814 = vmatpush1.bf16.msra.mxu0 0
    %815 = vmatprep.subr.bf16.mxu0 0
    %816 = vmatpush1.bf16.msra.mxu0 0
    %817 = vmatprep.subr.bf16.mxu0 0
    %818 = vmatpush1.bf16.msra.mxu0 0
    %819 = vmatprep.subr.bf16.mxu0 0
    %820 = vmatpush1.bf16.msra.mxu0 0
    %821 = vmatprep.mubr.bf16.mxu0 0
    %822 = vmatmul.mubr.bf16.gmra.mrb[0].mxu0 %v784
    %v823 = vpop.f32.mrb[0].mxu0
    %v824 = vadd.f32 0.0, %v823
    %v825 = vpop.f32.mrb[0].mxu0
    %v826 = vpop.f32.mrb[0].mxu0
    %v827 = vpop.f32.mrb[0].mxu0
    %828 = vdwg.mxu0
    %829 = vrot.lane.b32.xlu0 %v341, 96
    %v830 = vpop.permute.xlu0 %829
    %v832 = vsel %vm315, %v780, 0
    %v835 = vsel %vm345, %v830, 0
    %837 = vmatprep.subr.bf16.mxu0 0
    %838 = vmatpush1.bf16.msra.mxu0 %v835
    %839 = vmatprep.subr.bf16.mxu0 0
    %840 = vmatpush1.bf16.msra.mxu0 0
    %841 = vmatprep.subr.bf16.mxu0 0
    %842 = vmatpush1.bf16.msra.mxu0 0
    %843 = vmatprep.subr.bf16.mxu0 0
    %844 = vmatpush1.bf16.msra.mxu0 0
    %845 = vmatprep.subr.bf16.mxu0 0
    %846 = vmatpush1.bf16.msra.mxu0 0
    %847 = vmatprep.subr.bf16.mxu0 0
    %848 = vmatpush1.bf16.msra.mxu0 0
    %849 = vmatprep.subr.bf16.mxu0 0
    %850 = vmatpush1.bf16.msra.mxu0 0
    %851 = vmatprep.subr.bf16.mxu0 0
    %852 = vmatpush1.bf16.msra.mxu0 0
    %853 = vmatprep.subr.bf16.mxu0 0
    %854 = vmatpush1.bf16.msra.mxu0 0
    %855 = vmatprep.subr.bf16.mxu0 0
    %856 = vmatpush1.bf16.msra.mxu0 0
    %857 = vmatprep.subr.bf16.mxu0 0
    %858 = vmatpush1.bf16.msra.mxu0 0
    %859 = vmatprep.subr.bf16.mxu0 0
    %860 = vmatpush1.bf16.msra.mxu0 0
    %861 = vmatprep.subr.bf16.mxu0 0
    %862 = vmatpush1.bf16.msra.mxu0 0
    %863 = vmatprep.subr.bf16.mxu0 0
    %864 = vmatpush1.bf16.msra.mxu0 0
    %865 = vmatprep.subr.bf16.mxu0 0
    %866 = vmatpush1.bf16.msra.mxu0 0
    %867 = vmatprep.subr.bf16.mxu0 0
    %868 = vmatpush1.bf16.msra.mxu0 0
    %869 = vmatprep.mubr.bf16.mxu0 0
    %870 = vmatmul.mubr.bf16.gmra.mrb[0].mxu0 %v832
    %v871 = vpop.f32.mrb[0].mxu0
    %v872 = vadd.f32 0.0, %v871
    %v873 = vpop.f32.mrb[0].mxu0
    %v874 = vpop.f32.mrb[0].mxu0
    %v875 = vpop.f32.mrb[0].mxu0
    %876 = vdwg.mxu0
    %877 = vrot.lane.b32.xlu0 %v215, 80
    %v878 = vpop.permute.xlu0 %877
    %879 = vrot.lane.b32.xlu0 %v215, 16
    %v880 = vpop.permute.xlu0 %879
    %v882 = vsel %vm86, %v878, 0
    %v885 = vsel %vm86, %v880, 0
    %887 = vmatprep.subr.bf16.mxu0 0
    %888 = vmatpush1.bf16.xpose.msra.mxu0 %v885
    %889 = vmatprep.subr.bf16.mxu0 0
    %890 = vmatpush1.bf16.xpose.msra.mxu0 0
    %891 = vmatprep.subr.bf16.mxu0 0
    %892 = vmatpush1.bf16.xpose.msra.mxu0 0
    %893 = vmatprep.subr.bf16.mxu0 0
    %894 = vmatpush1.bf16.xpose.msra.mxu0 0
    %895 = vmatprep.subr.bf16.mxu0 0
    %896 = vmatpush1.bf16.xpose.msra.mxu0 0
    %897 = vmatprep.subr.bf16.mxu0 0
    %898 = vmatpush1.bf16.xpose.msra.mxu0 0
    %899 = vmatprep.subr.bf16.mxu0 0
    %900 = vmatpush1.bf16.xpose.msra.mxu0 0
    %901 = vmatprep.subr.bf16.mxu0 0
    %902 = vmatpush1.bf16.xpose.msra.mxu0 0
    %903 = vmatprep.subr.bf16.mxu0 0
    %904 = vmatpush1.bf16.xpose.msra.mxu0 0
    %905 = vmatprep.subr.bf16.mxu0 0
    %906 = vmatpush1.bf16.xpose.msra.mxu0 0
    %907 = vmatprep.subr.bf16.mxu0 0
    %908 = vmatpush1.bf16.xpose.msra.mxu0 0
    %909 = vmatprep.subr.bf16.mxu0 0
    %910 = vmatpush1.bf16.xpose.msra.mxu0 0
    %911 = vmatprep.subr.bf16.mxu0 0
    %912 = vmatpush1.bf16.xpose.msra.mxu0 0
    %913 = vmatprep.subr.bf16.mxu0 0
    %914 = vmatpush1.bf16.xpose.msra.mxu0 0
    %915 = vmatprep.subr.bf16.mxu0 0
    %916 = vmatpush1.bf16.xpose.msra.mxu0 0
    %917 = vmatprep.subr.bf16.mxu0 0
    %918 = vmatpush1.bf16.xpose.msra.mxu0 0
    %919 = vmatprep.mubr.bf16.mxu0 0
    %920 = vmatmul.mubr.bf16.gmra.mrb[0].mxu0 %v882
    %v921 = vpop.f32.mrb[0].mxu0
    %v922 = vadd.f32 0.0, %v921
    %v923 = vpop.f32.mrb[0].mxu0
    %v924 = vpop.f32.mrb[0].mxu0
    %v925 = vpop.f32.mrb[0].mxu0
    %926 = vdwg.mxu0
    %927 = vrot.lane.b32.xlu0 %v216, 80
    %v928 = vpop.permute.xlu0 %927
    %929 = vrot.lane.b32.xlu0 %v216, 16
    %v930 = vpop.permute.xlu0 %929
    %v932 = vsel %vm86, %v928, 0
    %v935 = vsel %vm86, %v930, 0
    %937 = vmatprep.subr.bf16.mxu0 0
    %938 = vmatpush1.bf16.xpose.msra.mxu0 %v935
    %939 = vmatprep.subr.bf16.mxu0 0
    %940 = vmatpush1.bf16.xpose.msra.mxu0 0
    %941 = vmatprep.subr.bf16.mxu0 0
    %942 = vmatpush1.bf16.xpose.msra.mxu0 0
    %943 = vmatprep.subr.bf16.mxu0 0
    %944 = vmatpush1.bf16.xpose.msra.mxu0 0
    %945 = vmatprep.subr.bf16.mxu0 0
    %946 = vmatpush1.bf16.xpose.msra.mxu0 0
    %947 = vmatprep.subr.bf16.mxu0 0
    %948 = vmatpush1.bf16.xpose.msra.mxu0 0
    %949 = vmatprep.subr.bf16.mxu0 0
    %950 = vmatpush1.bf16.xpose.msra.mxu0 0
    %951 = vmatprep.subr.bf16.mxu0 0
    %952 = vmatpush1.bf16.xpose.msra.mxu0 0
    %953 = vmatprep.subr.bf16.mxu0 0
    %954 = vmatpush1.bf16.xpose.msra.mxu0 0
    %955 = vmatprep.subr.bf16.mxu0 0
    %956 = vmatpush1.bf16.xpose.msra.mxu0 0
    %957 = vmatprep.subr.bf16.mxu0 0
    %958 = vmatpush1.bf16.xpose.msra.mxu0 0
    %959 = vmatprep.subr.bf16.mxu0 0
    %960 = vmatpush1.bf16.xpose.msra.mxu0 0
    %961 = vmatprep.subr.bf16.mxu0 0
    %962 = vmatpush1.bf16.xpose.msra.mxu0 0
    %963 = vmatprep.subr.bf16.mxu0 0
    %964 = vmatpush1.bf16.xpose.msra.mxu0 0
    %965 = vmatprep.subr.bf16.mxu0 0
    %966 = vmatpush1.bf16.xpose.msra.mxu0 0
    %967 = vmatprep.subr.bf16.mxu0 0
    %968 = vmatpush1.bf16.xpose.msra.mxu0 0
    %969 = vmatprep.mubr.bf16.mxu0 0
    %970 = vmatmul.mubr.bf16.gmra.mrb[0].mxu0 %v932
    %v971 = vpop.f32.mrb[0].mxu0
    %v972 = vadd.f32 0.0, %v971
    %v973 = vpop.f32.mrb[0].mxu0
    %v974 = vpop.f32.mrb[0].mxu0
    %v975 = vpop.f32.mrb[0].mxu0
    %976 = vdwg.mxu0
    %v977 = vsel %vm315, %v922, -inf
    %978 = vmax.xlane.f32.xlu0 %v977
    %v979 = vpop.xlane.xlu0 %978
    %v980 = vsel %vm315, %v972, -inf
    %981 = vmax.xlane.f32.xlu0 %v980
    %v982 = vpop.xlane.xlu0 %981
    %v983 = vsub.f32 %v922, %v979
    %v984 = vsub.f32 %v972, %v982
    %v985 = vmul.f32 %v983, 1.442695
    %v986 = vpow.pop %v985
    %v987 = vmul.f32 %v984, 1.442695
    %v988 = vpow.pop %v987
    %v989 = vsel %vm315, %v986, 0.0
    %990 = vadd.xlane.f32.xlu0 %v989
    %v991 = vpop.xlane.xlu0 %990
    %v992 = vsel %vm315, %v988, 0.0
    %993 = vadd.xlane.f32.xlu0 %v992
    %v994 = vpop.xlane.xlu0 %993
    %v995 = vrcp.pop %v991
    %v996 = vrcp.pop %v994
    %v997 = vmul.f32 %v986, %v995
    %v998 = vmul.f32 %v988, %v996
    %v999 = vpack.c.bf16 %v997, %v997
    %v1000 = vpack.c.bf16 %v998, %v998
    %1001 = vrot.lane.b32.xlu0 %v340, 80
    %v1002 = vpop.permute.xlu0 %1001
    %v1004 = vsel %vm315, %v999, 0
    %v1007 = vsel %vm345, %v1002, 0
    %1009 = vmatprep.subr.bf16.mxu0 0
    %1010 = vmatpush1.bf16.msra.mxu0 %v1007
    %1011 = vmatprep.subr.bf16.mxu0 0
    %1012 = vmatpush1.bf16.msra.mxu0 0
    %1013 = vmatprep.subr.bf16.mxu0 0
    %1014 = vmatpush1.bf16.msra.mxu0 0
    %1015 = vmatprep.subr.bf16.mxu0 0
    %1016 = vmatpush1.bf16.msra.mxu0 0
    %1017 = vmatprep.subr.bf16.mxu0 0
    %1018 = vmatpush1.bf16.msra.mxu0 0
    %1019 = vmatprep.subr.bf16.mxu0 0
    %1020 = vmatpush1.bf16.msra.mxu0 0
    %1021 = vmatprep.subr.bf16.mxu0 0
    %1022 = vmatpush1.bf16.msra.mxu0 0
    %1023 = vmatprep.subr.bf16.mxu0 0
    %1024 = vmatpush1.bf16.msra.mxu0 0
    %1025 = vmatprep.subr.bf16.mxu0 0
    %1026 = vmatpush1.bf16.msra.mxu0 0
    %1027 = vmatprep.subr.bf16.mxu0 0
    %1028 = vmatpush1.bf16.msra.mxu0 0
    %1029 = vmatprep.subr.bf16.mxu0 0
    %1030 = vmatpush1.bf16.msra.mxu0 0
    %1031 = vmatprep.subr.bf16.mxu0 0
    %1032 = vmatpush1.bf16.msra.mxu0 0
    %1033 = vmatprep.subr.bf16.mxu0 0
    %1034 = vmatpush1.bf16.msra.mxu0 0
    %1035 = vmatprep.subr.bf16.mxu0 0
    %1036 = vmatpush1.bf16.msra.mxu0 0
    %1037 = vmatprep.subr.bf16.mxu0 0
    %1038 = vmatpush1.bf16.msra.mxu0 0
    %1039 = vmatprep.subr.bf16.mxu0 0
    %1040 = vmatpush1.bf16.msra.mxu0 0
    %1041 = vmatprep.mubr.bf16.mxu0 0
    %1042 = vmatmul.mubr.bf16.gmra.mrb[0].mxu0 %v1004
    %v1043 = vpop.f32.mrb[0].mxu0
    %v1044 = vadd.f32 0.0, %v1043
    %v1045 = vpop.f32.mrb[0].mxu0
    %v1046 = vpop.f32.mrb[0].mxu0
    %v1047 = vpop.f32.mrb[0].mxu0
    %1048 = vdwg.mxu0
    %1049 = vrot.lane.b32.xlu0 %v341, 80
    %v1050 = vpop.permute.xlu0 %1049
    %v1052 = vsel %vm315, %v1000, 0
    %v1055 = vsel %vm345, %v1050, 0
    %1057 = vmatprep.subr.bf16.mxu0 0
    %1058 = vmatpush1.bf16.msra.mxu0 %v1055
    %1059 = vmatprep.subr.bf16.mxu0 0
    %1060 = vmatpush1.bf16.msra.mxu0 0
    %1061 = vmatprep.subr.bf16.mxu0 0
    %1062 = vmatpush1.bf16.msra.mxu0 0
    %1063 = vmatprep.subr.bf16.mxu0 0
    %1064 = vmatpush1.bf16.msra.mxu0 0
    %1065 = vmatprep.subr.bf16.mxu0 0
    %1066 = vmatpush1.bf16.msra.mxu0 0
    %1067 = vmatprep.subr.bf16.mxu0 0
    %1068 = vmatpush1.bf16.msra.mxu0 0
    %1069 = vmatprep.subr.bf16.mxu0 0
    %1070 = vmatpush1.bf16.msra.mxu0 0
    %1071 = vmatprep.subr.bf16.mxu0 0
    %1072 = vmatpush1.bf16.msra.mxu0 0
    %1073 = vmatprep.subr.bf16.mxu0 0
    %1074 = vmatpush1.bf16.msra.mxu0 0
    %1075 = vmatprep.subr.bf16.mxu0 0
    %1076 = vmatpush1.bf16.msra.mxu0 0
    %1077 = vmatprep.subr.bf16.mxu0 0
    %1078 = vmatpush1.bf16.msra.mxu0 0
    %1079 = vmatprep.subr.bf16.mxu0 0
    %1080 = vmatpush1.bf16.msra.mxu0 0
    %1081 = vmatprep.subr.bf16.mxu0 0
    %1082 = vmatpush1.bf16.msra.mxu0 0
    %1083 = vmatprep.subr.bf16.mxu0 0
    %1084 = vmatpush1.bf16.msra.mxu0 0
    %1085 = vmatprep.subr.bf16.mxu0 0
    %1086 = vmatpush1.bf16.msra.mxu0 0
    %1087 = vmatprep.subr.bf16.mxu0 0
    %1088 = vmatpush1.bf16.msra.mxu0 0
    %1089 = vmatprep.mubr.bf16.mxu0 0
    %1090 = vmatmul.mubr.bf16.gmra.mrb[0].mxu0 %v1052
    %v1091 = vpop.f32.mrb[0].mxu0
    %v1092 = vadd.f32 0.0, %v1091
    %v1093 = vpop.f32.mrb[0].mxu0
    %v1094 = vpop.f32.mrb[0].mxu0
    %v1095 = vpop.f32.mrb[0].mxu0
    %1096 = vdwg.mxu0
    %1099 = vrot.lane.b32.xlu0 %v603, 16
    %v1100 = vpop.permute.xlu0 %1099
    %1101 = vrot.lane.b32.xlu0 %v652, 16
    %v1102 = vpop.permute.xlu0 %1101
    %1107 = vrot.lane.b32.xlu0 %v824, 32
    %v1108 = vpop.permute.xlu0 %1107
    %1109 = vrot.lane.b32.xlu0 %v872, 32
    %v1110 = vpop.permute.xlu0 %1109
    %1115 = vrot.lane.b32.xlu0 %v1044, 48
    %v1116 = vpop.permute.xlu0 %1115
    %1117 = vrot.lane.b32.xlu0 %v1092, 48
    %v1118 = vpop.permute.xlu0 %1117
    %v1121 = vsel %vm86, %v384, %v1100
    %v1122 = vsel %vm86, %v430, %v1102
    %vm1123 = vcmask 261120
    %v1124 = vsel %vm1123, %v1121, %v1108
    %v1125 = vsel %vm1123, %v1122, %v1110
    %vm1126 = vcmask 392192
    %v1127 = vsel %vm1126, %v1124, %v1116
    %v1128 = vsel %vm1126, %v1125, %v1118
    %v1129 = vld [vmem:[%s5] sm:$0xff]
    %v1130 = vld [vmem:[%s5 + $0x8] sm:$0xff]
    %v1131 = vld [vmem:[%s5 + $0x10] sm:$0xff]
    %v1132 = vld [vmem:[%s5 + $0x18] sm:$0xff]
    %v1133 = vld [vmem:[%s5 + $0x20] sm:$0xff]
    %v1134 = vld [vmem:[%s5 + $0x28] sm:$0xff]
    %v1135 = vld [vmem:[%s5 + $0x30] sm:$0xff]
    %v1136 = vld [vmem:[%s5 + $0x38] sm:$0xff]
    %v1137 = vpack.c.bf16 %v1128, %v1127
    %v1138 = vpack.c.bf16 %v1130, %v1129
    %v1139 = vpack.c.bf16 %v1132, %v1131
    %v1140 = vpack.c.bf16 %v1134, %v1133
    %v1141 = vpack.c.bf16 %v1136, %v1135
    %v1142 = vld [vmem:[%s6] sm:$0x1]
    %v1144 = vlaneseq
    %v1145 = vshrl.u32 %v1144, 7
    %v1146 = vsub.s32 0, %v1145
    %v1147 = vrot.slane %v1142, %v1146
    %v1150 = vsel %vm168, %v1137, 0
    %1152 = vmatprep.subr.bf16.mxu0 0
    %1153 = vmatpush1.bf16.msra.mxu0 %v1138
    %1154 = vmatprep.subr.bf16.mxu0 0
    %1155 = vmatpush1.bf16.msra.mxu0 %v1139
    %1156 = vmatprep.subr.bf16.mxu0 0
    %1157 = vmatpush1.bf16.msra.mxu0 %v1140
    %1158 = vmatprep.subr.bf16.mxu0 0
    %1159 = vmatpush1.bf16.msra.mxu0 %v1141
    %1160 = vmatprep.subr.bf16.mxu0 0
    %1161 = vmatpush1.bf16.msra.mxu0 0
    %1162 = vmatprep.subr.bf16.mxu0 0
    %1163 = vmatpush1.bf16.msra.mxu0 0
    %1164 = vmatprep.subr.bf16.mxu0 0
    %1165 = vmatpush1.bf16.msra.mxu0 0
    %1166 = vmatprep.subr.bf16.mxu0 0
    %1167 = vmatpush1.bf16.msra.mxu0 0
    %1168 = vmatprep.subr.bf16.mxu0 0
    %1169 = vmatpush1.bf16.msra.mxu0 0
    %1170 = vmatprep.subr.bf16.mxu0 0
    %1171 = vmatpush1.bf16.msra.mxu0 0
    %1172 = vmatprep.subr.bf16.mxu0 0
    %1173 = vmatpush1.bf16.msra.mxu0 0
    %1174 = vmatprep.subr.bf16.mxu0 0
    %1175 = vmatpush1.bf16.msra.mxu0 0
    %1176 = vmatprep.subr.bf16.mxu0 0
    %1177 = vmatpush1.bf16.msra.mxu0 0
    %1178 = vmatprep.subr.bf16.mxu0 0
    %1179 = vmatpush1.bf16.msra.mxu0 0
    %1180 = vmatprep.subr.bf16.mxu0 0
    %1181 = vmatpush1.bf16.msra.mxu0 0
    %1182 = vmatprep.subr.bf16.mxu0 0
    %1183 = vmatpush1.bf16.msra.mxu0 0
    %1184 = vmatprep.mubr.bf16.mxu0 0
    %1185 = vmatmul.mubr.bf16.gmra.mrb[0].mxu0 %v1150
    %v1186 = vpop.f32.mrb[0].mxu0
    %v1187 = vadd.f32 %v1147, %v1186
    %v1188 = vpop.f32.mrb[0].mxu0
    %v1189 = vpop.f32.mrb[0].mxu0
    %v1190 = vadd.f32 %v1147, %v1189
    %v1191 = vpop.f32.mrb[0].mxu0
    %1192 = vdwg.mxu0
    %v1193 = vadd.f32 %v125, %v1187
    %v1194 = vadd.f32 %v128, %v1190
    %v1195 = vld [vmem:[%s7] sm:$0x1]
    %v1196 = vld [vmem:[%s8] sm:$0x1]
    %v1197 = vsel %vm168, %v1193, 0.0
    %1198 = vadd.xlane.f32.xlu0 %v1197
    %v1199 = vpop.xlane.xlu0 %1198
    %v1200 = vsel %vm168, %v1194, 0.0
    %1201 = vadd.xlane.f32.xlu0 %v1200
    %v1202 = vpop.xlane.xlu0 %1201
    %v1203 = vrcp.pop 64.0
    %v1204 = vmul.f32 %v1199, %v1203
    %v1205 = vmul.f32 %v1202, %v1203
    %v1206 = vsub.f32 %v1193, %v1204
    %v1207 = vsub.f32 %v1194, %v1205
    %v1208 = vmul.f32 %v1206, %v1206
    %v1209 = vmul.f32 %v1207, %v1207
    %v1210 = vsel %vm168, %v1208, 0.0
    %1211 = vadd.xlane.f32.xlu0 %v1210
    %v1212 = vpop.xlane.xlu0 %1211
    %v1213 = vsel %vm168, %v1209, 0.0
    %1214 = vadd.xlane.f32.xlu0 %v1213
    %v1215 = vpop.xlane.xlu0 %1214
    %v1216 = vmul.f32 %v1212, %v1203
    %v1217 = vmul.f32 %v1215, %v1203
    %v1218 = vadd.f32 %v1216, 1e-05
    %v1219 = vadd.f32 %v1217, 1e-05
    %v1220 = vrsqrt.pop %v1218
    %v1221 = vrsqrt.pop %v1219
    %v1222 = vmul.f32 %v1206, %v1220
    %v1223 = vmul.f32 %v1207, %v1221
    %v1225 = vlaneseq
    %v1226 = vshrl.u32 %v1225, 7
    %v1227 = vsub.s32 0, %v1226
    %v1228 = vrot.slane %v1195, %v1227
    %v1230 = vmul.f32 %v1222, %v1228
    %v1231 = vmul.f32 %v1223, %v1228
    %v1233 = vlaneseq
    %v1234 = vshrl.u32 %v1233, 7
    %v1235 = vsub.s32 0, %v1234
    %v1236 = vrot.slane %v1196, %v1235
    %v1238 = vadd.f32 %v1230, %v1236
    %v1239 = vadd.f32 %v1231, %v1236
    %v1240 = vld [vmem:[#allocation3] sm:$0xff]
    %v1241 = vld [vmem:[#allocation3 + $0x8] sm:$0xff]
    %v1242 = vld [vmem:[#allocation3 + $0x10] sm:$0xff]
    %v1243 = vld [vmem:[#allocation3 + $0x18] sm:$0xff]
    %v1244 = vld [vmem:[#allocation3 + $0x20] sm:$0xff]
    %v1245 = vld [vmem:[#allocation3 + $0x28] sm:$0xff]
    %v1246 = vld [vmem:[#allocation3 + $0x30] sm:$0xff]
    %v1247 = vld [vmem:[#allocation3 + $0x38] sm:$0xff]
    %v1248 = vpack.c.bf16 %v1239, %v1238
    %v1249 = vpack.c.bf16 %v1241, %v1240
    %v1250 = vpack.c.bf16 %v1243, %v1242
    %v1251 = vpack.c.bf16 %v1245, %v1244
    %v1252 = vpack.c.bf16 %v1247, %v1246
    %v1253 = vld [vmem:[%s10] sm:$0x1]
    %v1255 = vlaneseq
    %v1256 = vshrl.u32 %v1255, 7
    %v1257 = vsub.s32 0, %v1256
    %v1258 = vrot.slane %v1253, %v1257
    %v1261 = vsel %vm168, %v1248, 0
    %1263 = vmatprep.subr.bf16.mxu0 0
    %1264 = vmatpush1.bf16.msra.mxu0 %v1249
    %1265 = vmatprep.subr.bf16.mxu0 0
    %1266 = vmatpush1.bf16.msra.mxu0 %v1250
    %1267 = vmatprep.subr.bf16.mxu0 0
    %1268 = vmatpush1.bf16.msra.mxu0 %v1251
    %1269 = vmatprep.subr.bf16.mxu0 0
    %1270 = vmatpush1.bf16.msra.mxu0 %v1252
    %1271 = vmatprep.subr.bf16.mxu0 0
    %1272 = vmatpush1.bf16.msra.mxu0 0
    %1273 = vmatprep.subr.bf16.mxu0 0
    %1274 = vmatpush1.bf16.msra.mxu0 0
    %1275 = vmatprep.subr.bf16.mxu0 0
    %1276 = vmatpush1.bf16.msra.mxu0 0
    %1277 = vmatprep.subr.bf16.mxu0 0
    %1278 = vmatpush1.bf16.msra.mxu0 0
    %1279 = vmatprep.subr.bf16.mxu0 0
    %1280 = vmatpush1.bf16.msra.mxu0 0
    %1281 = vmatprep.subr.bf16.mxu0 0
    %1282 = vmatpush1.bf16.msra.mxu0 0
    %1283 = vmatprep.subr.bf16.mxu0 0
    %1284 = vmatpush1.bf16.msra.mxu0 0
    %1285 = vmatprep.subr.bf16.mxu0 0
    %1286 = vmatpush1.bf16.msra.mxu0 0
    %1287 = vmatprep.subr.bf16.mxu0 0
    %1288 = vmatpush1.bf16.msra.mxu0 0
    %1289 = vmatprep.subr.bf16.mxu0 0
    %1290 = vmatpush1.bf16.msra.mxu0 0
    %1291 = vmatprep.subr.bf16.mxu0 0
    %1292 = vmatpush1.bf16.msra.mxu0 0
    %1293 = vmatprep.subr.bf16.mxu0 0
    %1294 = vmatpush1.bf16.msra.mxu0 0
    %1295 = vmatprep.mubr.bf16.mxu0 0
    %1296 = vmatmul.mubr.bf16.gmra.mrb[0].mxu0 %v1261
    %v1297 = vpop.f32.mrb[0].mxu0
    %v1298 = vadd.f32 %v1258, %v1297
    %v1299 = vpop.f32.mrb[0].mxu0
    %v1300 = vpop.f32.mrb[0].mxu0
    %v1301 = vadd.f32 %v1258, %v1300
    %v1302 = vpop.f32.mrb[0].mxu0
    %1303 = vdwg.mxu0
    %v1304 = vmax.f32 %v1298, 0.0
    %v1305 = vmax.f32 %v1301, 0.0
    %v1306 = vld [vmem:[%s11] sm:$0xff]
    %v1307 = vld [vmem:[%s11 + $0x8] sm:$0xff]
    %v1308 = vld [vmem:[%s11 + $0x10] sm:$0xff]
    %v1309 = vld [vmem:[%s11 + $0x18] sm:$0xff]
    %v1310 = vld [vmem:[%s11 + $0x20] sm:$0xff]
    %v1311 = vld [vmem:[%s11 + $0x28] sm:$0xff]
    %v1312 = vld [vmem:[%s11 + $0x30] sm:$0xff]
    %v1313 = vld [vmem:[%s11 + $0x38] sm:$0xff]
    %v1314 = vld [vmem:[%s11 + $0x40] sm:$0xff]
    %v1315 = vld [vmem:[%s11 + $0x48] sm:$0xff]
    %v1316 = vld [vmem:[%s11 + $0x50] sm:$0xff]
    %v1317 = vld [vmem:[%s11 + $0x58] sm:$0xff]
    %v1318 = vld [vmem:[%s11 + $0x60] sm:$0xff]
    %v1319 = vld [vmem:[%s11 + $0x68] sm:$0xff]
    %v1320 = vld [vmem:[%s11 + $0x70] sm:$0xff]
    %v1321 = vld [vmem:[%s11 + $0x78] sm:$0xff]
    %v1322 = vpack.c.bf16 %v1305, %v1304
    %v1323 = vpack.c.bf16 %v1307, %v1306
    %v1324 = vpack.c.bf16 %v1309, %v1308
    %v1325 = vpack.c.bf16 %v1311, %v1310
    %v1326 = vpack.c.bf16 %v1313, %v1312
    %v1327 = vpack.c.bf16 %v1315, %v1314
    %v1328 = vpack.c.bf16 %v1317, %v1316
    %v1329 = vpack.c.bf16 %v1319, %v1318
    %v1330 = vpack.c.bf16 %v1321, %v1320
    %v1331 = vld [vmem:[%s12] sm:$0x1]
    %v1333 = vlaneseq
    %v1334 = vshrl.u32 %v1333, 7
    %v1335 = vsub.s32 0, %v1334
    %v1336 = vrot.slane %v1331, %v1335
    %1338 = vmatprep.subr.bf16.mxu0 0
    %1339 = vmatpush1.bf16.msra.mxu0 %v1323
    %1340 = vmatprep.subr.bf16.mxu0 0
    %1341 = vmatpush1.bf16.msra.mxu0 %v1324
    %1342 = vmatprep.subr.bf16.mxu0 0
    %1343 = vmatpush1.bf16.msra.mxu0 %v1325
    %1344 = vmatprep.subr.bf16.mxu0 0
    %1345 = vmatpush1.bf16.msra.mxu0 %v1326
    %1346 = vmatprep.subr.bf16.mxu0 0
    %1347 = vmatpush1.bf16.msra.mxu0 %v1327
    %1348 = vmatprep.subr.bf16.mxu0 0
    %1349 = vmatpush1.bf16.msra.mxu0 %v1328
    %1350 = vmatprep.subr.bf16.mxu0 0
    %1351 = vmatpush1.bf16.msra.mxu0 %v1329
    %1352 = vmatprep.subr.bf16.mxu0 0
    %1353 = vmatpush1.bf16.msra.mxu0 %v1330
    %1354 = vmatprep.subr.bf16.mxu0 0
    %1355 = vmatpush1.bf16.msra.mxu0 0
    %1356 = vmatprep.subr.bf16.mxu0 0
    %1357 = vmatpush1.bf16.msra.mxu0 0
    %1358 = vmatprep.subr.bf16.mxu0 0
    %1359 = vmatpush1.bf16.msra.mxu0 0
    %1360 = vmatprep.subr.bf16.mxu0 0
    %1361 = vmatpush1.bf16.msra.mxu0 0
    %1362 = vmatprep.subr.bf16.mxu0 0
    %1363 = vmatpush1.bf16.msra.mxu0 0
    %1364 = vmatprep.subr.bf16.mxu0 0
    %1365 = vmatpush1.bf16.msra.mxu0 0
    %1366 = vmatprep.subr.bf16.mxu0 0
    %1367 = vmatpush1.bf16.msra.mxu0 0
    %1368 = vmatprep.subr.bf16.mxu0 0
    %1369 = vmatpush1.bf16.msra.mxu0 0
    %1370 = vmatprep.mubr.bf16.mxu0 0
    %1371 = vmatmul.mubr.bf16.gmra.mrb[0].mxu0 %v1322
    %v1372 = vpop.f32.mrb[0].mxu0
    %v1373 = vadd.f32 %v1336, %v1372
    %v1374 = vpop.f32.mrb[0].mxu0
    %v1375 = vpop.f32.mrb[0].mxu0
    %v1376 = vadd.f32 %v1336, %v1375
    %v1377 = vpop.f32.mrb[0].mxu0
    %1378 = vdwg.mxu0
    %v1379 = vadd.f32 %v1238, %v1373
    %v1380 = vadd.f32 %v1239, %v1376
    %v1381 = vld [vmem:[%s13] sm:$0x1]
    %v1382 = vld [vmem:[%s14] sm:$0x1]
    %v1383 = vsel %vm168, %v1379, 0.0
    %1384 = vadd.xlane.f32.xlu0 %v1383
    %v1385 = vpop.xlane.xlu0 %1384
    %v1386 = vsel %vm168, %v1380, 0.0
    %1387 = vadd.xlane.f32.xlu0 %v1386
    %v1388 = vpop.xlane.xlu0 %1387
    %v1389 = vmul.f32 %v1385, %v1203
    %v1390 = vmul.f32 %v1388, %v1203
    %v1391 = vsub.f32 %v1379, %v1389
    %v1392 = vsub.f32 %v1380, %v1390
    %v1393 = vmul.f32 %v1391, %v1391
    %v1394 = vmul.f32 %v1392, %v1392
    %v1395 = vsel %vm168, %v1393, 0.0
    %1396 = vadd.xlane.f32.xlu0 %v1395
    %v1397 = vpop.xlane.xlu0 %1396
    %v1398 = vsel %vm168, %v1394, 0.0
    %1399 = vadd.xlane.f32.xlu0 %v1398
    %v1400 = vpop.xlane.xlu0 %1399
    %v1401 = vmul.f32 %v1397, %v1203
    %v1402 = vmul.f32 %v1400, %v1203
    %v1403 = vadd.f32 %v1401, 1e-05
    %v1404 = vadd.f32 %v1402, 1e-05
    %v1405 = vrsqrt.pop %v1403
    %v1406 = vrsqrt.pop %v1404
    %v1407 = vmul.f32 %v1391, %v1405
    %v1408 = vmul.f32 %v1392, %v1406
    %v1410 = vlaneseq
    %v1411 = vshrl.u32 %v1410, 7
    %v1412 = vsub.s32 0, %v1411
    %v1413 = vrot.slane %v1381, %v1412
    %v1415 = vmul.f32 %v1407, %v1413
    %v1416 = vmul.f32 %v1408, %v1413
    %v1418 = vlaneseq
    %v1419 = vshrl.u32 %v1418, 7
    %v1420 = vsub.s32 0, %v1419
    %v1421 = vrot.slane %v1382, %v1420
    %v1423 = vadd.f32 %v1415, %v1421
    %v1424 = vadd.f32 %v1416, %v1421
    %s1425 = scalar_lea.vmem %s3, 128
    %v1426 = vld [vmem:[%s1425] sm:$0xff]
    %v1427 = vld [vmem:[%s1425 + $0x8] sm:$0xff]
    %v1428 = vld [vmem:[%s1425 + $0x10] sm:$0xff]
    %v1429 = vld [vmem:[%s1425 + $0x18] sm:$0xff]
    %v1430 = vld [vmem:[%s1425 + $0x20] sm:$0xff]
    %v1431 = vld [vmem:[%s1425 + $0x28] sm:$0xff]
    %v1432 = vld [vmem:[%s1425 + $0x30] sm:$0xff]
    %v1433 = vld [vmem:[%s1425 + $0x38] sm:$0xff]
    %v1434 = vld [vmem:[%s1425 + $0x40] sm:$0xff]
    %v1435 = vld [vmem:[%s1425 + $0x48] sm:$0xff]
    %v1436 = vld [vmem:[%s1425 + $0x50] sm:$0xff]
    %v1437 = vld [vmem:[%s1425 + $0x58] sm:$0xff]
    %v1438 = vld [vmem:[%s1425 + $0x60] sm:$0xff]
    %v1439 = vld [vmem:[%s1425 + $0x68] sm:$0xff]
    %v1440 = vld [vmem:[%s1425 + $0x70] sm:$0xff]
    %v1441 = vld [vmem:[%s1425 + $0x78] sm:$0xff]
    %v1442 = vpack.c.bf16 %v1424, %v1423
    %v1443 = vpack.c.bf16 %v1428, %v1426
    %v1444 = vpack.c.bf16 %v1429, %v1427
    %v1445 = vpack.c.bf16 %v1432, %v1430
    %v1446 = vpack.c.bf16 %v1433, %v1431
    %v1447 = vpack.c.bf16 %v1436, %v1434
    %v1448 = vpack.c.bf16 %v1437, %v1435
    %v1449 = vpack.c.bf16 %v1440, %v1438
    %v1450 = vpack.c.bf16 %v1441, %v1439
    %s1451 = scalar_lea.vmem %s4, 2
    %v1452 = vld [vmem:[%s1451] sm:$0x3]
    %v1454 = vlaneseq
    %v1455 = vshrl.u32 %v1454, 7
    %v1456 = vsub.s32 0, %v1455
    %v1457 = vrot.slane %v1452, %v1456
    %v1458 = vlaneseq
    %v1459 = vshrl.u32 %v1458, 7
    %v1460 = vsub.s32 1, %v1459
    %v1461 = vrot.slane %v1452, %v1460
    %v1465 = vsel %vm168, %v1442, 0
    %1467 = vmatprep.subr.bf16.mxu0 %v1444
    %1468 = vmatpush1.bf16.msra.mxu0 %v1443
    %1469 = vmatprep.subr.bf16.mxu0 %v1446
    %1470 = vmatpush1.bf16.msra.mxu0 %v1445
    %1471 = vmatprep.subr.bf16.mxu0 %v1448
    %1472 = vmatpush1.bf16.msra.mxu0 %v1447
    %1473 = vmatprep.subr.bf16.mxu0 %v1450
    %1474 = vmatpush1.bf16.msra.mxu0 %v1449
    %1475 = vmatprep.subr.bf16.mxu0 0
    %1476 = vmatpush1.bf16.msra.mxu0 0
    %1477 = vmatprep.subr.bf16.mxu0 0
    %1478 = vmatpush1.bf16.msra.mxu0 0
    %1479 = vmatprep.subr.bf16.mxu0 0
    %1480 = vmatpush1.bf16.msra.mxu0 0
    %1481 = vmatprep.subr.bf16.mxu0 0
    %1482 = vmatpush1.bf16.msra.mxu0 0
    %1483 = vmatprep.subr.bf16.mxu0 0
    %1484 = vmatpush1.bf16.msra.mxu0 0
    %1485 = vmatprep.subr.bf16.mxu0 0
    %1486 = vmatpush1.bf16.msra.mxu0 0
    %1487 = vmatprep.subr.bf16.mxu0 0
    %1488 = vmatpush1.bf16.msra.mxu0 0
    %1489 = vmatprep.subr.bf16.mxu0 0
    %1490 = vmatpush1.bf16.msra.mxu0 0
    %1491 = vmatprep.subr.bf16.mxu0 0
    %1492 = vmatpush1.bf16.msra.mxu0 0
    %1493 = vmatprep.subr.bf16.mxu0 0
    %1494 = vmatpush1.bf16.msra.mxu0 0
    %1495 = vmatprep.subr.bf16.mxu0 0
    %1496 = vmatpush1.bf16.msra.mxu0 0
    %1497 = vmatprep.subr.bf16.mxu0 0
    %1498 = vmatpush1.bf16.msra.mxu0 0
    %1499 = vmatprep.mubr.bf16.mxu0 0
    %1500 = vmatmul.mubr.bf16.gmra.mrb[0].mxu0 %v1465
    %v1501 = vpop.f32.mrb[0].mxu0
    %v1502 = vadd.f32 %v1457, %v1501
    %v1503 = vpop.f32.mrb[0].mxu0
    %v1504 = vadd.f32 %v1461, %v1503
    %v1505 = vpop.f32.mrb[0].mxu0
    %v1506 = vadd.f32 %v1457, %v1505
    %v1507 = vpop.f32.mrb[0].mxu0
    %v1508 = vadd.f32 %v1461, %v1507
    %1509 = vdwg.mxu0
    %v1510 = vpack.c.bf16 %v1502, %v1502
    %v1511 = vpack.c.bf16 %v1506, %v1506
    %1513 = vrot.lane.b32.xlu0 %v1510, 64
    %v1514 = vpop.permute.xlu0 %1513
    %v1516 = vsel %vm86, %v1510, 0
    %v1519 = vsel %vm86, %v1514, 0
    %1521 = vmatprep.subr.bf16.mxu0 0
    %1522 = vmatpush1.bf16.xpose.msra.mxu0 %v1519
    %1523 = vmatprep.subr.bf16.mxu0 0
    %1524 = vmatpush1.bf16.xpose.msra.mxu0 0
    %1525 = vmatprep.subr.bf16.mxu0 0
    %1526 = vmatpush1.bf16.xpose.msra.mxu0 0
    %1527 = vmatprep.subr.bf16.mxu0 0
    %1528 = vmatpush1.bf16.xpose.msra.mxu0 0
    %1529 = vmatprep.subr.bf16.mxu0 0
    %1530 = vmatpush1.bf16.xpose.msra.mxu0 0
    %1531 = vmatprep.subr.bf16.mxu0 0
    %1532 = vmatpush1.bf16.xpose.msra.mxu0 0
    %1533 = vmatprep.subr.bf16.mxu0 0
    %1534 = vmatpush1.bf16.xpose.msra.mxu0 0
    %1535 = vmatprep.subr.bf16.mxu0 0
    %1536 = vmatpush1.bf16.xpose.msra.mxu0 0
    %1537 = vmatprep.subr.bf16.mxu0 0
    %1538 = vmatpush1.bf16.xpose.msra.mxu0 0
    %1539 = vmatprep.subr.bf16.mxu0 0
    %1540 = vmatpush1.bf16.xpose.msra.mxu0 0
    %1541 = vmatprep.subr.bf16.mxu0 0
    %1542 = vmatpush1.bf16.xpose.msra.mxu0 0
    %1543 = vmatprep.subr.bf16.mxu0 0
    %1544 = vmatpush1.bf16.xpose.msra.mxu0 0
    %1545 = vmatprep.subr.bf16.mxu0 0
    %1546 = vmatpush1.bf16.xpose.msra.mxu0 0
    %1547 = vmatprep.subr.bf16.mxu0 0
    %1548 = vmatpush1.bf16.xpose.msra.mxu0 0
    %1549 = vmatprep.subr.bf16.mxu0 0
    %1550 = vmatpush1.bf16.xpose.msra.mxu0 0
    %1551 = vmatprep.subr.bf16.mxu0 0
    %1552 = vmatpush1.bf16.xpose.msra.mxu0 0
    %1553 = vmatprep.mubr.bf16.mxu0 0
    %1554 = vmatmul.mubr.bf16.gmra.mrb[0].mxu0 %v1516
    %v1555 = vpop.f32.mrb[0].mxu0
    %v1556 = vadd.f32 0.0, %v1555
    %v1557 = vpop.f32.mrb[0].mxu0
    %v1558 = vpop.f32.mrb[0].mxu0
    %v1559 = vpop.f32.mrb[0].mxu0
    %1560 = vdwg.mxu0
    %1562 = vrot.lane.b32.xlu0 %v1511, 64
    %v1563 = vpop.permute.xlu0 %1562
    %v1565 = vsel %vm86, %v1511, 0
    %v1568 = vsel %vm86, %v1563, 0
    %1570 = vmatprep.subr.bf16.mxu0 0
    %1571 = vmatpush1.bf16.xpose.msra.mxu0 %v1568
    %1572 = vmatprep.subr.bf16.mxu0 0
    %1573 = vmatpush1.bf16.xpose.msra.mxu0 0
    %1574 = vmatprep.subr.bf16.mxu0 0
    %1575 = vmatpush1.bf16.xpose.msra.mxu0 0
    %1576 = vmatprep.subr.bf16.mxu0 0
    %1577 = vmatpush1.bf16.xpose.msra.mxu0 0
    %1578 = vmatprep.subr.bf16.mxu0 0
    %1579 = vmatpush1.bf16.xpose.msra.mxu0 0
    %1580 = vmatprep.subr.bf16.mxu0 0
    %1581 = vmatpush1.bf16.xpose.msra.mxu0 0
    %1582 = vmatprep.subr.bf16.mxu0 0
    %1583 = vmatpush1.bf16.xpose.msra.mxu0 0
    %1584 = vmatprep.subr.bf16.mxu0 0
    %1585 = vmatpush1.bf16.xpose.msra.mxu0 0
    %1586 = vmatprep.subr.bf16.mxu0 0
    %1587 = vmatpush1.bf16.xpose.msra.mxu0 0
    %1588 = vmatprep.subr.bf16.mxu0 0
    %1589 = vmatpush1.bf16.xpose.msra.mxu0 0
    %1590 = vmatprep.subr.bf16.mxu0 0
    %1591 = vmatpush1.bf16.xpose.msra.mxu0 0
    %1592 = vmatprep.subr.bf16.mxu0 0
    %1593 = vmatpush1.bf16.xpose.msra.mxu0 0
    %1594 = vmatprep.subr.bf16.mxu0 0
    %1595 = vmatpush1.bf16.xpose.msra.mxu0 0
    %1596 = vmatprep.subr.bf16.mxu0 0
    %1597 = vmatpush1.bf16.xpose.msra.mxu0 0
    %1598 = vmatprep.subr.bf16.mxu0 0
    %1599 = vmatpush1.bf16.xpose.msra.mxu0 0
    %1600 = vmatprep.subr.bf16.mxu0 0
    %1601 = vmatpush1.bf16.xpose.msra.mxu0 0
    %1602 = vmatprep.mubr.bf16.mxu0 0
    %1603 = vmatmul.mubr.bf16.gmra.mrb[0].mxu0 %v1565
    %v1604 = vpop.f32.mrb[0].mxu0
    %v1605 = vadd.f32 0.0, %v1604
    %v1606 = vpop.f32.mrb[0].mxu0
    %v1607 = vpop.f32.mrb[0].mxu0
    %v1608 = vpop.f32.mrb[0].mxu0
    %1609 = vdwg.mxu0
    %v1610 = vsel %vm315, %v1556, -inf
    %1611 = vmax.xlane.f32.xlu0 %v1610
    %v1612 = vpop.xlane.xlu0 %1611
    %v1613 = vsel %vm315, %v1605, -inf
    %1614 = vmax.xlane.f32.xlu0 %v1613
    %v1615 = vpop.xlane.xlu0 %1614
    %v1616 = vsub.f32 %v1556, %v1612
    %v1617 = vsub.f32 %v1605, %v1615
    %v1618 = vmul.f32 %v1616, 1.442695
    %v1619 = vpow.pop %v1618
    %v1620 = vmul.f32 %v1617, 1.442695
    %v1621 = vpow.pop %v1620
    %v1622 = vsel %vm315, %v1619, 0.0
    %1623 = vadd.xlane.f32.xlu0 %v1622
    %v1624 = vpop.xlane.xlu0 %1623
    %v1625 = vsel %vm315, %v1621, 0.0
    %1626 = vadd.xlane.f32.xlu0 %v1625
    %v1627 = vpop.xlane.xlu0 %1626
    %v1628 = vrcp.pop %v1624
    %v1629 = vrcp.pop %v1627
    %v1630 = vmul.f32 %v1619, %v1628
    %v1631 = vmul.f32 %v1621, %v1629
    %v1632 = vpack.c.bf16 %v1630, %v1630
    %v1633 = vpack.c.bf16 %v1631, %v1631
    %v1634 = vpack.c.bf16 %v1504, %v1504
    %v1635 = vpack.c.bf16 %v1508, %v1508
    %v1637 = vsel %vm315, %v1632, 0
    %v1640 = vsel %vm345, %v1634, 0
    %1642 = vmatprep.subr.bf16.mxu0 0
    %1643 = vmatpush1.bf16.msra.mxu0 %v1640
    %1644 = vmatprep.subr.bf16.mxu0 0
    %1645 = vmatpush1.bf16.msra.mxu0 0
    %1646 = vmatprep.subr.bf16.mxu0 0
    %1647 = vmatpush1.bf16.msra.mxu0 0
    %1648 = vmatprep.subr.bf16.mxu0 0
    %1649 = vmatpush1.bf16.msra.mxu0 0
    %1650 = vmatprep.subr.bf16.mxu0 0
    %1651 = vmatpush1.bf16.msra.mxu0 0
    %1652 = vmatprep.subr.bf16.mxu0 0
    %1653 = vmatpush1.bf16.msra.mxu0 0
    %1654 = vmatprep.subr.bf16.mxu0 0
    %1655 = vmatpush1.bf16.msra.mxu0 0
    %1656 = vmatprep.subr.bf16.mxu0 0
    %1657 = vmatpush1.bf16.msra.mxu0 0
    %1658 = vmatprep.subr.bf16.mxu0 0
    %1659 = vmatpush1.bf16.msra.mxu0 0
    %1660 = vmatprep.subr.bf16.mxu0 0
    %1661 = vmatpush1.bf16.msra.mxu0 0
    %1662 = vmatprep.subr.bf16.mxu0 0
    %1663 = vmatpush1.bf16.msra.mxu0 0
    %1664 = vmatprep.subr.bf16.mxu0 0
    %1665 = vmatpush1.bf16.msra.mxu0 0
    %1666 = vmatprep.subr.bf16.mxu0 0
    %1667 = vmatpush1.bf16.msra.mxu0 0
    %1668 = vmatprep.subr.bf16.mxu0 0
    %1669 = vmatpush1.bf16.msra.mxu0 0
    %1670 = vmatprep.subr.bf16.mxu0 0
    %1671 = vmatpush1.bf16.msra.mxu0 0
    %1672 = vmatprep.subr.bf16.mxu0 0
    %1673 = vmatpush1.bf16.msra.mxu0 0
    %1674 = vmatprep.mubr.bf16.mxu0 0
    %1675 = vmatmul.mubr.bf16.gmra.mrb[0].mxu0 %v1637
    %v1676 = vpop.f32.mrb[0].mxu0
    %v1677 = vadd.f32 0.0, %v1676
    %v1678 = vpop.f32.mrb[0].mxu0
    %v1679 = vpop.f32.mrb[0].mxu0
    %v1680 = vpop.f32.mrb[0].mxu0
    %1681 = vdwg.mxu0
    %v1683 = vsel %vm315, %v1633, 0
    %v1686 = vsel %vm345, %v1635, 0
    %1688 = vmatprep.subr.bf16.mxu0 0
    %1689 = vmatpush1.bf16.msra.mxu0 %v1686
    %1690 = vmatprep.subr.bf16.mxu0 0
    %1691 = vmatpush1.bf16.msra.mxu0 0
    %1692 = vmatprep.subr.bf16.mxu0 0
    %1693 = vmatpush1.bf16.msra.mxu0 0
    %1694 = vmatprep.subr.bf16.mxu0 0
    %1695 = vmatpush1.bf16.msra.mxu0 0
    %1696 = vmatprep.subr.bf16.mxu0 0
    %1697 = vmatpush1.bf16.msra.mxu0 0
    %1698 = vmatprep.subr.bf16.mxu0 0
    %1699 = vmatpush1.bf16.msra.mxu0 0
    %1700 = vmatprep.subr.bf16.mxu0 0
    %1701 = vmatpush1.bf16.msra.mxu0 0
    %1702 = vmatprep.subr.bf16.mxu0 0
    %1703 = vmatpush1.bf16.msra.mxu0 0
    %1704 = vmatprep.subr.bf16.mxu0 0
    %1705 = vmatpush1.bf16.msra.mxu0 0
    %1706 = vmatprep.subr.bf16.mxu0 0
    %1707 = vmatpush1.bf16.msra.mxu0 0
    %1708 = vmatprep.subr.bf16.mxu0 0
    %1709 = vmatpush1.bf16.msra.mxu0 0
    %1710 = vmatprep.subr.bf16.mxu0 0
    %1711 = vmatpush1.bf16.msra.mxu0 0
    %1712 = vmatprep.subr.bf16.mxu0 0
    %1713 = vmatpush1.bf16.msra.mxu0 0
    %1714 = vmatprep.subr.bf16.mxu0 0
    %1715 = vmatpush1.bf16.msra.mxu0 0
    %1716 = vmatprep.subr.bf16.mxu0 0
    %1717 = vmatpush1.bf16.msra.mxu0 0
    %1718 = vmatprep.subr.bf16.mxu0 0
    %1719 = vmatpush1.bf16.msra.mxu0 0
    %1720 = vmatprep.mubr.bf16.mxu0 0
    %1721 = vmatmul.mubr.bf16.gmra.mrb[0].mxu0 %v1683
    %v1722 = vpop.f32.mrb[0].mxu0
    %v1723 = vadd.f32 0.0, %v1722
    %v1724 = vpop.f32.mrb[0].mxu0
    %v1725 = vpop.f32.mrb[0].mxu0
    %v1726 = vpop.f32.mrb[0].mxu0
    %1727 = vdwg.mxu0
    %1728 = vrot.lane.b32.xlu0 %v1510, 112
    %v1729 = vpop.permute.xlu0 %1728
    %1730 = vrot.lane.b32.xlu0 %v1510, 48
    %v1731 = vpop.permute.xlu0 %1730
    %v1733 = vsel %vm86, %v1729, 0
    %v1736 = vsel %vm86, %v1731, 0
    %1738 = vmatprep.subr.bf16.mxu0 0
    %1739 = vmatpush1.bf16.xpose.msra.mxu0 %v1736
    %1740 = vmatprep.subr.bf16.mxu0 0
    %1741 = vmatpush1.bf16.xpose.msra.mxu0 0
    %1742 = vmatprep.subr.bf16.mxu0 0
    %1743 = vmatpush1.bf16.xpose.msra.mxu0 0
    %1744 = vmatprep.subr.bf16.mxu0 0
    %1745 = vmatpush1.bf16.xpose.msra.mxu0 0
    %1746 = vmatprep.subr.bf16.mxu0 0
    %1747 = vmatpush1.bf16.xpose.msra.mxu0 0
    %1748 = vmatprep.subr.bf16.mxu0 0
    %1749 = vmatpush1.bf16.xpose.msra.mxu0 0
    %1750 = vmatprep.subr.bf16.mxu0 0
    %1751 = vmatpush1.bf16.xpose.msra.mxu0 0
    %1752 = vmatprep.subr.bf16.mxu0 0
    %1753 = vmatpush1.bf16.xpose.msra.mxu0 0
    %1754 = vmatprep.subr.bf16.mxu0 0
    %1755 = vmatpush1.bf16.xpose.msra.mxu0 0
    %1756 = vmatprep.subr.bf16.mxu0 0
    %1757 = vmatpush1.bf16.xpose.msra.mxu0 0
    %1758 = vmatprep.subr.bf16.mxu0 0
    %1759 = vmatpush1.bf16.xpose.msra.mxu0 0
    %1760 = vmatprep.subr.bf16.mxu0 0
    %1761 = vmatpush1.bf16.xpose.msra.mxu0 0
    %1762 = vmatprep.subr.bf16.mxu0 0
    %1763 = vmatpush1.bf16.xpose.msra.mxu0 0
    %1764 = vmatprep.subr.bf16.mxu0 0
    %1765 = vmatpush1.bf16.xpose.msra.mxu0 0
    %1766 = vmatprep.subr.bf16.mxu0 0
    %1767 = vmatpush1.bf16.xpose.msra.mxu0 0
    %1768 = vmatprep.subr.bf16.mxu0 0
    %1769 = vmatpush1.bf16.xpose.msra.mxu0 0
    %1770 = vmatprep.mubr.bf16.mxu0 0
    %1771 = vmatmul.mubr.bf16.gmra.mrb[0].mxu0 %v1733
    %v1772 = vpop.f32.mrb[0].mxu0
    %v1773 = vadd.f32 0.0, %v1772
    %v1774 = vpop.f32.mrb[0].mxu0
    %v1775 = vpop.f32.mrb[0].mxu0
    %v1776 = vpop.f32.mrb[0].mxu0
    %1777 = vdwg.mxu0
    %1778 = vrot.lane.b32.xlu0 %v1511, 112
    %v1779 = vpop.permute.xlu0 %1778
    %1780 = vrot.lane.b32.xlu0 %v1511, 48
    %v1781 = vpop.permute.xlu0 %1780
    %v1783 = vsel %vm86, %v1779, 0
    %v1786 = vsel %vm86, %v1781, 0
    %1788 = vmatprep.subr.bf16.mxu0 0
    %1789 = vmatpush1.bf16.xpose.msra.mxu0 %v1786
    %1790 = vmatprep.subr.bf16.mxu0 0
    %1791 = vmatpush1.bf16.xpose.msra.mxu0 0
    %1792 = vmatprep.subr.bf16.mxu0 0
    %1793 = vmatpush1.bf16.xpose.msra.mxu0 0
    %1794 = vmatprep.subr.bf16.mxu0 0
    %1795 = vmatpush1.bf16.xpose.msra.mxu0 0
    %1796 = vmatprep.subr.bf16.mxu0 0
    %1797 = vmatpush1.bf16.xpose.msra.mxu0 0
    %1798 = vmatprep.subr.bf16.mxu0 0
    %1799 = vmatpush1.bf16.xpose.msra.mxu0 0
    %1800 = vmatprep.subr.bf16.mxu0 0
    %1801 = vmatpush1.bf16.xpose.msra.mxu0 0
    %1802 = vmatprep.subr.bf16.mxu0 0
    %1803 = vmatpush1.bf16.xpose.msra.mxu0 0
    %1804 = vmatprep.subr.bf16.mxu0 0
    %1805 = vmatpush1.bf16.xpose.msra.mxu0 0
    %1806 = vmatprep.subr.bf16.mxu0 0
    %1807 = vmatpush1.bf16.xpose.msra.mxu0 0
    %1808 = vmatprep.subr.bf16.mxu0 0
    %1809 = vmatpush1.bf16.xpose.msra.mxu0 0
    %1810 = vmatprep.subr.bf16.mxu0 0
    %1811 = vmatpush1.bf16.xpose.msra.mxu0 0
    %1812 = vmatprep.subr.bf16.mxu0 0
    %1813 = vmatpush1.bf16.xpose.msra.mxu0 0
    %1814 = vmatprep.subr.bf16.mxu0 0
    %1815 = vmatpush1.bf16.xpose.msra.mxu0 0
    %1816 = vmatprep.subr.bf16.mxu0 0
    %1817 = vmatpush1.bf16.xpose.msra.mxu0 0
    %1818 = vmatprep.subr.bf16.mxu0 0
    %1819 = vmatpush1.bf16.xpose.msra.mxu0 0
    %1820 = vmatprep.mubr.bf16.mxu0 0
    %1821 = vmatmul.mubr.bf16.gmra.mrb[0].mxu0 %v1783
    %v1822 = vpop.f32.mrb[0].mxu0
    %v1823 = vadd.f32 0.0, %v1822
    %v1824 = vpop.f32.mrb[0].mxu0
    %v1825 = vpop.f32.mrb[0].mxu0
    %v1826 = vpop.f32.mrb[0].mxu0
    %1827 = vdwg.mxu0
    %v1828 = vsel %vm315, %v1773, -inf
    %1829 = vmax.xlane.f32.xlu0 %v1828
    %v1830 = vpop.xlane.xlu0 %1829
    %v1831 = vsel %vm315, %v1823, -inf
    %1832 = vmax.xlane.f32.xlu0 %v1831
    %v1833 = vpop.xlane.xlu0 %1832
    %v1834 = vsub.f32 %v1773, %v1830
    %v1835 = vsub.f32 %v1823, %v1833
    %v1836 = vmul.f32 %v1834, 1.442695
    %v1837 = vpow.pop %v1836
    %v1838 = vmul.f32 %v1835, 1.442695
    %v1839 = vpow.pop %v1838
    %v1840 = vsel %vm315, %v1837, 0.0
    %1841 = vadd.xlane.f32.xlu0 %v1840
    %v1842 = vpop.xlane.xlu0 %1841
    %v1843 = vsel %vm315, %v1839, 0.0
    %1844 = vadd.xlane.f32.xlu0 %v1843
    %v1845 = vpop.xlane.xlu0 %1844
    %v1846 = vrcp.pop %v1842
    %v1847 = vrcp.pop %v1845
    %v1848 = vmul.f32 %v1837, %v1846
    %v1849 = vmul.f32 %v1839, %v1847
    %v1850 = vpack.c.bf16 %v1848, %v1848
    %v1851 = vpack.c.bf16 %v1849, %v1849
    %1853 = vrot.lane.b32.xlu0 %v1634, 112
    %v1854 = vpop.permute.xlu0 %1853
    %v1856 = vsel %vm315, %v1850, 0
    %v1859 = vsel %vm345, %v1854, 0
    %1861 = vmatprep.subr.bf16.mxu0 0
    %1862 = vmatpush1.bf16.msra.mxu0 %v1859
    %1863 = vmatprep.subr.bf16.mxu0 0
    %1864 = vmatpush1.bf16.msra.mxu0 0
    %1865 = vmatprep.subr.bf16.mxu0 0
    %1866 = vmatpush1.bf16.msra.mxu0 0
    %1867 = vmatprep.subr.bf16.mxu0 0
    %1868 = vmatpush1.bf16.msra.mxu0 0
    %1869 = vmatprep.subr.bf16.mxu0 0
    %1870 = vmatpush1.bf16.msra.mxu0 0
    %1871 = vmatprep.subr.bf16.mxu0 0
    %1872 = vmatpush1.bf16.msra.mxu0 0
    %1873 = vmatprep.subr.bf16.mxu0 0
    %1874 = vmatpush1.bf16.msra.mxu0 0
    %1875 = vmatprep.subr.bf16.mxu0 0
    %1876 = vmatpush1.bf16.msra.mxu0 0
    %1877 = vmatprep.subr.bf16.mxu0 0
    %1878 = vmatpush1.bf16.msra.mxu0 0
    %1879 = vmatprep.subr.bf16.mxu0 0
    %1880 = vmatpush1.bf16.msra.mxu0 0
    %1881 = vmatprep.subr.bf16.mxu0 0
    %1882 = vmatpush1.bf16.msra.mxu0 0
    %1883 = vmatprep.subr.bf16.mxu0 0
    %1884 = vmatpush1.bf16.msra.mxu0 0
    %1885 = vmatprep.subr.bf16.mxu0 0
    %1886 = vmatpush1.bf16.msra.mxu0 0
    %1887 = vmatprep.subr.bf16.mxu0 0
    %1888 = vmatpush1.bf16.msra.mxu0 0
    %1889 = vmatprep.subr.bf16.mxu0 0
    %1890 = vmatpush1.bf16.msra.mxu0 0
    %1891 = vmatprep.subr.bf16.mxu0 0
    %1892 = vmatpush1.bf16.msra.mxu0 0
    %1893 = vmatprep.mubr.bf16.mxu0 0
    %1894 = vmatmul.mubr.bf16.gmra.mrb[0].mxu0 %v1856
    %v1895 = vpop.f32.mrb[0].mxu0
    %v1896 = vadd.f32 0.0, %v1895
    %v1897 = vpop.f32.mrb[0].mxu0
    %v1898 = vpop.f32.mrb[0].mxu0
    %v1899 = vpop.f32.mrb[0].mxu0
    %1900 = vdwg.mxu0
    %1902 = vrot.lane.b32.xlu0 %v1635, 112
    %v1903 = vpop.permute.xlu0 %1902
    %v1905 = vsel %vm315, %v1851, 0
    %v1908 = vsel %vm345, %v1903, 0
    %1910 = vmatprep.subr.bf16.mxu0 0
    %1911 = vmatpush1.bf16.msra.mxu0 %v1908
    %1912 = vmatprep.subr.bf16.mxu0 0
    %1913 = vmatpush1.bf16.msra.mxu0 0
    %1914 = vmatprep.subr.bf16.mxu0 0
    %1915 = vmatpush1.bf16.msra.mxu0 0
    %1916 = vmatprep.subr.bf16.mxu0 0
    %1917 = vmatpush1.bf16.msra.mxu0 0
    %1918 = vmatprep.subr.bf16.mxu0 0
    %1919 = vmatpush1.bf16.msra.mxu0 0
    %1920 = vmatprep.subr.bf16.mxu0 0
    %1921 = vmatpush1.bf16.msra.mxu0 0
    %1922 = vmatprep.subr.bf16.mxu0 0
    %1923 = vmatpush1.bf16.msra.mxu0 0
    %1924 = vmatprep.subr.bf16.mxu0 0
    %1925 = vmatpush1.bf16.msra.mxu0 0
    %1926 = vmatprep.subr.bf16.mxu0 0
    %1927 = vmatpush1.bf16.msra.mxu0 0
    %1928 = vmatprep.subr.bf16.mxu0 0
    %1929 = vmatpush1.bf16.msra.mxu0 0
    %1930 = vmatprep.subr.bf16.mxu0 0
    %1931 = vmatpush1.bf16.msra.mxu0 0
    %1932 = vmatprep.subr.bf16.mxu0 0
    %1933 = vmatpush1.bf16.msra.mxu0 0
    %1934 = vmatprep.subr.bf16.mxu0 0
    %1935 = vmatpush1.bf16.msra.mxu0 0
    %1936 = vmatprep.subr.bf16.mxu0 0
    %1937 = vmatpush1.bf16.msra.mxu0 0
    %1938 = vmatprep.subr.bf16.mxu0 0
    %1939 = vmatpush1.bf16.msra.mxu0 0
    %1940 = vmatprep.subr.bf16.mxu0 0
    %1941 = vmatpush1.bf16.msra.mxu0 0
    %1942 = vmatprep.mubr.bf16.mxu0 0
    %1943 = vmatmul.mubr.bf16.gmra.mrb[0].mxu0 %v1905
    %v1944 = vpop.f32.mrb[0].mxu0
    %v1945 = vadd.f32 0.0, %v1944
    %v1946 = vpop.f32.mrb[0].mxu0
    %v1947 = vpop.f32.mrb[0].mxu0
    %v1948 = vpop.f32.mrb[0].mxu0
    %1949 = vdwg.mxu0
    %1950 = vrot.lane.b32.xlu0 %v1510, 96
    %v1951 = vpop.permute.xlu0 %1950
    %1952 = vrot.lane.b32.xlu0 %v1510, 32
    %v1953 = vpop.permute.xlu0 %1952
    %v1955 = vsel %vm86, %v1951, 0
    %v1958 = vsel %vm86, %v1953, 0
    %1960 = vmatprep.subr.bf16.mxu0 0
    %1961 = vmatpush1.bf16.xpose.msra.mxu0 %v1958
    %1962 = vmatprep.subr.bf16.mxu0 0
    %1963 = vmatpush1.bf16.xpose.msra.mxu0 0
    %1964 = vmatprep.subr.bf16.mxu0 0
    %1965 = vmatpush1.bf16.xpose.msra.mxu0 0
    %1966 = vmatprep.subr.bf16.mxu0 0
    %1967 = vmatpush1.bf16.xpose.msra.mxu0 0
    %1968 = vmatprep.subr.bf16.mxu0 0
    %1969 = vmatpush1.bf16.xpose.msra.mxu0 0
    %1970 = vmatprep.subr.bf16.mxu0 0
    %1971 = vmatpush1.bf16.xpose.msra.mxu0 0
    %1972 = vmatprep.subr.bf16.mxu0 0
    %1973 = vmatpush1.bf16.xpose.msra.mxu0 0
    %1974 = vmatprep.subr.bf16.mxu0 0
    %1975 = vmatpush1.bf16.xpose.msra.mxu0 0
    %1976 = vmatprep.subr.bf16.mxu0 0
    %1977 = vmatpush1.bf16.xpose.msra.mxu0 0
    %1978 = vmatprep.subr.bf16.mxu0 0
    %1979 = vmatpush1.bf16.xpose.msra.mxu0 0
    %1980 = vmatprep.subr.bf16.mxu0 0
    %1981 = vmatpush1.bf16.xpose.msra.mxu0 0
    %1982 = vmatprep.subr.bf16.mxu0 0
    %1983 = vmatpush1.bf16.xpose.msra.mxu0 0
    %1984 = vmatprep.subr.bf16.mxu0 0
    %1985 = vmatpush1.bf16.xpose.msra.mxu0 0
    %1986 = vmatprep.subr.bf16.mxu0 0
    %1987 = vmatpush1.bf16.xpose.msra.mxu0 0
    %1988 = vmatprep.subr.bf16.mxu0 0
    %1989 = vmatpush1.bf16.xpose.msra.mxu0 0
    %1990 = vmatprep.subr.bf16.mxu0 0
    %1991 = vmatpush1.bf16.xpose.msra.mxu0 0
    %1992 = vmatprep.mubr.bf16.mxu0 0
    %1993 = vmatmul.mubr.bf16.gmra.mrb[0].mxu0 %v1955
    %v1994 = vpop.f32.mrb[0].mxu0
    %v1995 = vadd.f32 0.0, %v1994
    %v1996 = vpop.f32.mrb[0].mxu0
    %v1997 = vpop.f32.mrb[0].mxu0
    %v1998 = vpop.f32.mrb[0].mxu0
    %1999 = vdwg.mxu0
    %2000 = vrot.lane.b32.xlu0 %v1511, 96
    %v2001 = vpop.permute.xlu0 %2000
    %2002 = vrot.lane.b32.xlu0 %v1511, 32
    %v2003 = vpop.permute.xlu0 %2002
    %v2005 = vsel %vm86, %v2001, 0
    %v2008 = vsel %vm86, %v2003, 0
    %2010 = vmatprep.subr.bf16.mxu0 0
    %2011 = vmatpush1.bf16.xpose.msra.mxu0 %v2008
    %2012 = vmatprep.subr.bf16.mxu0 0
    %2013 = vmatpush1.bf16.xpose.msra.mxu0 0
    %2014 = vmatprep.subr.bf16.mxu0 0
    %2015 = vmatpush1.bf16.xpose.msra.mxu0 0
    %2016 = vmatprep.subr.bf16.mxu0 0
    %2017 = vmatpush1.bf16.xpose.msra.mxu0 0
    %2018 = vmatprep.subr.bf16.mxu0 0
    %2019 = vmatpush1.bf16.xpose.msra.mxu0 0
    %2020 = vmatprep.subr.bf16.mxu0 0
    %2021 = vmatpush1.bf16.xpose.msra.mxu0 0
    %2022 = vmatprep.subr.bf16.mxu0 0
    %2023 = vmatpush1.bf16.xpose.msra.mxu0 0
    %2024 = vmatprep.subr.bf16.mxu0 0
    %2025 = vmatpush1.bf16.xpose.msra.mxu0 0
    %2026 = vmatprep.subr.bf16.mxu0 0
    %2027 = vmatpush1.bf16.xpose.msra.mxu0 0
    %2028 = vmatprep.subr.bf16.mxu0 0
    %2029 = vmatpush1.bf16.xpose.msra.mxu0 0
    %2030 = vmatprep.subr.bf16.mxu0 0
    %2031 = vmatpush1.bf16.xpose.msra.mxu0 0
    %2032 = vmatprep.subr.bf16.mxu0 0
    %2033 = vmatpush1.bf16.xpose.msra.mxu0 0
    %2034 = vmatprep.subr.bf16.mxu0 0
    %2035 = vmatpush1.bf16.xpose.msra.mxu0 0
    %2036 = vmatprep.subr.bf16.mxu0 0
    %2037 = vmatpush1.bf16.xpose.msra.mxu0 0
    %2038 = vmatprep.subr.bf16.mxu0 0
    %2039 = vmatpush1.bf16.xpose.msra.mxu0 0
    %2040 = vmatprep.subr.bf16.mxu0 0
    %2041 = vmatpush1.bf16.xpose.msra.mxu0 0
    %2042 = vmatprep.mubr.bf16.mxu0 0
    %2043 = vmatmul.mubr.bf16.gmra.mrb[0].mxu0 %v2005
    %v2044 = vpop.f32.mrb[0].mxu0
    %v2045 = vadd.f32 0.0, %v2044
    %v2046 = vpop.f32.mrb[0].mxu0
    %v2047 = vpop.f32.mrb[0].mxu0
    %v2048 = vpop.f32.mrb[0].mxu0
    %2049 = vdwg.mxu0
    %v2050 = vsel %vm315, %v1995, -inf
    %2051 = vmax.xlane.f32.xlu0 %v2050
    %v2052 = vpop.xlane.xlu0 %2051
    %v2053 = vsel %vm315, %v2045, -inf
    %2054 = vmax.xlane.f32.xlu0 %v2053
    %v2055 = vpop.xlane.xlu0 %2054
    %v2056 = vsub.f32 %v1995, %v2052
    %v2057 = vsub.f32 %v2045, %v2055
    %v2058 = vmul.f32 %v2056, 1.442695
    %v2059 = vpow.pop %v2058
    %v2060 = vmul.f32 %v2057, 1.442695
    %v2061 = vpow.pop %v2060
    %v2062 = vsel %vm315, %v2059, 0.0
    %2063 = vadd.xlane.f32.xlu0 %v2062
    %v2064 = vpop.xlane.xlu0 %2063
    %v2065 = vsel %vm315, %v2061, 0.0
    %2066 = vadd.xlane.f32.xlu0 %v2065
    %v2067 = vpop.xlane.xlu0 %2066
    %v2068 = vrcp.pop %v2064
    %v2069 = vrcp.pop %v2067
    %v2070 = vmul.f32 %v2059, %v2068
    %v2071 = vmul.f32 %v2061, %v2069
    %v2072 = vpack.c.bf16 %v2070, %v2070
    %v2073 = vpack.c.bf16 %v2071, %v2071
    %2074 = vrot.lane.b32.xlu0 %v1634, 96
    %v2075 = vpop.permute.xlu0 %2074
    %v2077 = vsel %vm315, %v2072, 0
    %v2080 = vsel %vm345, %v2075, 0
    %2082 = vmatprep.subr.bf16.mxu0 0
    %2083 = vmatpush1.bf16.msra.mxu0 %v2080
    %2084 = vmatprep.subr.bf16.mxu0 0
    %2085 = vmatpush1.bf16.msra.mxu0 0
    %2086 = vmatprep.subr.bf16.mxu0 0
    %2087 = vmatpush1.bf16.msra.mxu0 0
    %2088 = vmatprep.subr.bf16.mxu0 0
    %2089 = vmatpush1.bf16.msra.mxu0 0
    %2090 = vmatprep.subr.bf16.mxu0 0
    %2091 = vmatpush1.bf16.msra.mxu0 0
    %2092 = vmatprep.subr.bf16.mxu0 0
    %2093 = vmatpush1.bf16.msra.mxu0 0
    %2094 = vmatprep.subr.bf16.mxu0 0
    %2095 = vmatpush1.bf16.msra.mxu0 0
    %2096 = vmatprep.subr.bf16.mxu0 0
    %2097 = vmatpush1.bf16.msra.mxu0 0
    %2098 = vmatprep.subr.bf16.mxu0 0
    %2099 = vmatpush1.bf16.msra.mxu0 0
    %2100 = vmatprep.subr.bf16.mxu0 0
    %2101 = vmatpush1.bf16.msra.mxu0 0
    %2102 = vmatprep.subr.bf16.mxu0 0
    %2103 = vmatpush1.bf16.msra.mxu0 0
    %2104 = vmatprep.subr.bf16.mxu0 0
    %2105 = vmatpush1.bf16.msra.mxu0 0
    %2106 = vmatprep.subr.bf16.mxu0 0
    %2107 = vmatpush1.bf16.msra.mxu0 0
    %2108 = vmatprep.subr.bf16.mxu0 0
    %2109 = vmatpush1.bf16.msra.mxu0 0
    %2110 = vmatprep.subr.bf16.mxu0 0
    %2111 = vmatpush1.bf16.msra.mxu0 0
    %2112 = vmatprep.subr.bf16.mxu0 0
    %2113 = vmatpush1.bf16.msra.mxu0 0
    %2114 = vmatprep.mubr.bf16.mxu0 0
    %2115 = vmatmul.mubr.bf16.gmra.mrb[0].mxu0 %v2077
    %v2116 = vpop.f32.mrb[0].mxu0
    %v2117 = vadd.f32 0.0, %v2116
    %v2118 = vpop.f32.mrb[0].mxu0
    %v2119 = vpop.f32.mrb[0].mxu0
    %v2120 = vpop.f32.mrb[0].mxu0
    %2121 = vdwg.mxu0
    %2122 = vrot.lane.b32.xlu0 %v1635, 96
    %v2123 = vpop.permute.xlu0 %2122
    %v2125 = vsel %vm315, %v2073, 0
    %v2128 = vsel %vm345, %v2123, 0
    %2130 = vmatprep.subr.bf16.mxu0 0
    %2131 = vmatpush1.bf16.msra.mxu0 %v2128
    %2132 = vmatprep.subr.bf16.mxu0 0
    %2133 = vmatpush1.bf16.msra.mxu0 0
    %2134 = vmatprep.subr.bf16.mxu0 0
    %2135 = vmatpush1.bf16.msra.mxu0 0
    %2136 = vmatprep.subr.bf16.mxu0 0
    %2137 = vmatpush1.bf16.msra.mxu0 0
    %2138 = vmatprep.subr.bf16.mxu0 0
    %2139 = vmatpush1.bf16.msra.mxu0 0
    %2140 = vmatprep.subr.bf16.mxu0 0
    %2141 = vmatpush1.bf16.msra.mxu0 0
    %2142 = vmatprep.subr.bf16.mxu0 0
    %2143 = vmatpush1.bf16.msra.mxu0 0
    %2144 = vmatprep.subr.bf16.mxu0 0
    %2145 = vmatpush1.bf16.msra.mxu0 0
    %2146 = vmatprep.subr.bf16.mxu0 0
    %2147 = vmatpush1.bf16.msra.mxu0 0
    %2148 = vmatprep.subr.bf16.mxu0 0
    %2149 = vmatpush1.bf16.msra.mxu0 0
    %2150 = vmatprep.subr.bf16.mxu0 0
    %2151 = vmatpush1.bf16.msra.mxu0 0
    %2152 = vmatprep.subr.bf16.mxu0 0
    %2153 = vmatpush1.bf16.msra.mxu0 0
    %2154 = vmatprep.subr.bf16.mxu0 0
    %2155 = vmatpush1.bf16.msra.mxu0 0
    %2156 = vmatprep.subr.bf16.mxu0 0
    %2157 = vmatpush1.bf16.msra.mxu0 0
    %2158 = vmatprep.subr.bf16.mxu0 0
    %2159 = vmatpush1.bf16.msra.mxu0 0
    %2160 = vmatprep.subr.bf16.mxu0 0
    %2161 = vmatpush1.bf16.msra.mxu0 0
    %2162 = vmatprep.mubr.bf16.mxu0 0
    %2163 = vmatmul.mubr.bf16.gmra.mrb[0].mxu0 %v2125
    %v2164 = vpop.f32.mrb[0].mxu0
    %v2165 = vadd.f32 0.0, %v2164
    %v2166 = vpop.f32.mrb[0].mxu0
    %v2167 = vpop.f32.mrb[0].mxu0
    %v2168 = vpop.f32.mrb[0].mxu0
    %2169 = vdwg.mxu0
    %2170 = vrot.lane.b32.xlu0 %v1510, 80
    %v2171 = vpop.permute.xlu0 %2170
    %2172 = vrot.lane.b32.xlu0 %v1510, 16
    %v2173 = vpop.permute.xlu0 %2172
    %v2175 = vsel %vm86, %v2171, 0
    %v2178 = vsel %vm86, %v2173, 0
    %2180 = vmatprep.subr.bf16.mxu0 0
    %2181 = vmatpush1.bf16.xpose.msra.mxu0 %v2178
    %2182 = vmatprep.subr.bf16.mxu0 0
    %2183 = vmatpush1.bf16.xpose.msra.mxu0 0
    %2184 = vmatprep.subr.bf16.mxu0 0
    %2185 = vmatpush1.bf16.xpose.msra.mxu0 0
    %2186 = vmatprep.subr.bf16.mxu0 0
    %2187 = vmatpush1.bf16.xpose.msra.mxu0 0
    %2188 = vmatprep.subr.bf16.mxu0 0
    %2189 = vmatpush1.bf16.xpose.msra.mxu0 0
    %2190 = vmatprep.subr.bf16.mxu0 0
    %2191 = vmatpush1.bf16.xpose.msra.mxu0 0
    %2192 = vmatprep.subr.bf16.mxu0 0
    %2193 = vmatpush1.bf16.xpose.msra.mxu0 0
    %2194 = vmatprep.subr.bf16.mxu0 0
    %2195 = vmatpush1.bf16.xpose.msra.mxu0 0
    %2196 = vmatprep.subr.bf16.mxu0 0
    %2197 = vmatpush1.bf16.xpose.msra.mxu0 0
    %2198 = vmatprep.subr.bf16.mxu0 0
    %2199 = vmatpush1.bf16.xpose.msra.mxu0 0
    %2200 = vmatprep.subr.bf16.mxu0 0
    %2201 = vmatpush1.bf16.xpose.msra.mxu0 0
    %2202 = vmatprep.subr.bf16.mxu0 0
    %2203 = vmatpush1.bf16.xpose.msra.mxu0 0
    %2204 = vmatprep.subr.bf16.mxu0 0
    %2205 = vmatpush1.bf16.xpose.msra.mxu0 0
    %2206 = vmatprep.subr.bf16.mxu0 0
    %2207 = vmatpush1.bf16.xpose.msra.mxu0 0
    %2208 = vmatprep.subr.bf16.mxu0 0
    %2209 = vmatpush1.bf16.xpose.msra.mxu0 0
    %2210 = vmatprep.subr.bf16.mxu0 0
    %2211 = vmatpush1.bf16.xpose.msra.mxu0 0
    %2212 = vmatprep.mubr.bf16.mxu0 0
    %2213 = vmatmul.mubr.bf16.gmra.mrb[0].mxu0 %v2175
    %v2214 = vpop.f32.mrb[0].mxu0
    %v2215 = vadd.f32 0.0, %v2214
    %v2216 = vpop.f32.mrb[0].mxu0
    %v2217 = vpop.f32.mrb[0].mxu0
    %v2218 = vpop.f32.mrb[0].mxu0
    %2219 = vdwg.mxu0
    %2220 = vrot.lane.b32.xlu0 %v1511, 80
    %v2221 = vpop.permute.xlu0 %2220
    %2222 = vrot.lane.b32.xlu0 %v1511, 16
    %v2223 = vpop.permute.xlu0 %2222
    %v2225 = vsel %vm86, %v2221, 0
    %v2228 = vsel %vm86, %v2223, 0
    %2230 = vmatprep.subr.bf16.mxu0 0
    %2231 = vmatpush1.bf16.xpose.msra.mxu0 %v2228
    %2232 = vmatprep.subr.bf16.mxu0 0
    %2233 = vmatpush1.bf16.xpose.msra.mxu0 0
    %2234 = vmatprep.subr.bf16.mxu0 0
    %2235 = vmatpush1.bf16.xpose.msra.mxu0 0
    %2236 = vmatprep.subr.bf16.mxu0 0
    %2237 = vmatpush1.bf16.xpose.msra.mxu0 0
    %2238 = vmatprep.subr.bf16.mxu0 0
    %2239 = vmatpush1.bf16.xpose.msra.mxu0 0
    %2240 = vmatprep.subr.bf16.mxu0 0
    %2241 = vmatpush1.bf16.xpose.msra.mxu0 0
    %2242 = vmatprep.subr.bf16.mxu0 0
    %2243 = vmatpush1.bf16.xpose.msra.mxu0 0
    %2244 = vmatprep.subr.bf16.mxu0 0
    %2245 = vmatpush1.bf16.xpose.msra.mxu0 0
    %2246 = vmatprep.subr.bf16.mxu0 0
    %2247 = vmatpush1.bf16.xpose.msra.mxu0 0
    %2248 = vmatprep.subr.bf16.mxu0 0
    %2249 = vmatpush1.bf16.xpose.msra.mxu0 0
    %2250 = vmatprep.subr.bf16.mxu0 0
    %2251 = vmatpush1.bf16.xpose.msra.mxu0 0
    %2252 = vmatprep.subr.bf16.mxu0 0
    %2253 = vmatpush1.bf16.xpose.msra.mxu0 0
    %2254 = vmatprep.subr.bf16.mxu0 0
    %2255 = vmatpush1.bf16.xpose.msra.mxu0 0
    %2256 = vmatprep.subr.bf16.mxu0 0
    %2257 = vmatpush1.bf16.xpose.msra.mxu0 0
    %2258 = vmatprep.subr.bf16.mxu0 0
    %2259 = vmatpush1.bf16.xpose.msra.mxu0 0
    %2260 = vmatprep.subr.bf16.mxu0 0
    %2261 = vmatpush1.bf16.xpose.msra.mxu0 0
    %2262 = vmatprep.mubr.bf16.mxu0 0
    %2263 = vmatmul.mubr.bf16.gmra.mrb[0].mxu0 %v2225
    %v2264 = vpop.f32.mrb[0].mxu0
    %v2265 = vadd.f32 0.0, %v2264
    %v2266 = vpop.f32.mrb[0].mxu0
    %v2267 = vpop.f32.mrb[0].mxu0
    %v2268 = vpop.f32.mrb[0].mxu0
    %2269 = vdwg.mxu0
    %v2270 = vsel %vm315, %v2215, -inf
    %2271 = vmax.xlane.f32.xlu0 %v2270
    %v2272 = vpop.xlane.xlu0 %2271
    %v2273 = vsel %vm315, %v2265, -inf
    %2274 = vmax.xlane.f32.xlu0 %v2273
    %v2275 = vpop.xlane.xlu0 %2274
    %v2276 = vsub.f32 %v2215, %v2272
    %v2277 = vsub.f32 %v2265, %v2275
    %v2278 = vmul.f32 %v2276, 1.442695
    %v2279 = vpow.pop %v2278
    %v2280 = vmul.f32 %v2277, 1.442695
    %v2281 = vpow.pop %v2280
    %v2282 = vsel %vm315, %v2279, 0.0
    %2283 = vadd.xlane.f32.xlu0 %v2282
    %v2284 = vpop.xlane.xlu0 %2283
    %v2285 = vsel %vm315, %v2281, 0.0
    %2286 = vadd.xlane.f32.xlu0 %v2285
    %v2287 = vpop.xlane.xlu0 %2286
    %v2288 = vrcp.pop %v2284
    %v2289 = vrcp.pop %v2287
    %v2290 = vmul.f32 %v2279, %v2288
    %v2291 = vmul.f32 %v2281, %v2289
    %v2292 = vpack.c.bf16 %v2290, %v2290
    %v2293 = vpack.c.bf16 %v2291, %v2291
    %2294 = vrot.lane.b32.xlu0 %v1634, 80
    %v2295 = vpop.permute.xlu0 %2294
    %v2297 = vsel %vm315, %v2292, 0
    %v2300 = vsel %vm345, %v2295, 0
    %2302 = vmatprep.subr.bf16.mxu0 0
    %2303 = vmatpush1.bf16.msra.mxu0 %v2300
    %2304 = vmatprep.subr.bf16.mxu0 0
    %2305 = vmatpush1.bf16.msra.mxu0 0
    %2306 = vmatprep.subr.bf16.mxu0 0
    %2307 = vmatpush1.bf16.msra.mxu0 0
    %2308 = vmatprep.subr.bf16.mxu0 0
    %2309 = vmatpush1.bf16.msra.mxu0 0
    %2310 = vmatprep.subr.bf16.mxu0 0
    %2311 = vmatpush1.bf16.msra.mxu0 0
    %2312 = vmatprep.subr.bf16.mxu0 0
    %2313 = vmatpush1.bf16.msra.mxu0 0
    %2314 = vmatprep.subr.bf16.mxu0 0
    %2315 = vmatpush1.bf16.msra.mxu0 0
    %2316 = vmatprep.subr.bf16.mxu0 0
    %2317 = vmatpush1.bf16.msra.mxu0 0
    %2318 = vmatprep.subr.bf16.mxu0 0
    %2319 = vmatpush1.bf16.msra.mxu0 0
    %2320 = vmatprep.subr.bf16.mxu0 0
    %2321 = vmatpush1.bf16.msra.mxu0 0
    %2322 = vmatprep.subr.bf16.mxu0 0
    %2323 = vmatpush1.bf16.msra.mxu0 0
    %2324 = vmatprep.subr.bf16.mxu0 0
    %2325 = vmatpush1.bf16.msra.mxu0 0
    %2326 = vmatprep.subr.bf16.mxu0 0
    %2327 = vmatpush1.bf16.msra.mxu0 0
    %2328 = vmatprep.subr.bf16.mxu0 0
    %2329 = vmatpush1.bf16.msra.mxu0 0
    %2330 = vmatprep.subr.bf16.mxu0 0
    %2331 = vmatpush1.bf16.msra.mxu0 0
    %2332 = vmatprep.subr.bf16.mxu0 0
    %2333 = vmatpush1.bf16.msra.mxu0 0
    %2334 = vmatprep.mubr.bf16.mxu0 0
    %2335 = vmatmul.mubr.bf16.gmra.mrb[0].mxu0 %v2297
    %v2336 = vpop.f32.mrb[0].mxu0
    %v2337 = vadd.f32 0.0, %v2336
    %v2338 = vpop.f32.mrb[0].mxu0
    %v2339 = vpop.f32.mrb[0].mxu0
    %v2340 = vpop.f32.mrb[0].mxu0
    %2341 = vdwg.mxu0
    %2342 = vrot.lane.b32.xlu0 %v1635, 80
    %v2343 = vpop.permute.xlu0 %2342
    %v2345 = vsel %vm315, %v2293, 0
    %v2348 = vsel %vm345, %v2343, 0
    %2350 = vmatprep.subr.bf16.mxu0 0
    %2351 = vmatpush1.bf16.msra.mxu0 %v2348
    %2352 = vmatprep.subr.bf16.mxu0 0
    %2353 = vmatpush1.bf16.msra.mxu0 0
    %2354 = vmatprep.subr.bf16.mxu0 0
    %2355 = vmatpush1.bf16.msra.mxu0 0
    %2356 = vmatprep.subr.bf16.mxu0 0
    %2357 = vmatpush1.bf16.msra.mxu0 0
    %2358 = vmatprep.subr.bf16.mxu0 0
    %2359 = vmatpush1.bf16.msra.mxu0 0
    %2360 = vmatprep.subr.bf16.mxu0 0
    %2361 = vmatpush1.bf16.msra.mxu0 0
    %2362 = vmatprep.subr.bf16.mxu0 0
    %2363 = vmatpush1.bf16.msra.mxu0 0
    %2364 = vmatprep.subr.bf16.mxu0 0
    %2365 = vmatpush1.bf16.msra.mxu0 0
    %2366 = vmatprep.subr.bf16.mxu0 0
    %2367 = vmatpush1.bf16.msra.mxu0 0
    %2368 = vmatprep.subr.bf16.mxu0 0
    %2369 = vmatpush1.bf16.msra.mxu0 0
    %2370 = vmatprep.subr.bf16.mxu0 0
    %2371 = vmatpush1.bf16.msra.mxu0 0
    %2372 = vmatprep.subr.bf16.mxu0 0
    %2373 = vmatpush1.bf16.msra.mxu0 0
    %2374 = vmatprep.subr.bf16.mxu0 0
    %2375 = vmatpush1.bf16.msra.mxu0 0
    %2376 = vmatprep.subr.bf16.mxu0 0
    %2377 = vmatpush1.bf16.msra.mxu0 0
    %2378 = vmatprep.subr.bf16.mxu0 0
    %2379 = vmatpush1.bf16.msra.mxu0 0
    %2380 = vmatprep.subr.bf16.mxu0 0
    %2381 = vmatpush1.bf16.msra.mxu0 0
    %2382 = vmatprep.mubr.bf16.mxu0 0
    %2383 = vmatmul.mubr.bf16.gmra.mrb[0].mxu0 %v2345
    %v2384 = vpop.f32.mrb[0].mxu0
    %v2385 = vadd.f32 0.0, %v2384
    %v2386 = vpop.f32.mrb[0].mxu0
    %v2387 = vpop.f32.mrb[0].mxu0
    %v2388 = vpop.f32.mrb[0].mxu0
    %2389 = vdwg.mxu0
    %2392 = vrot.lane.b32.xlu0 %v1896, 16
    %v2393 = vpop.permute.xlu0 %2392
    %2394 = vrot.lane.b32.xlu0 %v1945, 16
    %v2395 = vpop.permute.xlu0 %2394
    %2400 = vrot.lane.b32.xlu0 %v2117, 32
    %v2401 = vpop.permute.xlu0 %2400
    %2402 = vrot.lane.b32.xlu0 %v2165, 32
    %v2403 = vpop.permute.xlu0 %2402
    %2408 = vrot.lane.b32.xlu0 %v2337, 48
    %v2409 = vpop.permute.xlu0 %2408
    %2410 = vrot.lane.b32.xlu0 %v2385, 48
    %v2411 = vpop.permute.xlu0 %2410
    %v2414 = vsel %vm86, %v1677, %v2393
    %v2415 = vsel %vm86, %v1723, %v2395
    %v2416 = vsel %vm1123, %v2414, %v2401
    %v2417 = vsel %vm1123, %v2415, %v2403
    %v2418 = vsel %vm1126, %v2416, %v2409
    %v2419 = vsel %vm1126, %v2417, %v2411
    %s2420 = scalar_lea.vmem %s5, 64
    %v2421 = vld [vmem:[%s2420] sm:$0xff]
    %v2422 = vld [vmem:[%s2420 + $0x8] sm:$0xff]
    %v2423 = vld [vmem:[%s2420 + $0x10] sm:$0xff]
    %v2424 = vld [vmem:[%s2420 + $0x18] sm:$0xff]
    %v2425 = vld [vmem:[%s2420 + $0x20] sm:$0xff]
    %v2426 = vld [vmem:[%s2420 + $0x28] sm:$0xff]
    %v2427 = vld [vmem:[%s2420 + $0x30] sm:$0xff]
    %v2428 = vld [vmem:[%s2420 + $0x38] sm:$0xff]
    %v2429 = vpack.c.bf16 %v2419, %v2418
    %v2430 = vpack.c.bf16 %v2422, %v2421
    %v2431 = vpack.c.bf16 %v2424, %v2423
    %v2432 = vpack.c.bf16 %v2426, %v2425
    %v2433 = vpack.c.bf16 %v2428, %v2427
    %s2434 = scalar_lea.vmem %s6, 1
    %v2435 = vld [vmem:[%s2434] sm:$0x1]
    %v2437 = vlaneseq
    %v2438 = vshrl.u32 %v2437, 7
    %v2439 = vsub.s32 0, %v2438
    %v2440 = vrot.slane %v2435, %v2439
    %v2443 = vsel %vm168, %v2429, 0
    %2445 = vmatprep.subr.bf16.mxu0 0
    %2446 = vmatpush1.bf16.msra.mxu0 %v2430
    %2447 = vmatprep.subr.bf16.mxu0 0
    %2448 = vmatpush1.bf16.msra.mxu0 %v2431
    %2449 = vmatprep.subr.bf16.mxu0 0
    %2450 = vmatpush1.bf16.msra.mxu0 %v2432
    %2451 = vmatprep.subr.bf16.mxu0 0
    %2452 = vmatpush1.bf16.msra.mxu0 %v2433
    %2453 = vmatprep.subr.bf16.mxu0 0
    %2454 = vmatpush1.bf16.msra.mxu0 0
    %2455 = vmatprep.subr.bf16.mxu0 0
    %2456 = vmatpush1.bf16.msra.mxu0 0
    %2457 = vmatprep.subr.bf16.mxu0 0
    %2458 = vmatpush1.bf16.msra.mxu0 0
    %2459 = vmatprep.subr.bf16.mxu0 0
    %2460 = vmatpush1.bf16.msra.mxu0 0
    %2461 = vmatprep.subr.bf16.mxu0 0
    %2462 = vmatpush1.bf16.msra.mxu0 0
    %2463 = vmatprep.subr.bf16.mxu0 0
    %2464 = vmatpush1.bf16.msra.mxu0 0
    %2465 = vmatprep.subr.bf16.mxu0 0
    %2466 = vmatpush1.bf16.msra.mxu0 0
    %2467 = vmatprep.subr.bf16.mxu0 0
    %2468 = vmatpush1.bf16.msra.mxu0 0
    %2469 = vmatprep.subr.bf16.mxu0 0
    %2470 = vmatpush1.bf16.msra.mxu0 0
    %2471 = vmatprep.subr.bf16.mxu0 0
    %2472 = vmatpush1.bf16.msra.mxu0 0
    %2473 = vmatprep.subr.bf16.mxu0 0
    %2474 = vmatpush1.bf16.msra.mxu0 0
    %2475 = vmatprep.subr.bf16.mxu0 0
    %2476 = vmatpush1.bf16.msra.mxu0 0
    %2477 = vmatprep.mubr.bf16.mxu0 0
    %2478 = vmatmul.mubr.bf16.gmra.mrb[0].mxu0 %v2443
    %v2479 = vpop.f32.mrb[0].mxu0
    %v2480 = vadd.f32 %v2440, %v2479
    %v2481 = vpop.f32.mrb[0].mxu0
    %v2482 = vpop.f32.mrb[0].mxu0
    %v2483 = vadd.f32 %v2440, %v2482
    %v2484 = vpop.f32.mrb[0].mxu0
    %2485 = vdwg.mxu0
    %v2486 = vadd.f32 %v1423, %v2480
    %v2487 = vadd.f32 %v1424, %v2483
    %s2488 = scalar_lea.vmem %s7, 1
    %v2489 = vld [vmem:[%s2488] sm:$0x1]
    %s2490 = scalar_lea.vmem %s8, 1
    %v2491 = vld [vmem:[%s2490] sm:$0x1]
    %v2492 = vsel %vm168, %v2486, 0.0
    %2493 = vadd.xlane.f32.xlu0 %v2492
    %v2494 = vpop.xlane.xlu0 %2493
    %v2495 = vsel %vm168, %v2487, 0.0
    %2496 = vadd.xlane.f32.xlu0 %v2495
    %v2497 = vpop.xlane.xlu0 %2496
    %v2498 = vmul.f32 %v2494, %v1203
    %v2499 = vmul.f32 %v2497, %v1203
    %v2500 = vsub.f32 %v2486, %v2498
    %v2501 = vsub.f32 %v2487, %v2499
    %v2502 = vmul.f32 %v2500, %v2500
    %v2503 = vmul.f32 %v2501, %v2501
    %v2504 = vsel %vm168, %v2502, 0.0
    %2505 = vadd.xlane.f32.xlu0 %v2504
    %v2506 = vpop.xlane.xlu0 %2505
    %v2507 = vsel %vm168, %v2503, 0.0
    %2508 = vadd.xlane.f32.xlu0 %v2507
    %v2509 = vpop.xlane.xlu0 %2508
    %v2510 = vmul.f32 %v2506, %v1203
    %v2511 = vmul.f32 %v2509, %v1203
    %v2512 = vadd.f32 %v2510, 1e-05
    %v2513 = vadd.f32 %v2511, 1e-05
    %v2514 = vrsqrt.pop %v2512
    %v2515 = vrsqrt.pop %v2513
    %v2516 = vmul.f32 %v2500, %v2514
    %v2517 = vmul.f32 %v2501, %v2515
    %v2519 = vlaneseq
    %v2520 = vshrl.u32 %v2519, 7
    %v2521 = vsub.s32 0, %v2520
    %v2522 = vrot.slane %v2489, %v2521
    %v2524 = vmul.f32 %v2516, %v2522
    %v2525 = vmul.f32 %v2517, %v2522
    %v2527 = vlaneseq
    %v2528 = vshrl.u32 %v2527, 7
    %v2529 = vsub.s32 0, %v2528
    %v2530 = vrot.slane %v2491, %v2529
    %v2532 = vadd.f32 %v2524, %v2530
    %v2533 = vadd.f32 %v2525, %v2530
    %s2534 = scalar_lea.vmem [#allocation3], 64
    %v2535 = vld [vmem:[%s2534] sm:$0xff]
    %v2536 = vld [vmem:[%s2534 + $0x8] sm:$0xff]
    %v2537 = vld [vmem:[%s2534 + $0x10] sm:$0xff]
    %v2538 = vld [vmem:[%s2534 + $0x18] sm:$0xff]
    %v2539 = vld [vmem:[%s2534 + $0x20] sm:$0xff]
    %v2540 = vld [vmem:[%s2534 + $0x28] sm:$0xff]
    %v2541 = vld [vmem:[%s2534 + $0x30] sm:$0xff]
    %v2542 = vld [vmem:[%s2534 + $0x38] sm:$0xff]
    %v2543 = vpack.c.bf16 %v2533, %v2532
    %v2544 = vpack.c.bf16 %v2536, %v2535
    %v2545 = vpack.c.bf16 %v2538, %v2537
    %v2546 = vpack.c.bf16 %v2540, %v2539
    %v2547 = vpack.c.bf16 %v2542, %v2541
    %s2548 = scalar_lea.vmem %s10, 1
    %v2549 = vld [vmem:[%s2548] sm:$0x1]
    %v2551 = vlaneseq
    %v2552 = vshrl.u32 %v2551, 7
    %v2553 = vsub.s32 0, %v2552
    %v2554 = vrot.slane %v2549, %v2553
    %v2557 = vsel %vm168, %v2543, 0
    %2559 = vmatprep.subr.bf16.mxu0 0
    %2560 = vmatpush1.bf16.msra.mxu0 %v2544
    %2561 = vmatprep.subr.bf16.mxu0 0
    %2562 = vmatpush1.bf16.msra.mxu0 %v2545
    %2563 = vmatprep.subr.bf16.mxu0 0
    %2564 = vmatpush1.bf16.msra.mxu0 %v2546
    %2565 = vmatprep.subr.bf16.mxu0 0
    %2566 = vmatpush1.bf16.msra.mxu0 %v2547
    %2567 = vmatprep.subr.bf16.mxu0 0
    %2568 = vmatpush1.bf16.msra.mxu0 0
    %2569 = vmatprep.subr.bf16.mxu0 0
    %2570 = vmatpush1.bf16.msra.mxu0 0
    %2571 = vmatprep.subr.bf16.mxu0 0
    %2572 = vmatpush1.bf16.msra.mxu0 0
    %2573 = vmatprep.subr.bf16.mxu0 0
    %2574 = vmatpush1.bf16.msra.mxu0 0
    %2575 = vmatprep.subr.bf16.mxu0 0
    %2576 = vmatpush1.bf16.msra.mxu0 0
    %2577 = vmatprep.subr.bf16.mxu0 0
    %2578 = vmatpush1.bf16.msra.mxu0 0
    %2579 = vmatprep.subr.bf16.mxu0 0
    %2580 = vmatpush1.bf16.msra.mxu0 0
    %2581 = vmatprep.subr.bf16.mxu0 0
    %2582 = vmatpush1.bf16.msra.mxu0 0
    %2583 = vmatprep.subr.bf16.mxu0 0
    %2584 = vmatpush1.bf16.msra.mxu0 0
    %2585 = vmatprep.subr.bf16.mxu0 0
    %2586 = vmatpush1.bf16.msra.mxu0 0
    %2587 = vmatprep.subr.bf16.mxu0 0
    %2588 = vmatpush1.bf16.msra.mxu0 0
    %2589 = vmatprep.subr.bf16.mxu0 0
    %2590 = vmatpush1.bf16.msra.mxu0 0
    %2591 = vmatprep.mubr.bf16.mxu0 0
    %2592 = vmatmul.mubr.bf16.gmra.mrb[0].mxu0 %v2557
    %v2593 = vpop.f32.mrb[0].mxu0
    %v2594 = vadd.f32 %v2554, %v2593
    %v2595 = vpop.f32.mrb[0].mxu0
    %v2596 = vpop.f32.mrb[0].mxu0
    %v2597 = vadd.f32 %v2554, %v2596
    %v2598 = vpop.f32.mrb[0].mxu0
    %2599 = vdwg.mxu0
    %v2600 = vmax.f32 %v2594, 0.0
    %v2601 = vmax.f32 %v2597, 0.0
    %s2602 = scalar_lea.vmem %s11, 128
    %v2603 = vld [vmem:[%s2602] sm:$0xff]
    %v2604 = vld [vmem:[%s2602 + $0x8] sm:$0xff]
    %v2605 = vld [vmem:[%s2602 + $0x10] sm:$0xff]
    %v2606 = vld [vmem:[%s2602 + $0x18] sm:$0xff]
    %v2607 = vld [vmem:[%s2602 + $0x20] sm:$0xff]
    %v2608 = vld [vmem:[%s2602 + $0x28] sm:$0xff]
    %v2609 = vld [vmem:[%s2602 + $0x30] sm:$0xff]
    %v2610 = vld [vmem:[%s2602 + $0x38] sm:$0xff]
    %v2611 = vld [vmem:[%s2602 + $0x40] sm:$0xff]
    %v2612 = vld [vmem:[%s2602 + $0x48] sm:$0xff]
    %v2613 = vld [vmem:[%s2602 + $0x50] sm:$0xff]
    %v2614 = vld [vmem:[%s2602 + $0x58] sm:$0xff]
    %v2615 = vld [vmem:[%s2602 + $0x60] sm:$0xff]
    %v2616 = vld [vmem:[%s2602 + $0x68] sm:$0xff]
    %v2617 = vld [vmem:[%s2602 + $0x70] sm:$0xff]
    %v2618 = vld [vmem:[%s2602 + $0x78] sm:$0xff]
    %v2619 = vpack.c.bf16 %v2601, %v2600
    %v2620 = vpack.c.bf16 %v2604, %v2603
    %v2621 = vpack.c.bf16 %v2606, %v2605
    %v2622 = vpack.c.bf16 %v2608, %v2607
    %v2623 = vpack.c.bf16 %v2610, %v2609
    %v2624 = vpack.c.bf16 %v2612, %v2611
    %v2625 = vpack.c.bf16 %v2614, %v2613
    %v2626 = vpack.c.bf16 %v2616, %v2615
    %v2627 = vpack.c.bf16 %v2618, %v2617
    %s2628 = scalar_lea.vmem %s12, 1
    %v2629 = vld [vmem:[%s2628] sm:$0x1]
    %v2631 = vlaneseq
    %v2632 = vshrl.u32 %v2631, 7
    %v2633 = vsub.s32 0, %v2632
    %v2634 = vrot.slane %v2629, %v2633
    %2636 = vmatprep.subr.bf16.mxu0 0
    %2637 = vmatpush1.bf16.msra.mxu0 %v2620
    %2638 = vmatprep.subr.bf16.mxu0 0
    %2639 = vmatpush1.bf16.msra.mxu0 %v2621
    %2640 = vmatprep.subr.bf16.mxu0 0
    %2641 = vmatpush1.bf16.msra.mxu0 %v2622
    %2642 = vmatprep.subr.bf16.mxu0 0
    %2643 = vmatpush1.bf16.msra.mxu0 %v2623
    %2644 = vmatprep.subr.bf16.mxu0 0
    %2645 = vmatpush1.bf16.msra.mxu0 %v2624
    %2646 = vmatprep.subr.bf16.mxu0 0
    %2647 = vmatpush1.bf16.msra.mxu0 %v2625
    %2648 = vmatprep.subr.bf16.mxu0 0
    %2649 = vmatpush1.bf16.msra.mxu0 %v2626
    %2650 = vmatprep.subr.bf16.mxu0 0
    %2651 = vmatpush1.bf16.msra.mxu0 %v2627
    %2652 = vmatprep.subr.bf16.mxu0 0
    %2653 = vmatpush1.bf16.msra.mxu0 0
    %2654 = vmatprep.subr.bf16.mxu0 0
    %2655 = vmatpush1.bf16.msra.mxu0 0
    %2656 = vmatprep.subr.bf16.mxu0 0
    %2657 = vmatpush1.bf16.msra.mxu0 0
    %2658 = vmatprep.subr.bf16.mxu0 0
    %2659 = vmatpush1.bf16.msra.mxu0 0
    %2660 = vmatprep.subr.bf16.mxu0 0
    %2661 = vmatpush1.bf16.msra.mxu0 0
    %2662 = vmatprep.subr.bf16.mxu0 0
    %2663 = vmatpush1.bf16.msra.mxu0 0
    %2664 = vmatprep.subr.bf16.mxu0 0
    %2665 = vmatpush1.bf16.msra.mxu0 0
    %2666 = vmatprep.subr.bf16.mxu0 0
    %2667 = vmatpush1.bf16.msra.mxu0 0
    %2668 = vmatprep.mubr.bf16.mxu0 0
    %2669 = vmatmul.mubr.bf16.gmra.mrb[0].mxu0 %v2619
    %v2670 = vpop.f32.mrb[0].mxu0
    %v2671 = vadd.f32 %v2634, %v2670
    %v2672 = vpop.f32.mrb[0].mxu0
    %v2673 = vpop.f32.mrb[0].mxu0
    %v2674 = vadd.f32 %v2634, %v2673
    %v2675 = vpop.f32.mrb[0].mxu0
    %2676 = vdwg.mxu0
    %v2677 = vadd.f32 %v2532, %v2671
    %v2678 = vadd.f32 %v2533, %v2674
    %s2679 = scalar_lea.vmem %s13, 1
    %v2680 = vld [vmem:[%s2679] sm:$0x1]
    %s2681 = scalar_lea.vmem %s14, 1
    %v2682 = vld [vmem:[%s2681] sm:$0x1]
    %v2683 = vsel %vm168, %v2677, 0.0
    %2684 = vadd.xlane.f32.xlu0 %v2683
    %v2685 = vpop.xlane.xlu0 %2684
    %v2686 = vsel %vm168, %v2678, 0.0
    %2687 = vadd.xlane.f32.xlu0 %v2686
    %v2688 = vpop.xlane.xlu0 %2687
    %v2689 = vmul.f32 %v2685, %v1203
    %v2690 = vmul.f32 %v2688, %v1203
    %v2691 = vsub.f32 %v2677, %v2689
    %v2692 = vsub.f32 %v2678, %v2690
    %v2693 = vmul.f32 %v2691, %v2691
    %v2694 = vmul.f32 %v2692, %v2692
    %v2695 = vsel %vm168, %v2693, 0.0
    %2696 = vadd.xlane.f32.xlu0 %v2695
    %v2697 = vpop.xlane.xlu0 %2696
    %v2698 = vsel %vm168, %v2694, 0.0
    %2699 = vadd.xlane.f32.xlu0 %v2698
    %v2700 = vpop.xlane.xlu0 %2699
    %v2701 = vmul.f32 %v2697, %v1203
    %v2702 = vmul.f32 %v2700, %v1203
    %v2703 = vadd.f32 %v2701, 1e-05
    %v2704 = vadd.f32 %v2702, 1e-05
    %v2705 = vrsqrt.pop %v2703
    %v2706 = vrsqrt.pop %v2704
    %v2707 = vmul.f32 %v2691, %v2705
    %v2708 = vmul.f32 %v2692, %v2706
    %v2710 = vlaneseq
    %v2711 = vshrl.u32 %v2710, 7
    %v2712 = vsub.s32 0, %v2711
    %v2713 = vrot.slane %v2680, %v2712
    %v2715 = vmul.f32 %v2707, %v2713
    %v2716 = vmul.f32 %v2708, %v2713
    %v2718 = vlaneseq
    %v2719 = vshrl.u32 %v2718, 7
    %v2720 = vsub.s32 0, %v2719
    %v2721 = vrot.slane %v2682, %v2720
    %v2723 = vadd.f32 %v2715, %v2721
    %v2724 = vadd.f32 %v2716, %v2721
    %v2725 = vld [vmem:[%s15] sm:$0xff]
    %v2726 = vld [vmem:[%s15 + $0x8] sm:$0xff]
    %v2727 = vld [vmem:[%s15 + $0x10] sm:$0xff]
    %v2728 = vld [vmem:[%s15 + $0x18] sm:$0xff]
    %v2729 = vld [vmem:[%s15 + $0x20] sm:$0xff]
    %v2730 = vld [vmem:[%s15 + $0x28] sm:$0xff]
    %v2731 = vld [vmem:[%s15 + $0x30] sm:$0xff]
    %v2732 = vld [vmem:[%s15 + $0x38] sm:$0xff]
    %v2733 = vpack.c.bf16 %v2723, %v2723
    %v2734 = vpack.c.bf16 %v2724, %v2724
    %v2735 = vpack.c.bf16 %v2726, %v2725
    %v2736 = vpack.c.bf16 %v2728, %v2727
    %v2737 = vpack.c.bf16 %v2730, %v2729
    %v2738 = vpack.c.bf16 %v2732, %v2731
    %v2739 = vld [vmem:[#allocation2] sm:$0x1]
    %v2741 = vlaneseq
    %v2742 = vshrl.u32 %v2741, 7
    %v2743 = vsub.s32 0, %v2742
    %v2744 = vrot.slane %v2739, %v2743
    %v2748 = vunpack.c.l.b16 %v2733
    %v2749 = vunpack.c.l.b16 %v2734
    %v2750 = vrot.slane %v2748, 7
    %v2751 = vrot.slane %v2749, 6
    %vm2752 = vcmask 1041409
    %v2753 = vsel %vm2752, %v2751, %v2750
    %v2754 = vpack.c.b16 %v2753, %v2753
    %v2756 = vsel %vm168, %v2754, 0
    %2758 = vmatprep.subr.bf16.mxu0 0
    %2759 = vmatpush1.bf16.msra.mxu0 %v2735
    %2760 = vmatprep.subr.bf16.mxu0 0
    %2761 = vmatpush1.bf16.msra.mxu0 %v2736
    %2762 = vmatprep.subr.bf16.mxu0 0
    %2763 = vmatpush1.bf16.msra.mxu0 %v2737
    %2764 = vmatprep.subr.bf16.mxu0 0
    %2765 = vmatpush1.bf16.msra.mxu0 %v2738
    %2766 = vmatprep.subr.bf16.mxu0 0
    %2767 = vmatpush1.bf16.msra.mxu0 0
    %2768 = vmatprep.subr.bf16.mxu0 0
    %2769 = vmatpush1.bf16.msra.mxu0 0
    %2770 = vmatprep.subr.bf16.mxu0 0
    %2771 = vmatpush1.bf16.msra.mxu0 0
    %2772 = vmatprep.subr.bf16.mxu0 0
    %2773 = vmatpush1.bf16.msra.mxu0 0
    %2774 = vmatprep.subr.bf16.mxu0 0
    %2775 = vmatpush1.bf16.msra.mxu0 0
    %2776 = vmatprep.subr.bf16.mxu0 0
    %2777 = vmatpush1.bf16.msra.mxu0 0
    %2778 = vmatprep.subr.bf16.mxu0 0
    %2779 = vmatpush1.bf16.msra.mxu0 0
    %2780 = vmatprep.subr.bf16.mxu0 0
    %2781 = vmatpush1.bf16.msra.mxu0 0
    %2782 = vmatprep.subr.bf16.mxu0 0
    %2783 = vmatpush1.bf16.msra.mxu0 0
    %2784 = vmatprep.subr.bf16.mxu0 0
    %2785 = vmatpush1.bf16.msra.mxu0 0
    %2786 = vmatprep.subr.bf16.mxu0 0
    %2787 = vmatpush1.bf16.msra.mxu0 0
    %2788 = vmatprep.subr.bf16.mxu0 0
    %2789 = vmatpush1.bf16.msra.mxu0 0
    %2790 = vmatprep.mubr.bf16.mxu0 0
    %2791 = vmatmul.mubr.bf16.gmra.mrb[0].mxu0 %v2756
    %v2792 = vpop.f32.mrb[0].mxu0
    %v2793 = vadd.f32 %v2744, %v2792
    %v2794 = vpop.f32.mrb[0].mxu0
    %v2795 = vpop.f32.mrb[0].mxu0
    %v2796 = vpop.f32.mrb[0].mxu0
    %2797 = vdwg.mxu0
    %vm2798 = vcmask 1024
    %2799 = vst.msk [vmem:[%s17] sm:$0x3] %vm2798, %v2793
    // Predicated region
    $region74: #{tpu_custom_call.1} parent=1 // pred_check
      _
    $region75: #{tpu_custom_call.1} parent=1 // pred_check_branch
      %2801 = sbr.rel (0) target = $region77
    $region76: #{tpu_custom_call.1} parent=1 // pred_region
      _
    $region77: #{tpu_custom_call.1} parent=1 // pred_fallthru
      _
    // Predicated region
    $region78: #{tpu_custom_call.1} parent=1 // pred_check
      _
    $region79: #{tpu_custom_call.1} parent=1 // pred_check_branch
      %2803 = sbr.rel (0) target = $region81
    $region80: #{tpu_custom_call.1} parent=1 // pred_region
      _
    $region81: #{tpu_custom_call.1} parent=1 // pred_fallthru
      _
    %2804 = vsyncpa [#allocation4], 1

</llo_original>
